<compile_context>
chip_gen: v6e
topology: v6e:2x2x1
jax: 0.10.0
libtpu: 0.0.40
codegen_flags: <defaults>
</compile_context>

<pallas_src>
import jax
import jax.numpy as jnp
from jax.experimental import pallas as pl
from jax.experimental.pallas import tpu as pltpu


def _elu(v):
    # ELU(alpha=1): v if v > 0 else exp(v) - 1 (EUP exp; select on VPU).
    return jnp.where(v > 0, v, jnp.exp(v) - 1.0)


def discriminator_mlp_kernel(x_ref, xa_ref,
                             w1a_ref, w1b_ref, w2_ref, w3_ref,
                             c_ref, o_ref):
    n2 = w2_ref.shape[1]
    n4 = w3_ref.shape[1]

    # Small constants, statically sliced out of the packed slab.
    b1 = c_ref[0:1, :]           # [1, N]
    b2 = c_ref[1:2, :n2]         # [1, N/2]
    b3 = c_ref[2:3, :n4]         # [1, N/4]
    w4 = c_ref[3:4, :n4]         # [1, N/4]
    b4 = c_ref[4:5, 0:1]         # [1, 1]

    # In-kernel cast of the activation tiles (inputs arrive as f32).
    x_bf = x_ref[...].astype(jnp.bfloat16)
    xa_bf = xa_ref[...].astype(jnp.bfloat16)

    # ----- layer 1: concat folded into two bf16 matmuls, f32 accumulation ----
    h = (jnp.dot(x_bf, w1a_ref[...], preferred_element_type=jnp.float32)
         + jnp.dot(xa_bf, w1b_ref[...], preferred_element_type=jnp.float32)
         + b1)
    h = _elu(h)                                                  # [TB, N] f32

    # ----- layer 2 -----------------------------------------------------------
    h = jnp.dot(h.astype(jnp.bfloat16), w2_ref[...],
                preferred_element_type=jnp.float32) + b2
    h = _elu(h)                                                  # [TB, N/2]

    # ----- layer 3 -----------------------------------------------------------
    h = jnp.dot(h.astype(jnp.bfloat16), w3_ref[...],
                preferred_element_type=jnp.float32) + b3
    h = _elu(h)                                                  # [TB, N/4]

    # ----- layer 4: 1-wide output -> VPU multiply + lane reduction (no MXU) --
    out = jnp.sum(h * w4, axis=-1, keepdims=True) + b4
    o_ref[...] = out.astype(o_ref.dtype)                         # [TB, 1]


def _is_dual_tensorcore():
    # v7x packs 2 TensorCores per chip; v5e/v6e have 1.
    try:
        kind = jax.devices()[0].device_kind.lower()
    except Exception:
        return False
    return "v7" in kind or "7x" in kind


def _choose_tiling(B, dual_core):
    """Returns (tile_b, padded_B)."""
    # Single-core chips: biggest tile first (fewest ~0.35us grid steps).
    # Dual-core (v7x): prefer an even-length grid so 'parallel' shards 2 TCs.
    prefs = (B // 2, 512, 256, 128) if dual_core else (1024, 512, 256, 128)
    for t in prefs:
        if t >= 8 and t % 8 == 0 and B % t == 0:
            if dual_core and (B // t) % 2 != 0:
                continue
            return t, B
    if B <= 1024:
        return B, B          # single tile: block == full array, always legal
    # Ragged large batch: pad to a tile multiple instead of one giant tile.
    t = 512
    return t, ((B + t - 1) // t) * t


def discriminator_mlp(x, x_aug, prepared):
    """x, x_aug: [B, n_tokens, 1] float32. Returns [B, 1] float32."""
    w1a, w1b, w2, w3, consts = prepared
    B = x.shape[0]
    N = w1a.shape[0]

    # Layout-only prep (no dtype convert, no concat): [B,N,1] -> [B,N].
    x2d = x.reshape(B, N)
    xa2d = x_aug.reshape(B, N)

    tile_b, padded_b = _choose_tiling(B, _is_dual_tensorcore())
    if padded_b != B:
        pad = padded_b - B
        x2d = jnp.pad(x2d, ((0, pad), (0, 0)))
        xa2d = jnp.pad(xa2d, ((0, pad), (0, 0)))
    grid = (padded_b // tile_b,)

    act_spec = pl.BlockSpec((tile_b, N), lambda i: (i, 0))
    rep_spec = lambda a: pl.BlockSpec(a.shape, lambda i: (0,) * a.ndim)

    N2, N4 = w2.shape[1], w3.shape[1]
    flops = 2 * padded_b * (2 * N * N + N * N2 + N2 * N4 + N4)
    transcendentals = padded_b * (N + N2 + N4)
    bytes_accessed = (
        2 * padded_b * N * 4                              # x, x_aug f32
        + (2 * N * N + N * N2 + N2 * N4) * 2              # bf16 weights
        + consts.size * 4                                  # packed const slab
        + padded_b * 4                                     # output
    )

    out = pl.pallas_call(
        discriminator_mlp_kernel,
        out_shape=jax.ShapeDtypeStruct((padded_b, 1), jnp.float32),
        grid=grid,
        in_specs=[
            act_spec, act_spec,
            rep_spec(w1a), rep_spec(w1b), rep_spec(w2), rep_spec(w3),
            rep_spec(consts),
        ],
        out_specs=pl.BlockSpec((tile_b, 1), lambda i: (i, 0)),
        compiler_params=pltpu.CompilerParams(
            dimension_semantics=("parallel",)),
        cost_estimate=pl.CostEstimate(
            flops=flops,
            transcendentals=transcendentals,
            bytes_accessed=bytes_accessed),
    )(x2d, xa2d, w1a, w1b, w2, w3, consts)

    return out[:B] if padded_b != B else out


def init_params(key, n_tokens):
    """nn.Linear-style init (U(-1/sqrt(fan_in), 1/sqrt(fan_in))), weights [in, out]."""
    n = n_tokens
    dims = [(2 * n, n), (n, n // 2), (n // 2, n // 4), (n // 4, 1)]
    params = []
    for fan_in, fan_out in dims:
        key, kw, kb = jax.random.split(key, 3)
        bound = 1.0 / (fan_in ** 0.5)
        w = jax.random.uniform(kw, (fan_in, fan_out), jnp.float32, -bound, bound)
        b = jax.random.uniform(kb, (1, fan_out), jnp.float32, -bound, bound)
        params.append((w, b))
    return tuple(params)


def prepare_params(params):
    """One-time conversion (do at init / after each optimizer step, NOT per forward):
    split w1 into its x / x_aug halves, cast matmul weights to bf16, and pack
    the small constant vectors into one padded f32 slab."""
    (w1, b1), (w2, b2), (w3, b3), (w4, b4) = params
    n = w1.shape[1]
    w1a = w1[:n].astype(jnp.bfloat16)
    w1b = w1[n:].astype(jnp.bfloat16)
    w2b = w2.astype(jnp.bfloat16)
    w3b = w3.astype(jnp.bfloat16)

    consts = jnp.zeros((8, n), jnp.float32)          # row 0..4 used, rest pad
    consts = consts.at[0, :].set(b1[0])              # b1  [N]
    consts = consts.at[1, :n // 2].set(b2[0])        # b2  [N/2]
    consts = consts.at[2, :n // 4].set(b3[0])        # b3  [N/4]
    consts = consts.at[3, :n // 4].set(w4[:, 0])     # w4  [N/4]
    consts = consts.at[4, 0].set(b4[0, 0])           # b4  scalar
    return (w1a, w1b, w2b, w3b, consts)


def reference_forward(x, x_aug, params):
    """Pure-JAX f32 reference matching the PyTorch cat + MLP semantics."""
    (w1, b1), (w2, b2), (w3, b3), (w4, b4) = params
    B = x.shape[0]
    h = jnp.concatenate([x.reshape(B, -1), x_aug.reshape(B, -1)], axis=1)
    h = _elu(h @ w1 + b1)
    h = _elu(h @ w2 + b2)
    h = _elu(h @ w3 + b3)
    return h @ w4 + b4


if __name__ == "__main__":
    # n_tokens=256 -> layers 512->256->128->64->1 (original default is 1024;
    # 256 keeps the self-test small). B=512: single-core chips run grid=(1,)
    # with a 512-row tile; v7x runs grid=(2,) with 256-row tiles (megacore).
    B, N = 512, 256
    key = jax.random.PRNGKey(0)
    k_params, kx, kxa = jax.random.split(key, 3)

    raw_params = init_params(k_params, N)
    prepared = prepare_params(raw_params)

    x = jax.random.normal(kx, (B, N, 1), jnp.float32)
    x_aug = jax.random.normal(kxa, (B, N, 1), jnp.float32)

    out = jax.block_until_ready(discriminator_mlp(x, x_aug, prepared))
    ref = reference_forward(x, x_aug, raw_params)

    assert out.shape == (B, 1), out.shape
    # Loose tolerance: kernel matmuls use bf16 inputs/weights (f32 accumulation),
    # reference is pure f32.
    max_err = float(jnp.max(jnp.abs(out - ref)))
    assert jnp.allclose(out, ref, atol=5e-2, rtol=5e-2), f"mismatch: {max_err}"

    print("KERNEL_OK")
</pallas_src>

<mosaic_0001>
module attributes {stable_mosaic.version = 11 : i64} {
  func.func @discriminator_mlp_kernel(%arg0: i32, %arg1: memref<512x256xf32, #tpu.memory_space<vmem>>, %arg2: memref<512x256xf32, #tpu.memory_space<vmem>>, %arg3: memref<256x256xbf16, #tpu.memory_space<vmem>>, %arg4: memref<256x256xbf16, #tpu.memory_space<vmem>>, %arg5: memref<256x128xbf16, #tpu.memory_space<vmem>>, %arg6: memref<128x64xbf16, #tpu.memory_space<vmem>>, %arg7: memref<8x256xf32, #tpu.memory_space<vmem>>, %arg8: memref<512x1xf32, #tpu.memory_space<vmem>>) attributes {dimension_semantics = [#tpu.dimension_semantics<parallel>], iteration_bounds = array<i64: 1>, scalar_prefetch = 0 : i64, scratch_operands = 0 : i64, tpu.core_type = #tpu.core_type<tc>, window_params = [{transform_indices = @transform_0, window_bounds = array<i64: 512, 256>}, {transform_indices = @transform_1, window_bounds = array<i64: 512, 256>}, {pipeline_mode = #tpu.pipeline_mode<synchronous>, transform_indices = @transform_2, window_bounds = array<i64: 256, 256>}, {pipeline_mode = #tpu.pipeline_mode<synchronous>, transform_indices = @transform_3, window_bounds = array<i64: 256, 256>}, {pipeline_mode = #tpu.pipeline_mode<synchronous>, transform_indices = @transform_4, window_bounds = array<i64: 256, 128>}, {pipeline_mode = #tpu.pipeline_mode<synchronous>, transform_indices = @transform_5, window_bounds = array<i64: 128, 64>}, {pipeline_mode = #tpu.pipeline_mode<synchronous>, transform_indices = @transform_6, window_bounds = array<i64: 8, 256>}, {transform_indices = @transform_7, window_bounds = array<i64: 512, 1>}]} {
    %c0 = arith.constant 0 : index
    %c0_0 = arith.constant 0 : index
    %0 = vector.load %arg7[%c0, %c0_0] : memref<8x256xf32, #tpu.memory_space<vmem>>, vector<1x256xf32>
    %c1 = arith.constant 1 : index
    %c0_1 = arith.constant 0 : index
    %1 = vector.load %arg7[%c1, %c0_1] : memref<8x256xf32, #tpu.memory_space<vmem>>, vector<1x128xf32>
    %c2 = arith.constant 2 : index
    %c0_2 = arith.constant 0 : index
    %2 = vector.load %arg7[%c2, %c0_2] : memref<8x256xf32, #tpu.memory_space<vmem>>, vector<1x64xf32>
    %c3 = arith.constant 3 : index
    %c0_3 = arith.constant 0 : index
    %3 = vector.load %arg7[%c3, %c0_3] : memref<8x256xf32, #tpu.memory_space<vmem>>, vector<1x64xf32>
    %c4 = arith.constant 4 : index
    %c0_4 = arith.constant 0 : index
    %4 = vector.load %arg7[%c4, %c0_4] : memref<8x256xf32, #tpu.memory_space<vmem>>, vector<1x1xf32>
    %c0_5 = arith.constant 0 : index
    %c0_6 = arith.constant 0 : index
    %5 = vector.load %arg1[%c0_5, %c0_6] : memref<512x256xf32, #tpu.memory_space<vmem>>, vector<512x256xf32>
    %6 = arith.truncf %5 : vector<512x256xf32> to vector<512x256xbf16>
    %c0_7 = arith.constant 0 : index
    %c0_8 = arith.constant 0 : index
    %7 = vector.load %arg2[%c0_7, %c0_8] : memref<512x256xf32, #tpu.memory_space<vmem>>, vector<512x256xf32>
    %8 = arith.truncf %7 : vector<512x256xf32> to vector<512x256xbf16>
    %c0_9 = arith.constant 0 : index
    %c0_10 = arith.constant 0 : index
    %9 = vector.load %arg3[%c0_9, %c0_10] : memref<256x256xbf16, #tpu.memory_space<vmem>>, vector<256x256xbf16>
    %cst = arith.constant dense<0.000000e+00> : vector<512x256xf32>
    %10 = tpu.matmul %6, %9, %cst {dimension_numbers = #tpu.dot_dimension_numbers<[1], [0], [0], [1], [0, 0, 1, 1], [], []>} : vector<512x256xbf16>, vector<256x256xbf16>, vector<512x256xf32> -> vector<512x256xf32>
    %c0_11 = arith.constant 0 : index
    %c0_12 = arith.constant 0 : index
    %11 = vector.load %arg4[%c0_11, %c0_12] : memref<256x256xbf16, #tpu.memory_space<vmem>>, vector<256x256xbf16>
    %cst_13 = arith.constant dense<0.000000e+00> : vector<512x256xf32>
    %12 = tpu.matmul %8, %11, %cst_13 {dimension_numbers = #tpu.dot_dimension_numbers<[1], [0], [0], [1], [0, 0, 1, 1], [], []>} : vector<512x256xbf16>, vector<256x256xbf16>, vector<512x256xf32> -> vector<512x256xf32>
    %13 = arith.addf %10, %12 : vector<512x256xf32>
    %14 = vector.broadcast %0 : vector<1x256xf32> to vector<512x256xf32>
    %15 = arith.addf %13, %14 : vector<512x256xf32>
    %cst_14 = arith.constant 0.000000e+00 : f32
    %16 = vector.broadcast %cst_14 : f32 to vector<512x256xf32>
    %17 = arith.cmpf ogt, %15, %16 : vector<512x256xf32>
    %18 = math.exp %15 : vector<512x256xf32>
    %cst_15 = arith.constant 1.000000e+00 : f32
    %19 = vector.broadcast %cst_15 : f32 to vector<512x256xf32>
    %20 = arith.subf %18, %19 : vector<512x256xf32>
    %21 = arith.select %17, %15, %20 : vector<512x256xi1>, vector<512x256xf32>
    %22 = arith.truncf %21 : vector<512x256xf32> to vector<512x256xbf16>
    %c0_16 = arith.constant 0 : index
    %c0_17 = arith.constant 0 : index
    %23 = vector.load %arg5[%c0_16, %c0_17] : memref<256x128xbf16, #tpu.memory_space<vmem>>, vector<256x128xbf16>
    %cst_18 = arith.constant dense<0.000000e+00> : vector<512x128xf32>
    %24 = tpu.matmul %22, %23, %cst_18 {dimension_numbers = #tpu.dot_dimension_numbers<[1], [0], [0], [1], [0, 0, 1, 1], [], []>} : vector<512x256xbf16>, vector<256x128xbf16>, vector<512x128xf32> -> vector<512x128xf32>
    %25 = vector.broadcast %1 : vector<1x128xf32> to vector<512x128xf32>
    %26 = arith.addf %24, %25 : vector<512x128xf32>
    %cst_19 = arith.constant 0.000000e+00 : f32
    %27 = vector.broadcast %cst_19 : f32 to vector<512x128xf32>
    %28 = arith.cmpf ogt, %26, %27 : vector<512x128xf32>
    %29 = math.exp %26 : vector<512x128xf32>
    %cst_20 = arith.constant 1.000000e+00 : f32
    %30 = vector.broadcast %cst_20 : f32 to vector<512x128xf32>
    %31 = arith.subf %29, %30 : vector<512x128xf32>
    %32 = arith.select %28, %26, %31 : vector<512x128xi1>, vector<512x128xf32>
    %33 = arith.truncf %32 : vector<512x128xf32> to vector<512x128xbf16>
    %c0_21 = arith.constant 0 : index
    %c0_22 = arith.constant 0 : index
    %34 = vector.load %arg6[%c0_21, %c0_22] : memref<128x64xbf16, #tpu.memory_space<vmem>>, vector<128x64xbf16>
    %cst_23 = arith.constant dense<0.000000e+00> : vector<512x64xf32>
    %35 = tpu.matmul %33, %34, %cst_23 {dimension_numbers = #tpu.dot_dimension_numbers<[1], [0], [0], [1], [0, 0, 1, 1], [], []>} : vector<512x128xbf16>, vector<128x64xbf16>, vector<512x64xf32> -> vector<512x64xf32>
    %36 = vector.broadcast %2 : vector<1x64xf32> to vector<512x64xf32>
    %37 = arith.addf %35, %36 : vector<512x64xf32>
    %cst_24 = arith.constant 0.000000e+00 : f32
    %38 = vector.broadcast %cst_24 : f32 to vector<512x64xf32>
    %39 = arith.cmpf ogt, %37, %38 : vector<512x64xf32>
    %40 = math.exp %37 : vector<512x64xf32>
    %cst_25 = arith.constant 1.000000e+00 : f32
    %41 = vector.broadcast %cst_25 : f32 to vector<512x64xf32>
    %42 = arith.subf %40, %41 : vector<512x64xf32>
    %43 = arith.select %39, %37, %42 : vector<512x64xi1>, vector<512x64xf32>
    %44 = vector.broadcast %3 : vector<1x64xf32> to vector<512x64xf32>
    %45 = arith.mulf %43, %44 : vector<512x64xf32>
    %cst_26 = arith.constant dense<0.000000e+00> : vector<512xf32>
    %46 = vector.multi_reduction <add>, %45, %cst_26 [1] : vector<512x64xf32> to vector<512xf32>
    %47 = vector.shape_cast %46 : vector<512xf32> to vector<512x1xf32>
    %48 = vector.broadcast %4 : vector<1x1xf32> to vector<512x1xf32>
    %49 = arith.addf %47, %48 : vector<512x1xf32>
    %c0_27 = arith.constant 0 : index
    %c0_28 = arith.constant 0 : index
    %50 = vector.load %arg8[%c0_27, %c0_28] : memref<512x1xf32, #tpu.memory_space<vmem>>, vector<512x1xf32>
    tpu.vector_store %arg8[%c0_27, %c0_28], %49 {strides = array<i32>} : memref<512x1xf32, #tpu.memory_space<vmem>>, vector<512x1xf32>,
    return
  }
  func.func @transform_0(%arg0: i32) -> (i32, i32) {
    %c0_i32 = arith.constant 0 : i32
    %c0_i32_0 = arith.constant 0 : i32
    return %arg0, %c0_i32 : i32, i32
  }
  func.func @transform_1(%arg0: i32) -> (i32, i32) {
    %c0_i32 = arith.constant 0 : i32
    %c0_i32_0 = arith.constant 0 : i32
    return %arg0, %c0_i32 : i32, i32
  }
  func.func @transform_2(%arg0: i32) -> (i32, i32) {
    %c0_i32 = arith.constant 0 : i32
    %c0_i32_0 = arith.constant 0 : i32
    %c0_i32_1 = arith.constant 0 : i32
    return %c0_i32, %c0_i32_0 : i32, i32
  }
  func.func @transform_3(%arg0: i32) -> (i32, i32) {
    %c0_i32 = arith.constant 0 : i32
    %c0_i32_0 = arith.constant 0 : i32
    %c0_i32_1 = arith.constant 0 : i32
    return %c0_i32, %c0_i32_0 : i32, i32
  }
  func.func @transform_4(%arg0: i32) -> (i32, i32) {
    %c0_i32 = arith.constant 0 : i32
    %c0_i32_0 = arith.constant 0 : i32
    %c0_i32_1 = arith.constant 0 : i32
    return %c0_i32, %c0_i32_0 : i32, i32
  }
  func.func @transform_5(%arg0: i32) -> (i32, i32) {
    %c0_i32 = arith.constant 0 : i32
    %c0_i32_0 = arith.constant 0 : i32
    %c0_i32_1 = arith.constant 0 : i32
    return %c0_i32, %c0_i32_0 : i32, i32
  }
  func.func @transform_6(%arg0: i32) -> (i32, i32) {
    %c0_i32 = arith.constant 0 : i32
    %c0_i32_0 = arith.constant 0 : i32
    %c0_i32_1 = arith.constant 0 : i32
    return %c0_i32, %c0_i32_0 : i32, i32
  }
  func.func @transform_7(%arg0: i32) -> (i32, i32) {
    %c0_i32 = arith.constant 0 : i32
    %c0_i32_0 = arith.constant 0 : i32
    return %arg0, %c0_i32 : i32, i32
  }
}

</mosaic_0001>

<llo_original>
// kernel: tpu_custom_call.1
$region0: #{tpu_custom_call.1}
  #allocation0 [shape = 'u32[]', space=smem, size = 0x4, offset = 0x4, fixed_abs, tag = 'smem constant byte address 0x4 - core index']
  #allocation1 [shape = 'u32[144,128]{1,0:T(1,128)}', space=vmem, size = 0x12000, scoped, tag = 'internal scratch']
  %s0 = inlined_call_operand.hbm [shape: f32[512,256], index: 0, kind: input, shape index: {}]
  %s1 = inlined_call_operand.hbm [shape: f32[512,256], index: 1, kind: input, shape index: {}]
  %s2 = inlined_call_operand.hbm [shape: bf16[256,256], index: 2, kind: input, shape index: {}]
  %s3 = inlined_call_operand.hbm [shape: bf16[256,256], index: 3, kind: input, shape index: {}]
  %s4 = inlined_call_operand.hbm [shape: bf16[256,128], index: 4, kind: input, shape index: {}]
  %s5 = inlined_call_operand.vmem [shape: bf16[128,64], index: 5, kind: input, shape index: {}]
  %s6 = inlined_call_operand.vmem [shape: f32[8,256], index: 6, kind: input, shape index: {}]
  %s7 = inlined_call_operand.vmem [shape: f32[512,1], index: 7, kind: output, shape index: {}]
  %s8 = sld [smem:[#allocation0]]
  $region58: #{tpu_custom_call.1} parent=0
    _
  %s10 = ssub.s32 1, %s8
  %s11 = scalar_select 0, %s10, %s8
  $region1: #{tpu_custom_call.1} parent=0
    #allocation2 [shape = 'u8[524288]{0}', space=vmem, size = 0x80000, scoped, tag = 'input window, operand 0, single buffered']
    #allocation3 [shape = 's32[1]{0}', space=sflag, size = 0x4, scoped, tag = 'scoped memory for tpu_custom_call.1']
    #allocation4 [shape = 'u8[524288]{0}', space=vmem, size = 0x80000, scoped, tag = 'input window, operand 1, single buffered']
    #allocation5 [shape = 's32[1]{0}', space=sflag, size = 0x4, scoped, tag = 'scoped memory for tpu_custom_call.1']
    #allocation6 [shape = 'u8[131072]{0}', space=vmem, size = 0x20000, scoped, tag = 'input window, operand 2, single buffered']
    #allocation7 [shape = 'u8[131072]{0}', space=vmem, size = 0x20000, scoped, tag = 'input window, operand 3, single buffered']
    #allocation8 [shape = 's32[1]{0}', space=sflag, size = 0x4, scoped, tag = 'scoped memory for tpu_custom_call.1']
    #allocation9 [shape = 'u8[65536]{0}', space=vmem, size = 0x10000, scoped, tag = 'input window, operand 4, single buffered']
    %12 = vsyncpa [#allocation3], 0
    %13 = vsyncpa [#allocation5], 0
    %14 = vsyncpa [#allocation8], 0
    // Predicated region
    $region2: #{tpu_custom_call.1} parent=1 // pred_check
      _
    $region3: #{tpu_custom_call.1} parent=1 // pred_check_branch
      %16 = sbr.rel (0) target = $region5
    $region4: #{tpu_custom_call.1} parent=1 // pred_region
      %s18 = ssub.s32 16384, 16384
      %19 = vsyncadd [#allocation3], %s18
      %s20 = sshll.u32 [#allocation2], 4
      %s21 = int_to_ptr.vmem [resolvable:$true] %s20
      %26 = dma.hbm_to_vmem [thread:$0]  %s0, 16384, %s21, [#allocation3], 256, 256, 16
    $region5: #{tpu_custom_call.1} parent=1 // pred_fallthru
      _
    // Predicated region
    $region6: #{tpu_custom_call.1} parent=1 // pred_check
      _
    $region7: #{tpu_custom_call.1} parent=1 // pred_check_branch
      %28 = sbr.rel (0) target = $region9
    $region8: #{tpu_custom_call.1} parent=1 // pred_region
      %s30 = ssub.s32 16384, 16384
      %31 = vsyncadd [#allocation5], %s30
      %s32 = sshll.u32 [#allocation4], 4
      %s33 = int_to_ptr.vmem [resolvable:$true] %s32
      %38 = dma.hbm_to_vmem [thread:$0]  %s1, 16384, %s33, [#allocation5], 256, 256, 16
    $region9: #{tpu_custom_call.1} parent=1 // pred_fallthru
      _
    // Predicated region
    $region10: #{tpu_custom_call.1} parent=1 // pred_check
      _
    $region11: #{tpu_custom_call.1} parent=1 // pred_check_branch
      %40 = sbr.rel (0) target = $region13
    $region12: #{tpu_custom_call.1} parent=1 // pred_region
      %s42 = ssub.s32 4096, 4096
      %43 = vsyncadd [#allocation5], %s42
      %s44 = sshll.u32 [#allocation6], 4
      %s45 = int_to_ptr.vmem [resolvable:$true] %s44
      %50 = dma.hbm_to_vmem [thread:$0]  %s2, 4096, %s45, [#allocation5], 128, 128, 8
    $region13: #{tpu_custom_call.1} parent=1 // pred_fallthru
      _
    // Predicated region
    $region14: #{tpu_custom_call.1} parent=1 // pred_check
      _
    $region15: #{tpu_custom_call.1} parent=1 // pred_check_branch
      %52 = sbr.rel (0) target = $region17
    $region16: #{tpu_custom_call.1} parent=1 // pred_region
      %s54 = ssub.s32 4096, 4096
      %55 = vsyncadd [#allocation8], %s54
      %s56 = sshll.u32 [#allocation7], 4
      %s57 = int_to_ptr.vmem [resolvable:$true] %s56
      %62 = dma.hbm_to_vmem [thread:$0]  %s3, 4096, %s57, [#allocation8], 128, 128, 8
    $region17: #{tpu_custom_call.1} parent=1 // pred_fallthru
      _
    // Predicated region
    $region18: #{tpu_custom_call.1} parent=1 // pred_check
      _
    $region19: #{tpu_custom_call.1} parent=1 // pred_check_branch
      %64 = sbr.rel (0) target = $region21
    $region20: #{tpu_custom_call.1} parent=1 // pred_region
      %s66 = ssub.s32 2048, 2048
      %67 = vsyncadd [#allocation8], %s66
      %s68 = sshll.u32 [#allocation9], 4
      %s69 = int_to_ptr.vmem [resolvable:$true] %s68
      %74 = dma.hbm_to_vmem [thread:$0]  %s4, 2048, %s69, [#allocation8], 64, 64, 4
    $region21: #{tpu_custom_call.1} parent=1 // pred_fallthru
      _
    // Predicated region
    $region22: #{tpu_custom_call.1} parent=1 // pred_check
      _
    $region23: #{tpu_custom_call.1} parent=1 // pred_check_branch
      %76 = sbr.rel (0) target = $region25
    $region24: #{tpu_custom_call.1} parent=1 // pred_region
      _
    $region25: #{tpu_custom_call.1} parent=1 // pred_fallthru
      _
    // Predicated region
    $region26: #{tpu_custom_call.1} parent=1 // pred_check
      _
    $region27: #{tpu_custom_call.1} parent=1 // pred_check_branch
      %78 = sbr.rel (0) target = $region29
    $region28: #{tpu_custom_call.1} parent=1 // pred_region
      _
    $region29: #{tpu_custom_call.1} parent=1 // pred_fallthru
      _
    // Predicated region
    $region30: #{tpu_custom_call.1} parent=1 // pred_check
      _
    $region31: #{tpu_custom_call.1} parent=1 // pred_check_branch
      %80 = sbr.rel (0) target = $region33
    $region32: #{tpu_custom_call.1} parent=1 // pred_region
      %81 = dma.done [#allocation3], 16384
    $region33: #{tpu_custom_call.1} parent=1 // pred_fallthru
      _
    // Predicated region
    $region34: #{tpu_custom_call.1} parent=1 // pred_check
      _
    $region35: #{tpu_custom_call.1} parent=1 // pred_check_branch
      %83 = sbr.rel (0) target = $region37
    $region36: #{tpu_custom_call.1} parent=1 // pred_region
      %84 = dma.done [#allocation5], 16384
    $region37: #{tpu_custom_call.1} parent=1 // pred_fallthru
      _
    // Predicated region
    $region38: #{tpu_custom_call.1} parent=1 // pred_check
      _
    $region39: #{tpu_custom_call.1} parent=1 // pred_check_branch
      %86 = sbr.rel (0) target = $region41
    $region40: #{tpu_custom_call.1} parent=1 // pred_region
      %87 = dma.done [#allocation5], 4096
    $region41: #{tpu_custom_call.1} parent=1 // pred_fallthru
      _
    // Predicated region
    $region42: #{tpu_custom_call.1} parent=1 // pred_check
      _
    $region43: #{tpu_custom_call.1} parent=1 // pred_check_branch
      %89 = sbr.rel (0) target = $region45
    $region44: #{tpu_custom_call.1} parent=1 // pred_region
      %90 = dma.done [#allocation8], 4096
    $region45: #{tpu_custom_call.1} parent=1 // pred_fallthru
      _
    // Predicated region
    $region46: #{tpu_custom_call.1} parent=1 // pred_check
      _
    $region47: #{tpu_custom_call.1} parent=1 // pred_check_branch
      %92 = sbr.rel (0) target = $region49
    $region48: #{tpu_custom_call.1} parent=1 // pred_region
      %93 = dma.done [#allocation8], 2048
    $region49: #{tpu_custom_call.1} parent=1 // pred_fallthru
      _
    %v95 = vld [vmem:[%s6] ss:$8 sm:$0x3]
    %v96 = vld [vmem:[%s6 + $0x1] ss:$0 sm:$0xff]
    %v97 = vld [vmem:[%s6 + $0x2] ss:$0 sm:$0xff]
    %v98 = vld [vmem:[%s6 + $0x3] ss:$0 sm:$0xff]
    %v99 = vld [vmem:[%s6 + $0x4] ss:$0 sm:$0xff]
    %v100 = vld [vmem:[#allocation2] sm:$0xff]
    %v101 = vld [vmem:[#allocation2 + $0x8] sm:$0xff]
    %v102 = vld [vmem:[#allocation2 + $0x10] sm:$0xff]
    %v103 = vld [vmem:[#allocation2 + $0x18] sm:$0xff]
    %v104 = vld [vmem:[#allocation2 + $0x20] sm:$0xff]
    %v105 = vld [vmem:[#allocation2 + $0x28] sm:$0xff]
    %v106 = vld [vmem:[#allocation2 + $0x30] sm:$0xff]
    %v107 = vld [vmem:[#allocation2 + $0x38] sm:$0xff]
    %v108 = vld [vmem:[#allocation2 + $0x40] sm:$0xff]
    %v109 = vld [vmem:[#allocation2 + $0x48] sm:$0xff]
    %v110 = vld [vmem:[#allocation2 + $0x50] sm:$0xff]
    %v111 = vld [vmem:[#allocation2 + $0x58] sm:$0xff]
    %v112 = vld [vmem:[#allocation2 + $0x60] sm:$0xff]
    %v113 = vld [vmem:[#allocation2 + $0x68] sm:$0xff]
    %v114 = vld [vmem:[#allocation2 + $0x70] sm:$0xff]
    %v115 = vld [vmem:[#allocation2 + $0x78] sm:$0xff]
    %v116 = vld [vmem:[#allocation2 + $0x80] sm:$0xff]
    %v117 = vld [vmem:[#allocation2 + $0x88] sm:$0xff]
    %v118 = vld [vmem:[#allocation2 + $0x90] sm:$0xff]
    %v119 = vld [vmem:[#allocation2 + $0x98] sm:$0xff]
    %v120 = vld [vmem:[#allocation2 + $0xa0] sm:$0xff]
    %v121 = vld [vmem:[#allocation2 + $0xa8] sm:$0xff]
    %v122 = vld [vmem:[#allocation2 + $0xb0] sm:$0xff]
    %v123 = vld [vmem:[#allocation2 + $0xb8] sm:$0xff]
    %v124 = vld [vmem:[#allocation2 + $0xc0] sm:$0xff]
    %v125 = vld [vmem:[#allocation2 + $0xc8] sm:$0xff]
    %v126 = vld [vmem:[#allocation2 + $0xd0] sm:$0xff]
    %v127 = vld [vmem:[#allocation2 + $0xd8] sm:$0xff]
    %v128 = vld [vmem:[#allocation2 + $0xe0] sm:$0xff]
    %v129 = vld [vmem:[#allocation2 + $0xe8] sm:$0xff]
    %v130 = vld [vmem:[#allocation2 + $0xf0] sm:$0xff]
    %v131 = vld [vmem:[#allocation2 + $0xf8] sm:$0xff]
    %v132 = vld [vmem:[#allocation2 + $0x100] sm:$0xff]
    %v133 = vld [vmem:[#allocation2 + $0x108] sm:$0xff]
    %v134 = vld [vmem:[#allocation2 + $0x110] sm:$0xff]
    %v135 = vld [vmem:[#allocation2 + $0x118] sm:$0xff]
    %v136 = vld [vmem:[#allocation2 + $0x120] sm:$0xff]
    %v137 = vld [vmem:[#allocation2 + $0x128] sm:$0xff]
    %v138 = vld [vmem:[#allocation2 + $0x130] sm:$0xff]
    %v139 = vld [vmem:[#allocation2 + $0x138] sm:$0xff]
    %v140 = vld [vmem:[#allocation2 + $0x140] sm:$0xff]
    %v141 = vld [vmem:[#allocation2 + $0x148] sm:$0xff]
    %v142 = vld [vmem:[#allocation2 + $0x150] sm:$0xff]
    %v143 = vld [vmem:[#allocation2 + $0x158] sm:$0xff]
    %v144 = vld [vmem:[#allocation2 + $0x160] sm:$0xff]
    %v145 = vld [vmem:[#allocation2 + $0x168] sm:$0xff]
    %v146 = vld [vmem:[#allocation2 + $0x170] sm:$0xff]
    %v147 = vld [vmem:[#allocation2 + $0x178] sm:$0xff]
    %v148 = vld [vmem:[#allocation2 + $0x180] sm:$0xff]
    %v149 = vld [vmem:[#allocation2 + $0x188] sm:$0xff]
    %v150 = vld [vmem:[#allocation2 + $0x190] sm:$0xff]
    %v151 = vld [vmem:[#allocation2 + $0x198] sm:$0xff]
    %v152 = vld [vmem:[#allocation2 + $0x1a0] sm:$0xff]
    %v153 = vld [vmem:[#allocation2 + $0x1a8] sm:$0xff]
    %v154 = vld [vmem:[#allocation2 + $0x1b0] sm:$0xff]
    %v155 = vld [vmem:[#allocation2 + $0x1b8] sm:$0xff]
    %v156 = vld [vmem:[#allocation2 + $0x1c0] sm:$0xff]
    %v157 = vld [vmem:[#allocation2 + $0x1c8] sm:$0xff]
    %v158 = vld [vmem:[#allocation2 + $0x1d0] sm:$0xff]
    %v159 = vld [vmem:[#allocation2 + $0x1d8] sm:$0xff]
    %v160 = vld [vmem:[#allocation2 + $0x1e0] sm:$0xff]
    %v161 = vld [vmem:[#allocation2 + $0x1e8] sm:$0xff]
    %v162 = vld [vmem:[#allocation2 + $0x1f0] sm:$0xff]
    %v163 = vld [vmem:[#allocation2 + $0x1f8] sm:$0xff]
    %v164 = vld [vmem:[#allocation2 + $0x200] sm:$0xff]
    %v165 = vld [vmem:[#allocation2 + $0x208] sm:$0xff]
    %v166 = vld [vmem:[#allocation2 + $0x210] sm:$0xff]
    %v167 = vld [vmem:[#allocation2 + $0x218] sm:$0xff]
    %v168 = vld [vmem:[#allocation2 + $0x220] sm:$0xff]
    %v169 = vld [vmem:[#allocation2 + $0x228] sm:$0xff]
    %v170 = vld [vmem:[#allocation2 + $0x230] sm:$0xff]
    %v171 = vld [vmem:[#allocation2 + $0x238] sm:$0xff]
    %v172 = vld [vmem:[#allocation2 + $0x240] sm:$0xff]
    %v173 = vld [vmem:[#allocation2 + $0x248] sm:$0xff]
    %v174 = vld [vmem:[#allocation2 + $0x250] sm:$0xff]
    %v175 = vld [vmem:[#allocation2 + $0x258] sm:$0xff]
    %v176 = vld [vmem:[#allocation2 + $0x260] sm:$0xff]
    %v177 = vld [vmem:[#allocation2 + $0x268] sm:$0xff]
    %v178 = vld [vmem:[#allocation2 + $0x270] sm:$0xff]
    %v179 = vld [vmem:[#allocation2 + $0x278] sm:$0xff]
    %v180 = vld [vmem:[#allocation2 + $0x280] sm:$0xff]
    %v181 = vld [vmem:[#allocation2 + $0x288] sm:$0xff]
    %v182 = vld [vmem:[#allocation2 + $0x290] sm:$0xff]
    %v183 = vld [vmem:[#allocation2 + $0x298] sm:$0xff]
    %v184 = vld [vmem:[#allocation2 + $0x2a0] sm:$0xff]
    %v185 = vld [vmem:[#allocation2 + $0x2a8] sm:$0xff]
    %v186 = vld [vmem:[#allocation2 + $0x2b0] sm:$0xff]
    %v187 = vld [vmem:[#allocation2 + $0x2b8] sm:$0xff]
    %v188 = vld [vmem:[#allocation2 + $0x2c0] sm:$0xff]
    %v189 = vld [vmem:[#allocation2 + $0x2c8] sm:$0xff]
    %v190 = vld [vmem:[#allocation2 + $0x2d0] sm:$0xff]
    %v191 = vld [vmem:[#allocation2 + $0x2d8] sm:$0xff]
    %v192 = vld [vmem:[#allocation2 + $0x2e0] sm:$0xff]
    %v193 = vld [vmem:[#allocation2 + $0x2e8] sm:$0xff]
    %v194 = vld [vmem:[#allocation2 + $0x2f0] sm:$0xff]
    %v195 = vld [vmem:[#allocation2 + $0x2f8] sm:$0xff]
    %v196 = vld [vmem:[#allocation2 + $0x300] sm:$0xff]
    %v197 = vld [vmem:[#allocation2 + $0x308] sm:$0xff]
    %v198 = vld [vmem:[#allocation2 + $0x310] sm:$0xff]
    %v199 = vld [vmem:[#allocation2 + $0x318] sm:$0xff]
    %v200 = vld [vmem:[#allocation2 + $0x320] sm:$0xff]
    %v201 = vld [vmem:[#allocation2 + $0x328] sm:$0xff]
    %v202 = vld [vmem:[#allocation2 + $0x330] sm:$0xff]
    %v203 = vld [vmem:[#allocation2 + $0x338] sm:$0xff]
    %v204 = vld [vmem:[#allocation2 + $0x340] sm:$0xff]
    %v205 = vld [vmem:[#allocation2 + $0x348] sm:$0xff]
    %v206 = vld [vmem:[#allocation2 + $0x350] sm:$0xff]
    %v207 = vld [vmem:[#allocation2 + $0x358] sm:$0xff]
    %v208 = vld [vmem:[#allocation2 + $0x360] sm:$0xff]
    %v209 = vld [vmem:[#allocation2 + $0x368] sm:$0xff]
    %v210 = vld [vmem:[#allocation2 + $0x370] sm:$0xff]
    %v211 = vld [vmem:[#allocation2 + $0x378] sm:$0xff]
    %v212 = vld [vmem:[#allocation2 + $0x380] sm:$0xff]
    %v213 = vld [vmem:[#allocation2 + $0x388] sm:$0xff]
    %v214 = vld [vmem:[#allocation2 + $0x390] sm:$0xff]
    %v215 = vld [vmem:[#allocation2 + $0x398] sm:$0xff]
    %v216 = vld [vmem:[#allocation2 + $0x3a0] sm:$0xff]
    %v217 = vld [vmem:[#allocation2 + $0x3a8] sm:$0xff]
    %v218 = vld [vmem:[#allocation2 + $0x3b0] sm:$0xff]
    %v219 = vld [vmem:[#allocation2 + $0x3b8] sm:$0xff]
    %v220 = vld [vmem:[#allocation2 + $0x3c0] sm:$0xff]
    %v221 = vld [vmem:[#allocation2 + $0x3c8] sm:$0xff]
    %v222 = vld [vmem:[#allocation2 + $0x3d0] sm:$0xff]
    %v223 = vld [vmem:[#allocation2 + $0x3d8] sm:$0xff]
    %v224 = vld [vmem:[#allocation2 + $0x3e0] sm:$0xff]
    %v225 = vld [vmem:[#allocation2 + $0x3e8] sm:$0xff]
    %v226 = vld [vmem:[#allocation2 + $0x3f0] sm:$0xff]
    %v227 = vld [vmem:[#allocation2 + $0x3f8] sm:$0xff]
    %v228 = vpack.c.bf16 %v102, %v100
    %v229 = vpack.c.bf16 %v103, %v101
    %v230 = vpack.c.bf16 %v106, %v104
    %v231 = vpack.c.bf16 %v107, %v105
    %v232 = vpack.c.bf16 %v110, %v108
    %v233 = vpack.c.bf16 %v111, %v109
    %v234 = vpack.c.bf16 %v114, %v112
    %v235 = vpack.c.bf16 %v115, %v113
    %v236 = vpack.c.bf16 %v118, %v116
    %v237 = vpack.c.bf16 %v119, %v117
    %v238 = vpack.c.bf16 %v122, %v120
    %v239 = vpack.c.bf16 %v123, %v121
    %v240 = vpack.c.bf16 %v126, %v124
    %v241 = vpack.c.bf16 %v127, %v125
    %v242 = vpack.c.bf16 %v130, %v128
    %v243 = vpack.c.bf16 %v131, %v129
    %v244 = vpack.c.bf16 %v134, %v132
    %v245 = vpack.c.bf16 %v135, %v133
    %v246 = vpack.c.bf16 %v138, %v136
    %v247 = vpack.c.bf16 %v139, %v137
    %v248 = vpack.c.bf16 %v142, %v140
    %v249 = vpack.c.bf16 %v143, %v141
    %v250 = vpack.c.bf16 %v146, %v144
    %v251 = vpack.c.bf16 %v147, %v145
    %v252 = vpack.c.bf16 %v150, %v148
    %v253 = vpack.c.bf16 %v151, %v149
    %v254 = vpack.c.bf16 %v154, %v152
    %v255 = vpack.c.bf16 %v155, %v153
    %v256 = vpack.c.bf16 %v158, %v156
    %v257 = vpack.c.bf16 %v159, %v157
    %v258 = vpack.c.bf16 %v162, %v160
    %v259 = vpack.c.bf16 %v163, %v161
    %v260 = vpack.c.bf16 %v166, %v164
    %v261 = vpack.c.bf16 %v167, %v165
    %v262 = vpack.c.bf16 %v170, %v168
    %v263 = vpack.c.bf16 %v171, %v169
    %v264 = vpack.c.bf16 %v174, %v172
    %v265 = vpack.c.bf16 %v175, %v173
    %v266 = vpack.c.bf16 %v178, %v176
    %v267 = vpack.c.bf16 %v179, %v177
    %v268 = vpack.c.bf16 %v182, %v180
    %v269 = vpack.c.bf16 %v183, %v181
    %v270 = vpack.c.bf16 %v186, %v184
    %v271 = vpack.c.bf16 %v187, %v185
    %v272 = vpack.c.bf16 %v190, %v188
    %v273 = vpack.c.bf16 %v191, %v189
    %v274 = vpack.c.bf16 %v194, %v192
    %v275 = vpack.c.bf16 %v195, %v193
    %v276 = vpack.c.bf16 %v198, %v196
    %v277 = vpack.c.bf16 %v199, %v197
    %v278 = vpack.c.bf16 %v202, %v200
    %v279 = vpack.c.bf16 %v203, %v201
    %v280 = vpack.c.bf16 %v206, %v204
    %v281 = vpack.c.bf16 %v207, %v205
    %v282 = vpack.c.bf16 %v210, %v208
    %v283 = vpack.c.bf16 %v211, %v209
    %v284 = vpack.c.bf16 %v214, %v212
    %v285 = vpack.c.bf16 %v215, %v213
    %v286 = vpack.c.bf16 %v218, %v216
    %v287 = vpack.c.bf16 %v219, %v217
    %v288 = vpack.c.bf16 %v222, %v220
    %v289 = vpack.c.bf16 %v223, %v221
    %v290 = vpack.c.bf16 %v226, %v224
    %v291 = vpack.c.bf16 %v227, %v225
    %v292 = vld [vmem:[#allocation4] sm:$0xff]
    %v293 = vld [vmem:[#allocation4 + $0x8] sm:$0xff]
    %v294 = vld [vmem:[#allocation4 + $0x10] sm:$0xff]
    %v295 = vld [vmem:[#allocation4 + $0x18] sm:$0xff]
    %v296 = vld [vmem:[#allocation4 + $0x20] sm:$0xff]
    %v297 = vld [vmem:[#allocation4 + $0x28] sm:$0xff]
    %v298 = vld [vmem:[#allocation4 + $0x30] sm:$0xff]
    %v299 = vld [vmem:[#allocation4 + $0x38] sm:$0xff]
    %v300 = vld [vmem:[#allocation4 + $0x40] sm:$0xff]
    %v301 = vld [vmem:[#allocation4 + $0x48] sm:$0xff]
    %v302 = vld [vmem:[#allocation4 + $0x50] sm:$0xff]
    %v303 = vld [vmem:[#allocation4 + $0x58] sm:$0xff]
    %v304 = vld [vmem:[#allocation4 + $0x60] sm:$0xff]
    %v305 = vld [vmem:[#allocation4 + $0x68] sm:$0xff]
    %v306 = vld [vmem:[#allocation4 + $0x70] sm:$0xff]
    %v307 = vld [vmem:[#allocation4 + $0x78] sm:$0xff]
    %v308 = vld [vmem:[#allocation4 + $0x80] sm:$0xff]
    %v309 = vld [vmem:[#allocation4 + $0x88] sm:$0xff]
    %v310 = vld [vmem:[#allocation4 + $0x90] sm:$0xff]
    %v311 = vld [vmem:[#allocation4 + $0x98] sm:$0xff]
    %v312 = vld [vmem:[#allocation4 + $0xa0] sm:$0xff]
    %v313 = vld [vmem:[#allocation4 + $0xa8] sm:$0xff]
    %v314 = vld [vmem:[#allocation4 + $0xb0] sm:$0xff]
    %v315 = vld [vmem:[#allocation4 + $0xb8] sm:$0xff]
    %v316 = vld [vmem:[#allocation4 + $0xc0] sm:$0xff]
    %v317 = vld [vmem:[#allocation4 + $0xc8] sm:$0xff]
    %v318 = vld [vmem:[#allocation4 + $0xd0] sm:$0xff]
    %v319 = vld [vmem:[#allocation4 + $0xd8] sm:$0xff]
    %v320 = vld [vmem:[#allocation4 + $0xe0] sm:$0xff]
    %v321 = vld [vmem:[#allocation4 + $0xe8] sm:$0xff]
    %v322 = vld [vmem:[#allocation4 + $0xf0] sm:$0xff]
    %v323 = vld [vmem:[#allocation4 + $0xf8] sm:$0xff]
    %v324 = vld [vmem:[#allocation4 + $0x100] sm:$0xff]
    %v325 = vld [vmem:[#allocation4 + $0x108] sm:$0xff]
    %v326 = vld [vmem:[#allocation4 + $0x110] sm:$0xff]
    %v327 = vld [vmem:[#allocation4 + $0x118] sm:$0xff]
    %v328 = vld [vmem:[#allocation4 + $0x120] sm:$0xff]
    %v329 = vld [vmem:[#allocation4 + $0x128] sm:$0xff]
    %v330 = vld [vmem:[#allocation4 + $0x130] sm:$0xff]
    %v331 = vld [vmem:[#allocation4 + $0x138] sm:$0xff]
    %v332 = vld [vmem:[#allocation4 + $0x140] sm:$0xff]
    %v333 = vld [vmem:[#allocation4 + $0x148] sm:$0xff]
    %v334 = vld [vmem:[#allocation4 + $0x150] sm:$0xff]
    %v335 = vld [vmem:[#allocation4 + $0x158] sm:$0xff]
    %v336 = vld [vmem:[#allocation4 + $0x160] sm:$0xff]
    %v337 = vld [vmem:[#allocation4 + $0x168] sm:$0xff]
    %v338 = vld [vmem:[#allocation4 + $0x170] sm:$0xff]
    %v339 = vld [vmem:[#allocation4 + $0x178] sm:$0xff]
    %v340 = vld [vmem:[#allocation4 + $0x180] sm:$0xff]
    %v341 = vld [vmem:[#allocation4 + $0x188] sm:$0xff]
    %v342 = vld [vmem:[#allocation4 + $0x190] sm:$0xff]
    %v343 = vld [vmem:[#allocation4 + $0x198] sm:$0xff]
    %v344 = vld [vmem:[#allocation4 + $0x1a0] sm:$0xff]
    %v345 = vld [vmem:[#allocation4 + $0x1a8] sm:$0xff]
    %v346 = vld [vmem:[#allocation4 + $0x1b0] sm:$0xff]
    %v347 = vld [vmem:[#allocation4 + $0x1b8] sm:$0xff]
    %v348 = vld [vmem:[#allocation4 + $0x1c0] sm:$0xff]
    %v349 = vld [vmem:[#allocation4 + $0x1c8] sm:$0xff]
    %v350 = vld [vmem:[#allocation4 + $0x1d0] sm:$0xff]
    %v351 = vld [vmem:[#allocation4 + $0x1d8] sm:$0xff]
    %v352 = vld [vmem:[#allocation4 + $0x1e0] sm:$0xff]
    %v353 = vld [vmem:[#allocation4 + $0x1e8] sm:$0xff]
    %v354 = vld [vmem:[#allocation4 + $0x1f0] sm:$0xff]
    %v355 = vld [vmem:[#allocation4 + $0x1f8] sm:$0xff]
    %v356 = vld [vmem:[#allocation4 + $0x200] sm:$0xff]
    %v357 = vld [vmem:[#allocation4 + $0x208] sm:$0xff]
    %v358 = vld [vmem:[#allocation4 + $0x210] sm:$0xff]
    %v359 = vld [vmem:[#allocation4 + $0x218] sm:$0xff]
    %v360 = vld [vmem:[#allocation4 + $0x220] sm:$0xff]
    %v361 = vld [vmem:[#allocation4 + $0x228] sm:$0xff]
    %v362 = vld [vmem:[#allocation4 + $0x230] sm:$0xff]
    %v363 = vld [vmem:[#allocation4 + $0x238] sm:$0xff]
    %v364 = vld [vmem:[#allocation4 + $0x240] sm:$0xff]
    %v365 = vld [vmem:[#allocation4 + $0x248] sm:$0xff]
    %v366 = vld [vmem:[#allocation4 + $0x250] sm:$0xff]
    %v367 = vld [vmem:[#allocation4 + $0x258] sm:$0xff]
    %v368 = vld [vmem:[#allocation4 + $0x260] sm:$0xff]
    %v369 = vld [vmem:[#allocation4 + $0x268] sm:$0xff]
    %v370 = vld [vmem:[#allocation4 + $0x270] sm:$0xff]
    %v371 = vld [vmem:[#allocation4 + $0x278] sm:$0xff]
    %v372 = vld [vmem:[#allocation4 + $0x280] sm:$0xff]
    %v373 = vld [vmem:[#allocation4 + $0x288] sm:$0xff]
    %v374 = vld [vmem:[#allocation4 + $0x290] sm:$0xff]
    %v375 = vld [vmem:[#allocation4 + $0x298] sm:$0xff]
    %v376 = vld [vmem:[#allocation4 + $0x2a0] sm:$0xff]
    %v377 = vld [vmem:[#allocation4 + $0x2a8] sm:$0xff]
    %v378 = vld [vmem:[#allocation4 + $0x2b0] sm:$0xff]
    %v379 = vld [vmem:[#allocation4 + $0x2b8] sm:$0xff]
    %v380 = vld [vmem:[#allocation4 + $0x2c0] sm:$0xff]
    %v381 = vld [vmem:[#allocation4 + $0x2c8] sm:$0xff]
    %v382 = vld [vmem:[#allocation4 + $0x2d0] sm:$0xff]
    %v383 = vld [vmem:[#allocation4 + $0x2d8] sm:$0xff]
    %v384 = vld [vmem:[#allocation4 + $0x2e0] sm:$0xff]
    %v385 = vld [vmem:[#allocation4 + $0x2e8] sm:$0xff]
    %v386 = vld [vmem:[#allocation4 + $0x2f0] sm:$0xff]
    %v387 = vld [vmem:[#allocation4 + $0x2f8] sm:$0xff]
    %v388 = vld [vmem:[#allocation4 + $0x300] sm:$0xff]
    %v389 = vld [vmem:[#allocation4 + $0x308] sm:$0xff]
    %v390 = vld [vmem:[#allocation4 + $0x310] sm:$0xff]
    %v391 = vld [vmem:[#allocation4 + $0x318] sm:$0xff]
    %v392 = vld [vmem:[#allocation4 + $0x320] sm:$0xff]
    %v393 = vld [vmem:[#allocation4 + $0x328] sm:$0xff]
    %v394 = vld [vmem:[#allocation4 + $0x330] sm:$0xff]
    %v395 = vld [vmem:[#allocation4 + $0x338] sm:$0xff]
    %v396 = vld [vmem:[#allocation4 + $0x340] sm:$0xff]
    %v397 = vld [vmem:[#allocation4 + $0x348] sm:$0xff]
    %v398 = vld [vmem:[#allocation4 + $0x350] sm:$0xff]
    %v399 = vld [vmem:[#allocation4 + $0x358] sm:$0xff]
    %v400 = vld [vmem:[#allocation4 + $0x360] sm:$0xff]
    %v401 = vld [vmem:[#allocation4 + $0x368] sm:$0xff]
    %v402 = vld [vmem:[#allocation4 + $0x370] sm:$0xff]
    %v403 = vld [vmem:[#allocation4 + $0x378] sm:$0xff]
    %v404 = vld [vmem:[#allocation4 + $0x380] sm:$0xff]
    %v405 = vld [vmem:[#allocation4 + $0x388] sm:$0xff]
    %v406 = vld [vmem:[#allocation4 + $0x390] sm:$0xff]
    %v407 = vld [vmem:[#allocation4 + $0x398] sm:$0xff]
    %v408 = vld [vmem:[#allocation4 + $0x3a0] sm:$0xff]
    %v409 = vld [vmem:[#allocation4 + $0x3a8] sm:$0xff]
    %v410 = vld [vmem:[#allocation4 + $0x3b0] sm:$0xff]
    %v411 = vld [vmem:[#allocation4 + $0x3b8] sm:$0xff]
    %v412 = vld [vmem:[#allocation4 + $0x3c0] sm:$0xff]
    %v413 = vld [vmem:[#allocation4 + $0x3c8] sm:$0xff]
    %v414 = vld [vmem:[#allocation4 + $0x3d0] sm:$0xff]
    %v415 = vld [vmem:[#allocation4 + $0x3d8] sm:$0xff]
    %v416 = vld [vmem:[#allocation4 + $0x3e0] sm:$0xff]
    %v417 = vld [vmem:[#allocation4 + $0x3e8] sm:$0xff]
    %v418 = vld [vmem:[#allocation4 + $0x3f0] sm:$0xff]
    %v419 = vld [vmem:[#allocation4 + $0x3f8] sm:$0xff]
    %v420 = vpack.c.bf16 %v294, %v292
    %v421 = vpack.c.bf16 %v295, %v293
    %v422 = vpack.c.bf16 %v298, %v296
    %v423 = vpack.c.bf16 %v299, %v297
    %v424 = vpack.c.bf16 %v302, %v300
    %v425 = vpack.c.bf16 %v303, %v301
    %v426 = vpack.c.bf16 %v306, %v304
    %v427 = vpack.c.bf16 %v307, %v305
    %v428 = vpack.c.bf16 %v310, %v308
    %v429 = vpack.c.bf16 %v311, %v309
    %v430 = vpack.c.bf16 %v314, %v312
    %v431 = vpack.c.bf16 %v315, %v313
    %v432 = vpack.c.bf16 %v318, %v316
    %v433 = vpack.c.bf16 %v319, %v317
    %v434 = vpack.c.bf16 %v322, %v320
    %v435 = vpack.c.bf16 %v323, %v321
    %v436 = vpack.c.bf16 %v326, %v324
    %v437 = vpack.c.bf16 %v327, %v325
    %v438 = vpack.c.bf16 %v330, %v328
    %v439 = vpack.c.bf16 %v331, %v329
    %v440 = vpack.c.bf16 %v334, %v332
    %v441 = vpack.c.bf16 %v335, %v333
    %v442 = vpack.c.bf16 %v338, %v336
    %v443 = vpack.c.bf16 %v339, %v337
    %v444 = vpack.c.bf16 %v342, %v340
    %v445 = vpack.c.bf16 %v343, %v341
    %v446 = vpack.c.bf16 %v346, %v344
    %v447 = vpack.c.bf16 %v347, %v345
    %v448 = vpack.c.bf16 %v350, %v348
    %v449 = vpack.c.bf16 %v351, %v349
    %v450 = vpack.c.bf16 %v354, %v352
    %v451 = vpack.c.bf16 %v355, %v353
    %v452 = vpack.c.bf16 %v358, %v356
    %v453 = vpack.c.bf16 %v359, %v357
    %v454 = vpack.c.bf16 %v362, %v360
    %v455 = vpack.c.bf16 %v363, %v361
    %v456 = vpack.c.bf16 %v366, %v364
    %v457 = vpack.c.bf16 %v367, %v365
    %v458 = vpack.c.bf16 %v370, %v368
    %v459 = vpack.c.bf16 %v371, %v369
    %v460 = vpack.c.bf16 %v374, %v372
    %v461 = vpack.c.bf16 %v375, %v373
    %v462 = vpack.c.bf16 %v378, %v376
    %v463 = vpack.c.bf16 %v379, %v377
    %v464 = vpack.c.bf16 %v382, %v380
    %v465 = vpack.c.bf16 %v383, %v381
    %v466 = vpack.c.bf16 %v386, %v384
    %v467 = vpack.c.bf16 %v387, %v385
    %v468 = vpack.c.bf16 %v390, %v388
    %v469 = vpack.c.bf16 %v391, %v389
    %v470 = vpack.c.bf16 %v394, %v392
    %v471 = vpack.c.bf16 %v395, %v393
    %v472 = vpack.c.bf16 %v398, %v396
    %v473 = vpack.c.bf16 %v399, %v397
    %v474 = vpack.c.bf16 %v402, %v400
    %v475 = vpack.c.bf16 %v403, %v401
    %v476 = vpack.c.bf16 %v406, %v404
    %v477 = vpack.c.bf16 %v407, %v405
    %v478 = vpack.c.bf16 %v410, %v408
    %v479 = vpack.c.bf16 %v411, %v409
    %v480 = vpack.c.bf16 %v414, %v412
    %v481 = vpack.c.bf16 %v415, %v413
    %v482 = vpack.c.bf16 %v418, %v416
    %v483 = vpack.c.bf16 %v419, %v417
    %v484 = vld [vmem:[#allocation6] sm:$0xff]
    %v485 = vld [vmem:[#allocation6 + $0x8] sm:$0xff]
    %v486 = vld [vmem:[#allocation6 + $0x10] sm:$0xff]
    %v487 = vld [vmem:[#allocation6 + $0x18] sm:$0xff]
    %v488 = vld [vmem:[#allocation6 + $0x20] sm:$0xff]
    %v489 = vld [vmem:[#allocation6 + $0x28] sm:$0xff]
    %v490 = vld [vmem:[#allocation6 + $0x30] sm:$0xff]
    %v491 = vld [vmem:[#allocation6 + $0x38] sm:$0xff]
    %v492 = vld [vmem:[#allocation6 + $0x40] sm:$0xff]
    %v493 = vld [vmem:[#allocation6 + $0x48] sm:$0xff]
    %v494 = vld [vmem:[#allocation6 + $0x50] sm:$0xff]
    %v495 = vld [vmem:[#allocation6 + $0x58] sm:$0xff]
    %v496 = vld [vmem:[#allocation6 + $0x60] sm:$0xff]
    %v497 = vld [vmem:[#allocation6 + $0x68] sm:$0xff]
    %v498 = vld [vmem:[#allocation6 + $0x70] sm:$0xff]
    %v499 = vld [vmem:[#allocation6 + $0x78] sm:$0xff]
    %v500 = vld [vmem:[#allocation6 + $0x80] sm:$0xff]
    %v501 = vld [vmem:[#allocation6 + $0x88] sm:$0xff]
    %v502 = vld [vmem:[#allocation6 + $0x90] sm:$0xff]
    %v503 = vld [vmem:[#allocation6 + $0x98] sm:$0xff]
    %v504 = vld [vmem:[#allocation6 + $0xa0] sm:$0xff]
    %v505 = vld [vmem:[#allocation6 + $0xa8] sm:$0xff]
    %v506 = vld [vmem:[#allocation6 + $0xb0] sm:$0xff]
    %v507 = vld [vmem:[#allocation6 + $0xb8] sm:$0xff]
    %v508 = vld [vmem:[#allocation6 + $0xc0] sm:$0xff]
    %v509 = vld [vmem:[#allocation6 + $0xc8] sm:$0xff]
    %v510 = vld [vmem:[#allocation6 + $0xd0] sm:$0xff]
    %v511 = vld [vmem:[#allocation6 + $0xd8] sm:$0xff]
    %v512 = vld [vmem:[#allocation6 + $0xe0] sm:$0xff]
    %v513 = vld [vmem:[#allocation6 + $0xe8] sm:$0xff]
    %v514 = vld [vmem:[#allocation6 + $0xf0] sm:$0xff]
    %v515 = vld [vmem:[#allocation6 + $0xf8] sm:$0xff]
    %v516 = vld [vmem:[#allocation7] sm:$0xff]
    %v517 = vld [vmem:[#allocation7 + $0x8] sm:$0xff]
    %v518 = vld [vmem:[#allocation7 + $0x10] sm:$0xff]
    %v519 = vld [vmem:[#allocation7 + $0x18] sm:$0xff]
    %v520 = vld [vmem:[#allocation7 + $0x20] sm:$0xff]
    %v521 = vld [vmem:[#allocation7 + $0x28] sm:$0xff]
    %v522 = vld [vmem:[#allocation7 + $0x30] sm:$0xff]
    %v523 = vld [vmem:[#allocation7 + $0x38] sm:$0xff]
    %v524 = vld [vmem:[#allocation7 + $0x40] sm:$0xff]
    %v525 = vld [vmem:[#allocation7 + $0x48] sm:$0xff]
    %v526 = vld [vmem:[#allocation7 + $0x50] sm:$0xff]
    %v527 = vld [vmem:[#allocation7 + $0x58] sm:$0xff]
    %v528 = vld [vmem:[#allocation7 + $0x60] sm:$0xff]
    %v529 = vld [vmem:[#allocation7 + $0x68] sm:$0xff]
    %v530 = vld [vmem:[#allocation7 + $0x70] sm:$0xff]
    %v531 = vld [vmem:[#allocation7 + $0x78] sm:$0xff]
    %v532 = vld [vmem:[#allocation7 + $0x80] sm:$0xff]
    %v533 = vld [vmem:[#allocation7 + $0x88] sm:$0xff]
    %v534 = vld [vmem:[#allocation7 + $0x90] sm:$0xff]
    %v535 = vld [vmem:[#allocation7 + $0x98] sm:$0xff]
    %v536 = vld [vmem:[#allocation7 + $0xa0] sm:$0xff]
    %v537 = vld [vmem:[#allocation7 + $0xa8] sm:$0xff]
    %v538 = vld [vmem:[#allocation7 + $0xb0] sm:$0xff]
    %v539 = vld [vmem:[#allocation7 + $0xb8] sm:$0xff]
    %v540 = vld [vmem:[#allocation7 + $0xc0] sm:$0xff]
    %v541 = vld [vmem:[#allocation7 + $0xc8] sm:$0xff]
    %v542 = vld [vmem:[#allocation7 + $0xd0] sm:$0xff]
    %v543 = vld [vmem:[#allocation7 + $0xd8] sm:$0xff]
    %v544 = vld [vmem:[#allocation7 + $0xe0] sm:$0xff]
    %v545 = vld [vmem:[#allocation7 + $0xe8] sm:$0xff]
    %v546 = vld [vmem:[#allocation7 + $0xf0] sm:$0xff]
    %v547 = vld [vmem:[#allocation7 + $0xf8] sm:$0xff]
    %v580 = vunpack.c.l.b16 %v516
    %v581 = vunpack.c.h.b16 %v516
    %v582 = vunpack.c.l.b16 %v517
    %v583 = vunpack.c.h.b16 %v517
    %v584 = vunpack.c.l.b16 %v518
    %v585 = vunpack.c.h.b16 %v518
    %v586 = vunpack.c.l.b16 %v519
    %v587 = vunpack.c.h.b16 %v519
    %v588 = vunpack.c.l.b16 %v520
    %v589 = vunpack.c.h.b16 %v520
    %v590 = vunpack.c.l.b16 %v521
    %v591 = vunpack.c.h.b16 %v521
    %v592 = vunpack.c.l.b16 %v522
    %v593 = vunpack.c.h.b16 %v522
    %v594 = vunpack.c.l.b16 %v523
    %v595 = vunpack.c.h.b16 %v523
    %v596 = vunpack.c.l.b16 %v524
    %v597 = vunpack.c.h.b16 %v524
    %v598 = vunpack.c.l.b16 %v525
    %v599 = vunpack.c.h.b16 %v525
    %v600 = vunpack.c.l.b16 %v526
    %v601 = vunpack.c.h.b16 %v526
    %v602 = vunpack.c.l.b16 %v527
    %v603 = vunpack.c.h.b16 %v527
    %v604 = vunpack.c.l.b16 %v528
    %v605 = vunpack.c.h.b16 %v528
    %v606 = vunpack.c.l.b16 %v529
    %v607 = vunpack.c.h.b16 %v529
    %v608 = vunpack.c.l.b16 %v530
    %v609 = vunpack.c.h.b16 %v530
    %v610 = vunpack.c.l.b16 %v531
    %v611 = vunpack.c.h.b16 %v531
    %v612 = vunpack.c.l.b16 %v532
    %v613 = vunpack.c.h.b16 %v532
    %v614 = vunpack.c.l.b16 %v533
    %v615 = vunpack.c.h.b16 %v533
    %v616 = vunpack.c.l.b16 %v534
    %v617 = vunpack.c.h.b16 %v534
    %v618 = vunpack.c.l.b16 %v535
    %v619 = vunpack.c.h.b16 %v535
    %v620 = vunpack.c.l.b16 %v536
    %v621 = vunpack.c.h.b16 %v536
    %v622 = vunpack.c.l.b16 %v537
    %v623 = vunpack.c.h.b16 %v537
    %v624 = vunpack.c.l.b16 %v538
    %v625 = vunpack.c.h.b16 %v538
    %v626 = vunpack.c.l.b16 %v539
    %v627 = vunpack.c.h.b16 %v539
    %v628 = vunpack.c.l.b16 %v540
    %v629 = vunpack.c.h.b16 %v540
    %v630 = vunpack.c.l.b16 %v541
    %v631 = vunpack.c.h.b16 %v541
    %v632 = vunpack.c.l.b16 %v542
    %v633 = vunpack.c.h.b16 %v542
    %v634 = vunpack.c.l.b16 %v543
    %v635 = vunpack.c.h.b16 %v543
    %v636 = vunpack.c.l.b16 %v544
    %v637 = vunpack.c.h.b16 %v544
    %v638 = vunpack.c.l.b16 %v545
    %v639 = vunpack.c.h.b16 %v545
    %v640 = vunpack.c.l.b16 %v546
    %v641 = vunpack.c.h.b16 %v546
    %v642 = vunpack.c.l.b16 %v547
    %v643 = vunpack.c.h.b16 %v547
    %v644 = vpack.c.b16 %v582, %v580
    %v645 = vpack.c.b16 %v583, %v581
    %v646 = vpack.c.b16 %v586, %v584
    %v647 = vpack.c.b16 %v587, %v585
    %v648 = vpack.c.b16 %v590, %v588
    %v649 = vpack.c.b16 %v591, %v589
    %v650 = vpack.c.b16 %v594, %v592
    %v651 = vpack.c.b16 %v595, %v593
    %v652 = vpack.c.b16 %v598, %v596
    %v653 = vpack.c.b16 %v599, %v597
    %v654 = vpack.c.b16 %v602, %v600
    %v655 = vpack.c.b16 %v603, %v601
    %v656 = vpack.c.b16 %v606, %v604
    %v657 = vpack.c.b16 %v607, %v605
    %v658 = vpack.c.b16 %v610, %v608
    %v659 = vpack.c.b16 %v611, %v609
    %v660 = vpack.c.b16 %v614, %v612
    %v661 = vpack.c.b16 %v615, %v613
    %v662 = vpack.c.b16 %v618, %v616
    %v663 = vpack.c.b16 %v619, %v617
    %v664 = vpack.c.b16 %v622, %v620
    %v665 = vpack.c.b16 %v623, %v621
    %v666 = vpack.c.b16 %v626, %v624
    %v667 = vpack.c.b16 %v627, %v625
    %v668 = vpack.c.b16 %v630, %v628
    %v669 = vpack.c.b16 %v631, %v629
    %v670 = vpack.c.b16 %v634, %v632
    %v671 = vpack.c.b16 %v635, %v633
    %v672 = vpack.c.b16 %v638, %v636
    %v673 = vpack.c.b16 %v639, %v637
    %v674 = vpack.c.b16 %v642, %v640
    %v675 = vpack.c.b16 %v643, %v641
    %708 = vmatprep.subr.bf16.mxu0 %v659
    %709 = vmatpush1.bf16.msra.mxu0 %v658
    %710 = vmatprep.subr.bf16.mxu0 %v657
    %711 = vmatpush1.bf16.msra.mxu0 %v656
    %712 = vmatprep.subr.bf16.mxu0 %v655
    %713 = vmatpush1.bf16.msra.mxu0 %v654
    %714 = vmatprep.subr.bf16.mxu0 %v653
    %715 = vmatpush1.bf16.msra.mxu0 %v652
    %716 = vmatprep.subr.bf16.mxu0 %v651
    %717 = vmatpush1.bf16.msra.mxu0 %v650
    %718 = vmatprep.subr.bf16.mxu0 %v649
    %719 = vmatpush1.bf16.msra.mxu0 %v648
    %720 = vmatprep.subr.bf16.mxu0 %v647
    %721 = vmatpush1.bf16.msra.mxu0 %v646
    %722 = vmatprep.subr.bf16.mxu0 %v645
    %723 = vmatpush1.bf16.msra.mxu0 %v644
    %724 = vmatprep.subr.bf16.mxu0 %v675
    %725 = vmatpush2.bf16.msra.mxu0 %v674
    %726 = vmatprep.subr.bf16.mxu0 %v673
    %727 = vmatpush2.bf16.msra.mxu0 %v672
    %728 = vmatprep.subr.bf16.mxu0 %v671
    %729 = vmatpush2.bf16.msra.mxu0 %v670
    %730 = vmatprep.subr.bf16.mxu0 %v669
    %731 = vmatpush2.bf16.msra.mxu0 %v668
    %732 = vmatprep.subr.bf16.mxu0 %v667
    %733 = vmatpush2.bf16.msra.mxu0 %v666
    %734 = vmatprep.subr.bf16.mxu0 %v665
    %735 = vmatpush2.bf16.msra.mxu0 %v664
    %736 = vmatprep.subr.bf16.mxu0 %v663
    %737 = vmatpush2.bf16.msra.mxu0 %v662
    %738 = vmatprep.subr.bf16.mxu0 %v661
    %739 = vmatpush2.bf16.msra.mxu0 %v660
    %740 = vmatprep.mubr.bf16.mxu0 %v421
    %741 = vmatmul.mubr.bf16.gmra.mxu0 %v420
    %v742 = vpop.f32.mrf.mxu0
    %v743 = vadd.f32 0.0, %v742
    %v744 = vpop.f32.mrf.mxu0
    %v745 = vadd.f32 0.0, %v744
    %v746 = vpop.f32.mrf.mxu0
    %v747 = vadd.f32 0.0, %v746
    %v748 = vpop.f32.mrf.mxu0
    %v749 = vadd.f32 0.0, %v748
    %750 = vmatprep.mubr.bf16.mxu0 %v423
    %751 = vmatmul.mubr.bf16.gmra.mxu0 %v422
    %v752 = vpop.f32.mrf.mxu0
    %v753 = vadd.f32 0.0, %v752
    %v754 = vpop.f32.mrf.mxu0
    %v755 = vadd.f32 0.0, %v754
    %v756 = vpop.f32.mrf.mxu0
    %v757 = vadd.f32 0.0, %v756
    %v758 = vpop.f32.mrf.mxu0
    %v759 = vadd.f32 0.0, %v758
    %760 = vmatprep.mubr.bf16.mxu0 %v425
    %761 = vmatmul.mubr.bf16.gmra.mxu0 %v424
    %v762 = vpop.f32.mrf.mxu0
    %v763 = vadd.f32 0.0, %v762
    %v764 = vpop.f32.mrf.mxu0
    %v765 = vadd.f32 0.0, %v764
    %v766 = vpop.f32.mrf.mxu0
    %v767 = vadd.f32 0.0, %v766
    %v768 = vpop.f32.mrf.mxu0
    %v769 = vadd.f32 0.0, %v768
    %770 = vmatprep.mubr.bf16.mxu0 %v427
    %771 = vmatmul.mubr.bf16.gmra.mxu0 %v426
    %v772 = vpop.f32.mrf.mxu0
    %v773 = vadd.f32 0.0, %v772
    %v774 = vpop.f32.mrf.mxu0
    %v775 = vadd.f32 0.0, %v774
    %v776 = vpop.f32.mrf.mxu0
    %v777 = vadd.f32 0.0, %v776
    %v778 = vpop.f32.mrf.mxu0
    %v779 = vadd.f32 0.0, %v778
    %780 = vmatprep.mubr.bf16.mxu0 %v429
    %781 = vmatmul.mubr.bf16.gmra.mxu0 %v428
    %v782 = vpop.f32.mrf.mxu0
    %v783 = vadd.f32 0.0, %v782
    %v784 = vpop.f32.mrf.mxu0
    %v785 = vadd.f32 0.0, %v784
    %v786 = vpop.f32.mrf.mxu0
    %v787 = vadd.f32 0.0, %v786
    %v788 = vpop.f32.mrf.mxu0
    %v789 = vadd.f32 0.0, %v788
    %790 = vmatprep.mubr.bf16.mxu0 %v431
    %791 = vmatmul.mubr.bf16.gmra.mxu0 %v430
    %v792 = vpop.f32.mrf.mxu0
    %v793 = vadd.f32 0.0, %v792
    %v794 = vpop.f32.mrf.mxu0
    %v795 = vadd.f32 0.0, %v794
    %v796 = vpop.f32.mrf.mxu0
    %v797 = vadd.f32 0.0, %v796
    %v798 = vpop.f32.mrf.mxu0
    %v799 = vadd.f32 0.0, %v798
    %800 = vmatprep.mubr.bf16.mxu0 %v433
    %801 = vmatmul.mubr.bf16.gmra.mxu0 %v432
    %v802 = vpop.f32.mrf.mxu0
    %v803 = vadd.f32 0.0, %v802
    %v804 = vpop.f32.mrf.mxu0
    %v805 = vadd.f32 0.0, %v804
    %v806 = vpop.f32.mrf.mxu0
    %v807 = vadd.f32 0.0, %v806
    %v808 = vpop.f32.mrf.mxu0
    %v809 = vadd.f32 0.0, %v808
    %810 = vmatprep.mubr.bf16.mxu0 %v435
    %811 = vmatmul.mubr.bf16.gmra.mxu0 %v434
    %v812 = vpop.f32.mrf.mxu0
    %v813 = vadd.f32 0.0, %v812
    %v814 = vpop.f32.mrf.mxu0
    %v815 = vadd.f32 0.0, %v814
    %v816 = vpop.f32.mrf.mxu0
    %v817 = vadd.f32 0.0, %v816
    %v818 = vpop.f32.mrf.mxu0
    %v819 = vadd.f32 0.0, %v818
    %820 = vmatprep.mubr.bf16.mxu0 %v437
    %821 = vmatmul.mubr.bf16.gmra.mxu0 %v436
    %v822 = vpop.f32.mrf.mxu0
    %v823 = vadd.f32 0.0, %v822
    %v824 = vpop.f32.mrf.mxu0
    %v825 = vadd.f32 0.0, %v824
    %v826 = vpop.f32.mrf.mxu0
    %v827 = vadd.f32 0.0, %v826
    %v828 = vpop.f32.mrf.mxu0
    %v829 = vadd.f32 0.0, %v828
    %830 = vmatprep.mubr.bf16.mxu0 %v439
    %831 = vmatmul.mubr.bf16.gmra.mxu0 %v438
    %v832 = vpop.f32.mrf.mxu0
    %v833 = vadd.f32 0.0, %v832
    %v834 = vpop.f32.mrf.mxu0
    %v835 = vadd.f32 0.0, %v834
    %v836 = vpop.f32.mrf.mxu0
    %v837 = vadd.f32 0.0, %v836
    %v838 = vpop.f32.mrf.mxu0
    %v839 = vadd.f32 0.0, %v838
    %840 = vmatprep.mubr.bf16.mxu0 %v441
    %841 = vmatmul.mubr.bf16.gmra.mxu0 %v440
    %v842 = vpop.f32.mrf.mxu0
    %v843 = vadd.f32 0.0, %v842
    %v844 = vpop.f32.mrf.mxu0
    %v845 = vadd.f32 0.0, %v844
    %v846 = vpop.f32.mrf.mxu0
    %v847 = vadd.f32 0.0, %v846
    %v848 = vpop.f32.mrf.mxu0
    %v849 = vadd.f32 0.0, %v848
    %850 = vmatprep.mubr.bf16.mxu0 %v443
    %851 = vmatmul.mubr.bf16.gmra.mxu0 %v442
    %v852 = vpop.f32.mrf.mxu0
    %v853 = vadd.f32 0.0, %v852
    %v854 = vpop.f32.mrf.mxu0
    %v855 = vadd.f32 0.0, %v854
    %v856 = vpop.f32.mrf.mxu0
    %v857 = vadd.f32 0.0, %v856
    %v858 = vpop.f32.mrf.mxu0
    %v859 = vadd.f32 0.0, %v858
    %860 = vmatprep.mubr.bf16.mxu0 %v445
    %861 = vmatmul.mubr.bf16.gmra.mxu0 %v444
    %v862 = vpop.f32.mrf.mxu0
    %v863 = vadd.f32 0.0, %v862
    %v864 = vpop.f32.mrf.mxu0
    %v865 = vadd.f32 0.0, %v864
    %v866 = vpop.f32.mrf.mxu0
    %v867 = vadd.f32 0.0, %v866
    %v868 = vpop.f32.mrf.mxu0
    %v869 = vadd.f32 0.0, %v868
    %870 = vmatprep.mubr.bf16.mxu0 %v447
    %871 = vmatmul.mubr.bf16.gmra.mxu0 %v446
    %v872 = vpop.f32.mrf.mxu0
    %v873 = vadd.f32 0.0, %v872
    %v874 = vpop.f32.mrf.mxu0
    %v875 = vadd.f32 0.0, %v874
    %v876 = vpop.f32.mrf.mxu0
    %v877 = vadd.f32 0.0, %v876
    %v878 = vpop.f32.mrf.mxu0
    %v879 = vadd.f32 0.0, %v878
    %880 = vmatprep.mubr.bf16.mxu0 %v449
    %881 = vmatmul.mubr.bf16.gmra.mxu0 %v448
    %v882 = vpop.f32.mrf.mxu0
    %v883 = vadd.f32 0.0, %v882
    %v884 = vpop.f32.mrf.mxu0
    %v885 = vadd.f32 0.0, %v884
    %v886 = vpop.f32.mrf.mxu0
    %v887 = vadd.f32 0.0, %v886
    %v888 = vpop.f32.mrf.mxu0
    %v889 = vadd.f32 0.0, %v888
    %890 = vmatprep.mubr.bf16.mxu0 %v451
    %891 = vmatmul.mubr.bf16.gmra.mxu0 %v450
    %v892 = vpop.f32.mrf.mxu0
    %v893 = vadd.f32 0.0, %v892
    %v894 = vpop.f32.mrf.mxu0
    %v895 = vadd.f32 0.0, %v894
    %v896 = vpop.f32.mrf.mxu0
    %v897 = vadd.f32 0.0, %v896
    %v898 = vpop.f32.mrf.mxu0
    %v899 = vadd.f32 0.0, %v898
    %900 = vmatprep.mubr.bf16.mxu0 %v453
    %901 = vmatmul.mubr.bf16.gmra.mxu0 %v452
    %v902 = vpop.f32.mrf.mxu0
    %v903 = vadd.f32 0.0, %v902
    %v904 = vpop.f32.mrf.mxu0
    %v905 = vadd.f32 0.0, %v904
    %v906 = vpop.f32.mrf.mxu0
    %v907 = vadd.f32 0.0, %v906
    %v908 = vpop.f32.mrf.mxu0
    %v909 = vadd.f32 0.0, %v908
    %910 = vmatprep.mubr.bf16.mxu0 %v455
    %911 = vmatmul.mubr.bf16.gmra.mxu0 %v454
    %v912 = vpop.f32.mrf.mxu0
    %v913 = vadd.f32 0.0, %v912
    %v914 = vpop.f32.mrf.mxu0
    %v915 = vadd.f32 0.0, %v914
    %v916 = vpop.f32.mrf.mxu0
    %v917 = vadd.f32 0.0, %v916
    %v918 = vpop.f32.mrf.mxu0
    %v919 = vadd.f32 0.0, %v918
    %920 = vmatprep.mubr.bf16.mxu0 %v457
    %921 = vmatmul.mubr.bf16.gmra.mxu0 %v456
    %v922 = vpop.f32.mrf.mxu0
    %v923 = vadd.f32 0.0, %v922
    %v924 = vpop.f32.mrf.mxu0
    %v925 = vadd.f32 0.0, %v924
    %v926 = vpop.f32.mrf.mxu0
    %v927 = vadd.f32 0.0, %v926
    %v928 = vpop.f32.mrf.mxu0
    %v929 = vadd.f32 0.0, %v928
    %930 = vmatprep.mubr.bf16.mxu0 %v459
    %931 = vmatmul.mubr.bf16.gmra.mxu0 %v458
    %v932 = vpop.f32.mrf.mxu0
    %v933 = vadd.f32 0.0, %v932
    %v934 = vpop.f32.mrf.mxu0
    %v935 = vadd.f32 0.0, %v934
    %v936 = vpop.f32.mrf.mxu0
    %v937 = vadd.f32 0.0, %v936
    %v938 = vpop.f32.mrf.mxu0
    %v939 = vadd.f32 0.0, %v938
    %940 = vmatprep.mubr.bf16.mxu0 %v461
    %941 = vmatmul.mubr.bf16.gmra.mxu0 %v460
    %v942 = vpop.f32.mrf.mxu0
    %v943 = vadd.f32 0.0, %v942
    %v944 = vpop.f32.mrf.mxu0
    %v945 = vadd.f32 0.0, %v944
    %v946 = vpop.f32.mrf.mxu0
    %v947 = vadd.f32 0.0, %v946
    %v948 = vpop.f32.mrf.mxu0
    %v949 = vadd.f32 0.0, %v948
    %950 = vmatprep.mubr.bf16.mxu0 %v463
    %951 = vmatmul.mubr.bf16.gmra.mxu0 %v462
    %v952 = vpop.f32.mrf.mxu0
    %v953 = vadd.f32 0.0, %v952
    %v954 = vpop.f32.mrf.mxu0
    %v955 = vadd.f32 0.0, %v954
    %v956 = vpop.f32.mrf.mxu0
    %v957 = vadd.f32 0.0, %v956
    %v958 = vpop.f32.mrf.mxu0
    %v959 = vadd.f32 0.0, %v958
    %960 = vmatprep.mubr.bf16.mxu0 %v465
    %961 = vmatmul.mubr.bf16.gmra.mxu0 %v464
    %v962 = vpop.f32.mrf.mxu0
    %v963 = vadd.f32 0.0, %v962
    %v964 = vpop.f32.mrf.mxu0
    %v965 = vadd.f32 0.0, %v964
    %v966 = vpop.f32.mrf.mxu0
    %v967 = vadd.f32 0.0, %v966
    %v968 = vpop.f32.mrf.mxu0
    %v969 = vadd.f32 0.0, %v968
    %970 = vmatprep.mubr.bf16.mxu0 %v467
    %971 = vmatmul.mubr.bf16.gmra.mxu0 %v466
    %v972 = vpop.f32.mrf.mxu0
    %v973 = vadd.f32 0.0, %v972
    %v974 = vpop.f32.mrf.mxu0
    %v975 = vadd.f32 0.0, %v974
    %v976 = vpop.f32.mrf.mxu0
    %v977 = vadd.f32 0.0, %v976
    %v978 = vpop.f32.mrf.mxu0
    %v979 = vadd.f32 0.0, %v978
    %980 = vmatprep.mubr.bf16.mxu0 %v469
    %981 = vmatmul.mubr.bf16.gmra.mxu0 %v468
    %v982 = vpop.f32.mrf.mxu0
    %v983 = vadd.f32 0.0, %v982
    %v984 = vpop.f32.mrf.mxu0
    %v985 = vadd.f32 0.0, %v984
    %v986 = vpop.f32.mrf.mxu0
    %v987 = vadd.f32 0.0, %v986
    %v988 = vpop.f32.mrf.mxu0
    %v989 = vadd.f32 0.0, %v988
    %990 = vmatprep.mubr.bf16.mxu0 %v471
    %991 = vmatmul.mubr.bf16.gmra.mxu0 %v470
    %v992 = vpop.f32.mrf.mxu0
    %v993 = vadd.f32 0.0, %v992
    %v994 = vpop.f32.mrf.mxu0
    %v995 = vadd.f32 0.0, %v994
    %v996 = vpop.f32.mrf.mxu0
    %v997 = vadd.f32 0.0, %v996
    %v998 = vpop.f32.mrf.mxu0
    %v999 = vadd.f32 0.0, %v998
    %1000 = vmatprep.mubr.bf16.mxu0 %v473
    %1001 = vmatmul.mubr.bf16.gmra.mxu0 %v472
    %v1002 = vpop.f32.mrf.mxu0
    %v1003 = vadd.f32 0.0, %v1002
    %v1004 = vpop.f32.mrf.mxu0
    %v1005 = vadd.f32 0.0, %v1004
    %v1006 = vpop.f32.mrf.mxu0
    %v1007 = vadd.f32 0.0, %v1006
    %v1008 = vpop.f32.mrf.mxu0
    %v1009 = vadd.f32 0.0, %v1008
    %1010 = vmatprep.mubr.bf16.mxu0 %v475
    %1011 = vmatmul.mubr.bf16.gmra.mxu0 %v474
    %v1012 = vpop.f32.mrf.mxu0
    %v1013 = vadd.f32 0.0, %v1012
    %v1014 = vpop.f32.mrf.mxu0
    %v1015 = vadd.f32 0.0, %v1014
    %v1016 = vpop.f32.mrf.mxu0
    %v1017 = vadd.f32 0.0, %v1016
    %v1018 = vpop.f32.mrf.mxu0
    %v1019 = vadd.f32 0.0, %v1018
    %1020 = vmatprep.mubr.bf16.mxu0 %v477
    %1021 = vmatmul.mubr.bf16.gmra.mxu0 %v476
    %v1022 = vpop.f32.mrf.mxu0
    %v1023 = vadd.f32 0.0, %v1022
    %v1024 = vpop.f32.mrf.mxu0
    %v1025 = vadd.f32 0.0, %v1024
    %v1026 = vpop.f32.mrf.mxu0
    %v1027 = vadd.f32 0.0, %v1026
    %v1028 = vpop.f32.mrf.mxu0
    %v1029 = vadd.f32 0.0, %v1028
    %1030 = vmatprep.mubr.bf16.mxu0 %v479
    %1031 = vmatmul.mubr.bf16.gmra.mxu0 %v478
    %v1032 = vpop.f32.mrf.mxu0
    %v1033 = vadd.f32 0.0, %v1032
    %v1034 = vpop.f32.mrf.mxu0
    %v1035 = vadd.f32 0.0, %v1034
    %v1036 = vpop.f32.mrf.mxu0
    %v1037 = vadd.f32 0.0, %v1036
    %v1038 = vpop.f32.mrf.mxu0
    %v1039 = vadd.f32 0.0, %v1038
    %1040 = vmatprep.mubr.bf16.mxu0 %v481
    %1041 = vmatmul.mubr.bf16.gmra.mxu0 %v480
    %v1042 = vpop.f32.mrf.mxu0
    %v1043 = vadd.f32 0.0, %v1042
    %v1044 = vpop.f32.mrf.mxu0
    %v1045 = vadd.f32 0.0, %v1044
    %v1046 = vpop.f32.mrf.mxu0
    %v1047 = vadd.f32 0.0, %v1046
    %v1048 = vpop.f32.mrf.mxu0
    %v1049 = vadd.f32 0.0, %v1048
    %1050 = vmatprep.mubr.bf16.mxu0 %v483
    %1051 = vmatmul.mubr.bf16.gmra.mxu0 %v482
    %v1052 = vpop.f32.mrf.mxu0
    %v1053 = vadd.f32 0.0, %v1052
    %v1054 = vpop.f32.mrf.mxu0
    %v1055 = vadd.f32 0.0, %v1054
    %v1056 = vpop.f32.mrf.mxu0
    %v1057 = vadd.f32 0.0, %v1056
    %v1058 = vpop.f32.mrf.mxu0
    %v1059 = vadd.f32 0.0, %v1058
    %1060 = vdwg.mxu0
    %v1093 = vunpack.c.l.b16 %v484
    %v1094 = vunpack.c.h.b16 %v484
    %v1095 = vunpack.c.l.b16 %v485
    %v1096 = vunpack.c.h.b16 %v485
    %v1097 = vunpack.c.l.b16 %v486
    %v1098 = vunpack.c.h.b16 %v486
    %v1099 = vunpack.c.l.b16 %v487
    %v1100 = vunpack.c.h.b16 %v487
    %v1101 = vunpack.c.l.b16 %v488
    %v1102 = vunpack.c.h.b16 %v488
    %v1103 = vunpack.c.l.b16 %v489
    %v1104 = vunpack.c.h.b16 %v489
    %v1105 = vunpack.c.l.b16 %v490
    %v1106 = vunpack.c.h.b16 %v490
    %v1107 = vunpack.c.l.b16 %v491
    %v1108 = vunpack.c.h.b16 %v491
    %v1109 = vunpack.c.l.b16 %v492
    %v1110 = vunpack.c.h.b16 %v492
    %v1111 = vunpack.c.l.b16 %v493
    %v1112 = vunpack.c.h.b16 %v493
    %v1113 = vunpack.c.l.b16 %v494
    %v1114 = vunpack.c.h.b16 %v494
    %v1115 = vunpack.c.l.b16 %v495
    %v1116 = vunpack.c.h.b16 %v495
    %v1117 = vunpack.c.l.b16 %v496
    %v1118 = vunpack.c.h.b16 %v496
    %v1119 = vunpack.c.l.b16 %v497
    %v1120 = vunpack.c.h.b16 %v497
    %v1121 = vunpack.c.l.b16 %v498
    %v1122 = vunpack.c.h.b16 %v498
    %v1123 = vunpack.c.l.b16 %v499
    %v1124 = vunpack.c.h.b16 %v499
    %v1125 = vunpack.c.l.b16 %v500
    %v1126 = vunpack.c.h.b16 %v500
    %v1127 = vunpack.c.l.b16 %v501
    %v1128 = vunpack.c.h.b16 %v501
    %v1129 = vunpack.c.l.b16 %v502
    %v1130 = vunpack.c.h.b16 %v502
    %v1131 = vunpack.c.l.b16 %v503
    %v1132 = vunpack.c.h.b16 %v503
    %v1133 = vunpack.c.l.b16 %v504
    %v1134 = vunpack.c.h.b16 %v504
    %v1135 = vunpack.c.l.b16 %v505
    %v1136 = vunpack.c.h.b16 %v505
    %v1137 = vunpack.c.l.b16 %v506
    %v1138 = vunpack.c.h.b16 %v506
    %v1139 = vunpack.c.l.b16 %v507
    %v1140 = vunpack.c.h.b16 %v507
    %v1141 = vunpack.c.l.b16 %v508
    %v1142 = vunpack.c.h.b16 %v508
    %v1143 = vunpack.c.l.b16 %v509
    %v1144 = vunpack.c.h.b16 %v509
    %v1145 = vunpack.c.l.b16 %v510
    %v1146 = vunpack.c.h.b16 %v510
    %v1147 = vunpack.c.l.b16 %v511
    %v1148 = vunpack.c.h.b16 %v511
    %v1149 = vunpack.c.l.b16 %v512
    %v1150 = vunpack.c.h.b16 %v512
    %v1151 = vunpack.c.l.b16 %v513
    %v1152 = vunpack.c.h.b16 %v513
    %v1153 = vunpack.c.l.b16 %v514
    %v1154 = vunpack.c.h.b16 %v514
    %v1155 = vunpack.c.l.b16 %v515
    %v1156 = vunpack.c.h.b16 %v515
    %v1157 = vpack.c.b16 %v1095, %v1093
    %v1158 = vpack.c.b16 %v1096, %v1094
    %v1159 = vpack.c.b16 %v1099, %v1097
    %v1160 = vpack.c.b16 %v1100, %v1098
    %v1161 = vpack.c.b16 %v1103, %v1101
    %v1162 = vpack.c.b16 %v1104, %v1102
    %v1163 = vpack.c.b16 %v1107, %v1105
    %v1164 = vpack.c.b16 %v1108, %v1106
    %v1165 = vpack.c.b16 %v1111, %v1109
    %v1166 = vpack.c.b16 %v1112, %v1110
    %v1167 = vpack.c.b16 %v1115, %v1113
    %v1168 = vpack.c.b16 %v1116, %v1114
    %v1169 = vpack.c.b16 %v1119, %v1117
    %v1170 = vpack.c.b16 %v1120, %v1118
    %v1171 = vpack.c.b16 %v1123, %v1121
    %v1172 = vpack.c.b16 %v1124, %v1122
    %v1173 = vpack.c.b16 %v1127, %v1125
    %v1174 = vpack.c.b16 %v1128, %v1126
    %v1175 = vpack.c.b16 %v1131, %v1129
    %v1176 = vpack.c.b16 %v1132, %v1130
    %v1177 = vpack.c.b16 %v1135, %v1133
    %v1178 = vpack.c.b16 %v1136, %v1134
    %v1179 = vpack.c.b16 %v1139, %v1137
    %v1180 = vpack.c.b16 %v1140, %v1138
    %v1181 = vpack.c.b16 %v1143, %v1141
    %v1182 = vpack.c.b16 %v1144, %v1142
    %v1183 = vpack.c.b16 %v1147, %v1145
    %v1184 = vpack.c.b16 %v1148, %v1146
    %v1185 = vpack.c.b16 %v1151, %v1149
    %v1186 = vpack.c.b16 %v1152, %v1150
    %v1187 = vpack.c.b16 %v1155, %v1153
    %v1188 = vpack.c.b16 %v1156, %v1154
    %1221 = vmatprep.subr.bf16.mxu0 %v1172
    %1222 = vmatpush1.bf16.msra.mxu0 %v1171
    %1223 = vmatprep.subr.bf16.mxu0 %v1170
    %1224 = vmatpush1.bf16.msra.mxu0 %v1169
    %1225 = vmatprep.subr.bf16.mxu0 %v1168
    %1226 = vmatpush1.bf16.msra.mxu0 %v1167
    %1227 = vmatprep.subr.bf16.mxu0 %v1166
    %1228 = vmatpush1.bf16.msra.mxu0 %v1165
    %1229 = vmatprep.subr.bf16.mxu0 %v1164
    %1230 = vmatpush1.bf16.msra.mxu0 %v1163
    %1231 = vmatprep.subr.bf16.mxu0 %v1162
    %1232 = vmatpush1.bf16.msra.mxu0 %v1161
    %1233 = vmatprep.subr.bf16.mxu0 %v1160
    %1234 = vmatpush1.bf16.msra.mxu0 %v1159
    %1235 = vmatprep.subr.bf16.mxu0 %v1158
    %1236 = vmatpush1.bf16.msra.mxu0 %v1157
    %1237 = vmatprep.subr.bf16.mxu0 %v1188
    %1238 = vmatpush2.bf16.msra.mxu0 %v1187
    %1239 = vmatprep.subr.bf16.mxu0 %v1186
    %1240 = vmatpush2.bf16.msra.mxu0 %v1185
    %1241 = vmatprep.subr.bf16.mxu0 %v1184
    %1242 = vmatpush2.bf16.msra.mxu0 %v1183
    %1243 = vmatprep.subr.bf16.mxu0 %v1182
    %1244 = vmatpush2.bf16.msra.mxu0 %v1181
    %1245 = vmatprep.subr.bf16.mxu0 %v1180
    %1246 = vmatpush2.bf16.msra.mxu0 %v1179
    %1247 = vmatprep.subr.bf16.mxu0 %v1178
    %1248 = vmatpush2.bf16.msra.mxu0 %v1177
    %1249 = vmatprep.subr.bf16.mxu0 %v1176
    %1250 = vmatpush2.bf16.msra.mxu0 %v1175
    %1251 = vmatprep.subr.bf16.mxu0 %v1174
    %1252 = vmatpush2.bf16.msra.mxu0 %v1173
    %1253 = vmatprep.mubr.bf16.mxu0 %v229
    %1254 = vmatmul.mubr.bf16.gmra.mxu0 %v228
    %v1255 = vpop.f32.mrf.mxu0
    %v1256 = vadd.f32 %v743, %v1255
    %v1257 = vpop.f32.mrf.mxu0
    %v1258 = vadd.f32 %v745, %v1257
    %v1259 = vpop.f32.mrf.mxu0
    %v1260 = vadd.f32 %v747, %v1259
    %v1261 = vpop.f32.mrf.mxu0
    %v1262 = vadd.f32 %v749, %v1261
    %1263 = vmatprep.mubr.bf16.mxu0 %v231
    %1264 = vmatmul.mubr.bf16.gmra.mxu0 %v230
    %v1265 = vpop.f32.mrf.mxu0
    %v1266 = vadd.f32 %v753, %v1265
    %v1267 = vpop.f32.mrf.mxu0
    %v1268 = vadd.f32 %v755, %v1267
    %v1269 = vpop.f32.mrf.mxu0
    %v1270 = vadd.f32 %v757, %v1269
    %v1271 = vpop.f32.mrf.mxu0
    %v1272 = vadd.f32 %v759, %v1271
    %1273 = vmatprep.mubr.bf16.mxu0 %v233
    %1274 = vmatmul.mubr.bf16.gmra.mxu0 %v232
    %v1275 = vpop.f32.mrf.mxu0
    %v1276 = vadd.f32 %v763, %v1275
    %v1277 = vpop.f32.mrf.mxu0
    %v1278 = vadd.f32 %v765, %v1277
    %v1279 = vpop.f32.mrf.mxu0
    %v1280 = vadd.f32 %v767, %v1279
    %v1281 = vpop.f32.mrf.mxu0
    %v1282 = vadd.f32 %v769, %v1281
    %1283 = vmatprep.mubr.bf16.mxu0 %v235
    %1284 = vmatmul.mubr.bf16.gmra.mxu0 %v234
    %v1285 = vpop.f32.mrf.mxu0
    %v1286 = vadd.f32 %v773, %v1285
    %v1287 = vpop.f32.mrf.mxu0
    %v1288 = vadd.f32 %v775, %v1287
    %v1289 = vpop.f32.mrf.mxu0
    %v1290 = vadd.f32 %v777, %v1289
    %v1291 = vpop.f32.mrf.mxu0
    %v1292 = vadd.f32 %v779, %v1291
    %1293 = vmatprep.mubr.bf16.mxu0 %v237
    %1294 = vmatmul.mubr.bf16.gmra.mxu0 %v236
    %v1295 = vpop.f32.mrf.mxu0
    %v1296 = vadd.f32 %v783, %v1295
    %v1297 = vpop.f32.mrf.mxu0
    %v1298 = vadd.f32 %v785, %v1297
    %v1299 = vpop.f32.mrf.mxu0
    %v1300 = vadd.f32 %v787, %v1299
    %v1301 = vpop.f32.mrf.mxu0
    %v1302 = vadd.f32 %v789, %v1301
    %1303 = vmatprep.mubr.bf16.mxu0 %v239
    %1304 = vmatmul.mubr.bf16.gmra.mxu0 %v238
    %v1305 = vpop.f32.mrf.mxu0
    %v1306 = vadd.f32 %v793, %v1305
    %v1307 = vpop.f32.mrf.mxu0
    %v1308 = vadd.f32 %v795, %v1307
    %v1309 = vpop.f32.mrf.mxu0
    %v1310 = vadd.f32 %v797, %v1309
    %v1311 = vpop.f32.mrf.mxu0
    %v1312 = vadd.f32 %v799, %v1311
    %1313 = vmatprep.mubr.bf16.mxu0 %v241
    %1314 = vmatmul.mubr.bf16.gmra.mxu0 %v240
    %v1315 = vpop.f32.mrf.mxu0
    %v1316 = vadd.f32 %v803, %v1315
    %v1317 = vpop.f32.mrf.mxu0
    %v1318 = vadd.f32 %v805, %v1317
    %v1319 = vpop.f32.mrf.mxu0
    %v1320 = vadd.f32 %v807, %v1319
    %v1321 = vpop.f32.mrf.mxu0
    %v1322 = vadd.f32 %v809, %v1321
    %1323 = vmatprep.mubr.bf16.mxu0 %v243
    %1324 = vmatmul.mubr.bf16.gmra.mxu0 %v242
    %v1325 = vpop.f32.mrf.mxu0
    %v1326 = vadd.f32 %v813, %v1325
    %v1327 = vpop.f32.mrf.mxu0
    %v1328 = vadd.f32 %v815, %v1327
    %v1329 = vpop.f32.mrf.mxu0
    %v1330 = vadd.f32 %v817, %v1329
    %v1331 = vpop.f32.mrf.mxu0
    %v1332 = vadd.f32 %v819, %v1331
    %1333 = vmatprep.mubr.bf16.mxu0 %v245
    %1334 = vmatmul.mubr.bf16.gmra.mxu0 %v244
    %v1335 = vpop.f32.mrf.mxu0
    %v1336 = vadd.f32 %v823, %v1335
    %v1337 = vpop.f32.mrf.mxu0
    %v1338 = vadd.f32 %v825, %v1337
    %v1339 = vpop.f32.mrf.mxu0
    %v1340 = vadd.f32 %v827, %v1339
    %v1341 = vpop.f32.mrf.mxu0
    %v1342 = vadd.f32 %v829, %v1341
    %1343 = vmatprep.mubr.bf16.mxu0 %v247
    %1344 = vmatmul.mubr.bf16.gmra.mxu0 %v246
    %v1345 = vpop.f32.mrf.mxu0
    %v1346 = vadd.f32 %v833, %v1345
    %v1347 = vpop.f32.mrf.mxu0
    %v1348 = vadd.f32 %v835, %v1347
    %v1349 = vpop.f32.mrf.mxu0
    %v1350 = vadd.f32 %v837, %v1349
    %v1351 = vpop.f32.mrf.mxu0
    %v1352 = vadd.f32 %v839, %v1351
    %1353 = vmatprep.mubr.bf16.mxu0 %v249
    %1354 = vmatmul.mubr.bf16.gmra.mxu0 %v248
    %v1355 = vpop.f32.mrf.mxu0
    %v1356 = vadd.f32 %v843, %v1355
    %v1357 = vpop.f32.mrf.mxu0
    %v1358 = vadd.f32 %v845, %v1357
    %v1359 = vpop.f32.mrf.mxu0
    %v1360 = vadd.f32 %v847, %v1359
    %v1361 = vpop.f32.mrf.mxu0
    %v1362 = vadd.f32 %v849, %v1361
    %1363 = vmatprep.mubr.bf16.mxu0 %v251
    %1364 = vmatmul.mubr.bf16.gmra.mxu0 %v250
    %v1365 = vpop.f32.mrf.mxu0
    %v1366 = vadd.f32 %v853, %v1365
    %v1367 = vpop.f32.mrf.mxu0
    %v1368 = vadd.f32 %v855, %v1367
    %v1369 = vpop.f32.mrf.mxu0
    %v1370 = vadd.f32 %v857, %v1369
    %v1371 = vpop.f32.mrf.mxu0
    %v1372 = vadd.f32 %v859, %v1371
    %1373 = vmatprep.mubr.bf16.mxu0 %v253
    %1374 = vmatmul.mubr.bf16.gmra.mxu0 %v252
    %v1375 = vpop.f32.mrf.mxu0
    %v1376 = vadd.f32 %v863, %v1375
    %v1377 = vpop.f32.mrf.mxu0
    %v1378 = vadd.f32 %v865, %v1377
    %v1379 = vpop.f32.mrf.mxu0
    %v1380 = vadd.f32 %v867, %v1379
    %v1381 = vpop.f32.mrf.mxu0
    %v1382 = vadd.f32 %v869, %v1381
    %1383 = vmatprep.mubr.bf16.mxu0 %v255
    %1384 = vmatmul.mubr.bf16.gmra.mxu0 %v254
    %v1385 = vpop.f32.mrf.mxu0
    %v1386 = vadd.f32 %v873, %v1385
    %v1387 = vpop.f32.mrf.mxu0
    %v1388 = vadd.f32 %v875, %v1387
    %v1389 = vpop.f32.mrf.mxu0
    %v1390 = vadd.f32 %v877, %v1389
    %v1391 = vpop.f32.mrf.mxu0
    %v1392 = vadd.f32 %v879, %v1391
    %1393 = vmatprep.mubr.bf16.mxu0 %v257
    %1394 = vmatmul.mubr.bf16.gmra.mxu0 %v256
    %v1395 = vpop.f32.mrf.mxu0
    %v1396 = vadd.f32 %v883, %v1395
    %v1397 = vpop.f32.mrf.mxu0
    %v1398 = vadd.f32 %v885, %v1397
    %v1399 = vpop.f32.mrf.mxu0
    %v1400 = vadd.f32 %v887, %v1399
    %v1401 = vpop.f32.mrf.mxu0
    %v1402 = vadd.f32 %v889, %v1401
    %1403 = vmatprep.mubr.bf16.mxu0 %v259
    %1404 = vmatmul.mubr.bf16.gmra.mxu0 %v258
    %v1405 = vpop.f32.mrf.mxu0
    %v1406 = vadd.f32 %v893, %v1405
    %v1407 = vpop.f32.mrf.mxu0
    %v1408 = vadd.f32 %v895, %v1407
    %v1409 = vpop.f32.mrf.mxu0
    %v1410 = vadd.f32 %v897, %v1409
    %v1411 = vpop.f32.mrf.mxu0
    %v1412 = vadd.f32 %v899, %v1411
    %1413 = vmatprep.mubr.bf16.mxu0 %v261
    %1414 = vmatmul.mubr.bf16.gmra.mxu0 %v260
    %v1415 = vpop.f32.mrf.mxu0
    %v1416 = vadd.f32 %v903, %v1415
    %v1417 = vpop.f32.mrf.mxu0
    %v1418 = vadd.f32 %v905, %v1417
    %v1419 = vpop.f32.mrf.mxu0
    %v1420 = vadd.f32 %v907, %v1419
    %v1421 = vpop.f32.mrf.mxu0
    %v1422 = vadd.f32 %v909, %v1421
    %1423 = vmatprep.mubr.bf16.mxu0 %v263
    %1424 = vmatmul.mubr.bf16.gmra.mxu0 %v262
    %v1425 = vpop.f32.mrf.mxu0
    %v1426 = vadd.f32 %v913, %v1425
    %v1427 = vpop.f32.mrf.mxu0
    %v1428 = vadd.f32 %v915, %v1427
    %v1429 = vpop.f32.mrf.mxu0
    %v1430 = vadd.f32 %v917, %v1429
    %v1431 = vpop.f32.mrf.mxu0
    %v1432 = vadd.f32 %v919, %v1431
    %1433 = vmatprep.mubr.bf16.mxu0 %v265
    %1434 = vmatmul.mubr.bf16.gmra.mxu0 %v264
    %v1435 = vpop.f32.mrf.mxu0
    %v1436 = vadd.f32 %v923, %v1435
    %v1437 = vpop.f32.mrf.mxu0
    %v1438 = vadd.f32 %v925, %v1437
    %v1439 = vpop.f32.mrf.mxu0
    %v1440 = vadd.f32 %v927, %v1439
    %v1441 = vpop.f32.mrf.mxu0
    %v1442 = vadd.f32 %v929, %v1441
    %1443 = vmatprep.mubr.bf16.mxu0 %v267
    %1444 = vmatmul.mubr.bf16.gmra.mxu0 %v266
    %v1445 = vpop.f32.mrf.mxu0
    %v1446 = vadd.f32 %v933, %v1445
    %v1447 = vpop.f32.mrf.mxu0
    %v1448 = vadd.f32 %v935, %v1447
    %v1449 = vpop.f32.mrf.mxu0
    %v1450 = vadd.f32 %v937, %v1449
    %v1451 = vpop.f32.mrf.mxu0
    %v1452 = vadd.f32 %v939, %v1451
    %1453 = vmatprep.mubr.bf16.mxu0 %v269
    %1454 = vmatmul.mubr.bf16.gmra.mxu0 %v268
    %v1455 = vpop.f32.mrf.mxu0
    %v1456 = vadd.f32 %v943, %v1455
    %v1457 = vpop.f32.mrf.mxu0
    %v1458 = vadd.f32 %v945, %v1457
    %v1459 = vpop.f32.mrf.mxu0
    %v1460 = vadd.f32 %v947, %v1459
    %v1461 = vpop.f32.mrf.mxu0
    %v1462 = vadd.f32 %v949, %v1461
    %1463 = vmatprep.mubr.bf16.mxu0 %v271
    %1464 = vmatmul.mubr.bf16.gmra.mxu0 %v270
    %v1465 = vpop.f32.mrf.mxu0
    %v1466 = vadd.f32 %v953, %v1465
    %v1467 = vpop.f32.mrf.mxu0
    %v1468 = vadd.f32 %v955, %v1467
    %v1469 = vpop.f32.mrf.mxu0
    %v1470 = vadd.f32 %v957, %v1469
    %v1471 = vpop.f32.mrf.mxu0
    %v1472 = vadd.f32 %v959, %v1471
    %1473 = vmatprep.mubr.bf16.mxu0 %v273
    %1474 = vmatmul.mubr.bf16.gmra.mxu0 %v272
    %v1475 = vpop.f32.mrf.mxu0
    %v1476 = vadd.f32 %v963, %v1475
    %v1477 = vpop.f32.mrf.mxu0
    %v1478 = vadd.f32 %v965, %v1477
    %v1479 = vpop.f32.mrf.mxu0
    %v1480 = vadd.f32 %v967, %v1479
    %v1481 = vpop.f32.mrf.mxu0
    %v1482 = vadd.f32 %v969, %v1481
    %1483 = vmatprep.mubr.bf16.mxu0 %v275
    %1484 = vmatmul.mubr.bf16.gmra.mxu0 %v274
    %v1485 = vpop.f32.mrf.mxu0
    %v1486 = vadd.f32 %v973, %v1485
    %v1487 = vpop.f32.mrf.mxu0
    %v1488 = vadd.f32 %v975, %v1487
    %v1489 = vpop.f32.mrf.mxu0
    %v1490 = vadd.f32 %v977, %v1489
    %v1491 = vpop.f32.mrf.mxu0
    %v1492 = vadd.f32 %v979, %v1491
    %1493 = vmatprep.mubr.bf16.mxu0 %v277
    %1494 = vmatmul.mubr.bf16.gmra.mxu0 %v276
    %v1495 = vpop.f32.mrf.mxu0
    %v1496 = vadd.f32 %v983, %v1495
    %v1497 = vpop.f32.mrf.mxu0
    %v1498 = vadd.f32 %v985, %v1497
    %v1499 = vpop.f32.mrf.mxu0
    %v1500 = vadd.f32 %v987, %v1499
    %v1501 = vpop.f32.mrf.mxu0
    %v1502 = vadd.f32 %v989, %v1501
    %1503 = vmatprep.mubr.bf16.mxu0 %v279
    %1504 = vmatmul.mubr.bf16.gmra.mxu0 %v278
    %v1505 = vpop.f32.mrf.mxu0
    %v1506 = vadd.f32 %v993, %v1505
    %v1507 = vpop.f32.mrf.mxu0
    %v1508 = vadd.f32 %v995, %v1507
    %v1509 = vpop.f32.mrf.mxu0
    %v1510 = vadd.f32 %v997, %v1509
    %v1511 = vpop.f32.mrf.mxu0
    %v1512 = vadd.f32 %v999, %v1511
    %1513 = vmatprep.mubr.bf16.mxu0 %v281
    %1514 = vmatmul.mubr.bf16.gmra.mxu0 %v280
    %v1515 = vpop.f32.mrf.mxu0
    %v1516 = vadd.f32 %v1003, %v1515
    %v1517 = vpop.f32.mrf.mxu0
    %v1518 = vadd.f32 %v1005, %v1517
    %v1519 = vpop.f32.mrf.mxu0
    %v1520 = vadd.f32 %v1007, %v1519
    %v1521 = vpop.f32.mrf.mxu0
    %v1522 = vadd.f32 %v1009, %v1521
    %1523 = vmatprep.mubr.bf16.mxu0 %v283
    %1524 = vmatmul.mubr.bf16.gmra.mxu0 %v282
    %v1525 = vpop.f32.mrf.mxu0
    %v1526 = vadd.f32 %v1013, %v1525
    %v1527 = vpop.f32.mrf.mxu0
    %v1528 = vadd.f32 %v1015, %v1527
    %v1529 = vpop.f32.mrf.mxu0
    %v1530 = vadd.f32 %v1017, %v1529
    %v1531 = vpop.f32.mrf.mxu0
    %v1532 = vadd.f32 %v1019, %v1531
    %1533 = vmatprep.mubr.bf16.mxu0 %v285
    %1534 = vmatmul.mubr.bf16.gmra.mxu0 %v284
    %v1535 = vpop.f32.mrf.mxu0
    %v1536 = vadd.f32 %v1023, %v1535
    %v1537 = vpop.f32.mrf.mxu0
    %v1538 = vadd.f32 %v1025, %v1537
    %v1539 = vpop.f32.mrf.mxu0
    %v1540 = vadd.f32 %v1027, %v1539
    %v1541 = vpop.f32.mrf.mxu0
    %v1542 = vadd.f32 %v1029, %v1541
    %1543 = vmatprep.mubr.bf16.mxu0 %v287
    %1544 = vmatmul.mubr.bf16.gmra.mxu0 %v286
    %v1545 = vpop.f32.mrf.mxu0
    %v1546 = vadd.f32 %v1033, %v1545
    %v1547 = vpop.f32.mrf.mxu0
    %v1548 = vadd.f32 %v1035, %v1547
    %v1549 = vpop.f32.mrf.mxu0
    %v1550 = vadd.f32 %v1037, %v1549
    %v1551 = vpop.f32.mrf.mxu0
    %v1552 = vadd.f32 %v1039, %v1551
    %1553 = vmatprep.mubr.bf16.mxu0 %v289
    %1554 = vmatmul.mubr.bf16.gmra.mxu0 %v288
    %v1555 = vpop.f32.mrf.mxu0
    %v1556 = vadd.f32 %v1043, %v1555
    %v1557 = vpop.f32.mrf.mxu0
    %v1558 = vadd.f32 %v1045, %v1557
    %v1559 = vpop.f32.mrf.mxu0
    %v1560 = vadd.f32 %v1047, %v1559
    %v1561 = vpop.f32.mrf.mxu0
    %v1562 = vadd.f32 %v1049, %v1561
    %1563 = vmatprep.mubr.bf16.mxu0 %v291
    %1564 = vmatmul.mubr.bf16.gmra.mxu0 %v290
    %v1565 = vpop.f32.mrf.mxu0
    %v1566 = vadd.f32 %v1053, %v1565
    %v1567 = vpop.f32.mrf.mxu0
    %v1568 = vadd.f32 %v1055, %v1567
    %v1569 = vpop.f32.mrf.mxu0
    %v1570 = vadd.f32 %v1057, %v1569
    %v1571 = vpop.f32.mrf.mxu0
    %v1572 = vadd.f32 %v1059, %v1571
    %1573 = vdwg.mxu0
    %v1575 = vlaneseq
    %v1576 = vshrl.u32 %v1575, 7
    %v1577 = vsub.s32 0, %v1576
    %v1578 = vrot.slane %v95, %v1577
    %v1579 = vlaneseq
    %v1580 = vshrl.u32 %v1579, 7
    %v1581 = vsub.s32 1, %v1580
    %v1582 = vrot.slane %v95, %v1581
    %v1585 = vadd.f32 %v1256, %v1578
    %v1586 = vadd.f32 %v1258, %v1582
    %v1587 = vadd.f32 %v1260, %v1578
    %v1588 = vadd.f32 %v1262, %v1582
    %v1589 = vadd.f32 %v1266, %v1578
    %v1590 = vadd.f32 %v1268, %v1582
    %v1591 = vadd.f32 %v1270, %v1578
    %v1592 = vadd.f32 %v1272, %v1582
    %v1593 = vadd.f32 %v1276, %v1578
    %v1594 = vadd.f32 %v1278, %v1582
    %v1595 = vadd.f32 %v1280, %v1578
    %v1596 = vadd.f32 %v1282, %v1582
    %v1597 = vadd.f32 %v1286, %v1578
    %v1598 = vadd.f32 %v1288, %v1582
    %v1599 = vadd.f32 %v1290, %v1578
    %v1600 = vadd.f32 %v1292, %v1582
    %v1601 = vadd.f32 %v1296, %v1578
    %v1602 = vadd.f32 %v1298, %v1582
    %v1603 = vadd.f32 %v1300, %v1578
    %v1604 = vadd.f32 %v1302, %v1582
    %v1605 = vadd.f32 %v1306, %v1578
    %v1606 = vadd.f32 %v1308, %v1582
    %v1607 = vadd.f32 %v1310, %v1578
    %v1608 = vadd.f32 %v1312, %v1582
    %v1609 = vadd.f32 %v1316, %v1578
    %v1610 = vadd.f32 %v1318, %v1582
    %v1611 = vadd.f32 %v1320, %v1578
    %v1612 = vadd.f32 %v1322, %v1582
    %v1613 = vadd.f32 %v1326, %v1578
    %v1614 = vadd.f32 %v1328, %v1582
    %v1615 = vadd.f32 %v1330, %v1578
    %v1616 = vadd.f32 %v1332, %v1582
    %v1617 = vadd.f32 %v1336, %v1578
    %v1618 = vadd.f32 %v1338, %v1582
    %v1619 = vadd.f32 %v1340, %v1578
    %v1620 = vadd.f32 %v1342, %v1582
    %v1621 = vadd.f32 %v1346, %v1578
    %v1622 = vadd.f32 %v1348, %v1582
    %v1623 = vadd.f32 %v1350, %v1578
    %v1624 = vadd.f32 %v1352, %v1582
    %v1625 = vadd.f32 %v1356, %v1578
    %v1626 = vadd.f32 %v1358, %v1582
    %v1627 = vadd.f32 %v1360, %v1578
    %v1628 = vadd.f32 %v1362, %v1582
    %v1629 = vadd.f32 %v1366, %v1578
    %v1630 = vadd.f32 %v1368, %v1582
    %v1631 = vadd.f32 %v1370, %v1578
    %v1632 = vadd.f32 %v1372, %v1582
    %v1633 = vadd.f32 %v1376, %v1578
    %v1634 = vadd.f32 %v1378, %v1582
    %v1635 = vadd.f32 %v1380, %v1578
    %v1636 = vadd.f32 %v1382, %v1582
    %v1637 = vadd.f32 %v1386, %v1578
    %v1638 = vadd.f32 %v1388, %v1582
    %v1639 = vadd.f32 %v1390, %v1578
    %v1640 = vadd.f32 %v1392, %v1582
    %v1641 = vadd.f32 %v1396, %v1578
    %v1642 = vadd.f32 %v1398, %v1582
    %v1643 = vadd.f32 %v1400, %v1578
    %v1644 = vadd.f32 %v1402, %v1582
    %v1645 = vadd.f32 %v1406, %v1578
    %v1646 = vadd.f32 %v1408, %v1582
    %v1647 = vadd.f32 %v1410, %v1578
    %v1648 = vadd.f32 %v1412, %v1582
    %v1649 = vadd.f32 %v1416, %v1578
    %v1650 = vadd.f32 %v1418, %v1582
    %v1651 = vadd.f32 %v1420, %v1578
    %v1652 = vadd.f32 %v1422, %v1582
    %v1653 = vadd.f32 %v1426, %v1578
    %v1654 = vadd.f32 %v1428, %v1582
    %v1655 = vadd.f32 %v1430, %v1578
    %v1656 = vadd.f32 %v1432, %v1582
    %v1657 = vadd.f32 %v1436, %v1578
    %v1658 = vadd.f32 %v1438, %v1582
    %v1659 = vadd.f32 %v1440, %v1578
    %v1660 = vadd.f32 %v1442, %v1582
    %v1661 = vadd.f32 %v1446, %v1578
    %v1662 = vadd.f32 %v1448, %v1582
    %v1663 = vadd.f32 %v1450, %v1578
    %v1664 = vadd.f32 %v1452, %v1582
    %v1665 = vadd.f32 %v1456, %v1578
    %v1666 = vadd.f32 %v1458, %v1582
    %v1667 = vadd.f32 %v1460, %v1578
    %v1668 = vadd.f32 %v1462, %v1582
    %v1669 = vadd.f32 %v1466, %v1578
    %v1670 = vadd.f32 %v1468, %v1582
    %v1671 = vadd.f32 %v1470, %v1578
    %v1672 = vadd.f32 %v1472, %v1582
    %v1673 = vadd.f32 %v1476, %v1578
    %v1674 = vadd.f32 %v1478, %v1582
    %v1675 = vadd.f32 %v1480, %v1578
    %v1676 = vadd.f32 %v1482, %v1582
    %v1677 = vadd.f32 %v1486, %v1578
    %v1678 = vadd.f32 %v1488, %v1582
    %v1679 = vadd.f32 %v1490, %v1578
    %v1680 = vadd.f32 %v1492, %v1582
    %v1681 = vadd.f32 %v1496, %v1578
    %v1682 = vadd.f32 %v1498, %v1582
    %v1683 = vadd.f32 %v1500, %v1578
    %v1684 = vadd.f32 %v1502, %v1582
    %v1685 = vadd.f32 %v1506, %v1578
    %v1686 = vadd.f32 %v1508, %v1582
    %v1687 = vadd.f32 %v1510, %v1578
    %v1688 = vadd.f32 %v1512, %v1582
    %v1689 = vadd.f32 %v1516, %v1578
    %v1690 = vadd.f32 %v1518, %v1582
    %v1691 = vadd.f32 %v1520, %v1578
    %v1692 = vadd.f32 %v1522, %v1582
    %v1693 = vadd.f32 %v1526, %v1578
    %v1694 = vadd.f32 %v1528, %v1582
    %v1695 = vadd.f32 %v1530, %v1578
    %v1696 = vadd.f32 %v1532, %v1582
    %v1697 = vadd.f32 %v1536, %v1578
    %v1698 = vadd.f32 %v1538, %v1582
    %v1699 = vadd.f32 %v1540, %v1578
    %v1700 = vadd.f32 %v1542, %v1582
    %v1701 = vadd.f32 %v1546, %v1578
    %v1702 = vadd.f32 %v1548, %v1582
    %v1703 = vadd.f32 %v1550, %v1578
    %v1704 = vadd.f32 %v1552, %v1582
    %v1705 = vadd.f32 %v1556, %v1578
    %v1706 = vadd.f32 %v1558, %v1582
    %v1707 = vadd.f32 %v1560, %v1578
    %v1708 = vadd.f32 %v1562, %v1582
    %v1709 = vadd.f32 %v1566, %v1578
    %v1710 = vadd.f32 %v1568, %v1582
    %v1711 = vadd.f32 %v1570, %v1578
    %v1712 = vadd.f32 %v1572, %v1582
    %vm1713 = vcmp.gt.f32.partialorder %v1585, 0.0
    %vm1714 = vcmp.gt.f32.partialorder %v1586, 0.0
    %vm1715 = vcmp.gt.f32.partialorder %v1587, 0.0
    %vm1716 = vcmp.gt.f32.partialorder %v1588, 0.0
    %vm1717 = vcmp.gt.f32.partialorder %v1589, 0.0
    %vm1718 = vcmp.gt.f32.partialorder %v1590, 0.0
    %vm1719 = vcmp.gt.f32.partialorder %v1591, 0.0
    %vm1720 = vcmp.gt.f32.partialorder %v1592, 0.0
    %vm1721 = vcmp.gt.f32.partialorder %v1593, 0.0
    %vm1722 = vcmp.gt.f32.partialorder %v1594, 0.0
    %vm1723 = vcmp.gt.f32.partialorder %v1595, 0.0
    %vm1724 = vcmp.gt.f32.partialorder %v1596, 0.0
    %vm1725 = vcmp.gt.f32.partialorder %v1597, 0.0
    %vm1726 = vcmp.gt.f32.partialorder %v1598, 0.0
    %vm1727 = vcmp.gt.f32.partialorder %v1599, 0.0
    %vm1728 = vcmp.gt.f32.partialorder %v1600, 0.0
    %vm1729 = vcmp.gt.f32.partialorder %v1601, 0.0
    %vm1730 = vcmp.gt.f32.partialorder %v1602, 0.0
    %vm1731 = vcmp.gt.f32.partialorder %v1603, 0.0
    %vm1732 = vcmp.gt.f32.partialorder %v1604, 0.0
    %vm1733 = vcmp.gt.f32.partialorder %v1605, 0.0
    %vm1734 = vcmp.gt.f32.partialorder %v1606, 0.0
    %vm1735 = vcmp.gt.f32.partialorder %v1607, 0.0
    %vm1736 = vcmp.gt.f32.partialorder %v1608, 0.0
    %vm1737 = vcmp.gt.f32.partialorder %v1609, 0.0
    %vm1738 = vcmp.gt.f32.partialorder %v1610, 0.0
    %vm1739 = vcmp.gt.f32.partialorder %v1611, 0.0
    %vm1740 = vcmp.gt.f32.partialorder %v1612, 0.0
    %vm1741 = vcmp.gt.f32.partialorder %v1613, 0.0
    %vm1742 = vcmp.gt.f32.partialorder %v1614, 0.0
    %vm1743 = vcmp.gt.f32.partialorder %v1615, 0.0
    %vm1744 = vcmp.gt.f32.partialorder %v1616, 0.0
    %vm1745 = vcmp.gt.f32.partialorder %v1617, 0.0
    %vm1746 = vcmp.gt.f32.partialorder %v1618, 0.0
    %vm1747 = vcmp.gt.f32.partialorder %v1619, 0.0
    %vm1748 = vcmp.gt.f32.partialorder %v1620, 0.0
    %vm1749 = vcmp.gt.f32.partialorder %v1621, 0.0
    %vm1750 = vcmp.gt.f32.partialorder %v1622, 0.0
    %vm1751 = vcmp.gt.f32.partialorder %v1623, 0.0
    %vm1752 = vcmp.gt.f32.partialorder %v1624, 0.0
    %vm1753 = vcmp.gt.f32.partialorder %v1625, 0.0
    %vm1754 = vcmp.gt.f32.partialorder %v1626, 0.0
    %vm1755 = vcmp.gt.f32.partialorder %v1627, 0.0
    %vm1756 = vcmp.gt.f32.partialorder %v1628, 0.0
    %vm1757 = vcmp.gt.f32.partialorder %v1629, 0.0
    %vm1758 = vcmp.gt.f32.partialorder %v1630, 0.0
    %vm1759 = vcmp.gt.f32.partialorder %v1631, 0.0
    %vm1760 = vcmp.gt.f32.partialorder %v1632, 0.0
    %vm1761 = vcmp.gt.f32.partialorder %v1633, 0.0
    %vm1762 = vcmp.gt.f32.partialorder %v1634, 0.0
    %vm1763 = vcmp.gt.f32.partialorder %v1635, 0.0
    %vm1764 = vcmp.gt.f32.partialorder %v1636, 0.0
    %vm1765 = vcmp.gt.f32.partialorder %v1637, 0.0
    %vm1766 = vcmp.gt.f32.partialorder %v1638, 0.0
    %vm1767 = vcmp.gt.f32.partialorder %v1639, 0.0
    %vm1768 = vcmp.gt.f32.partialorder %v1640, 0.0
    %vm1769 = vcmp.gt.f32.partialorder %v1641, 0.0
    %vm1770 = vcmp.gt.f32.partialorder %v1642, 0.0
    %vm1771 = vcmp.gt.f32.partialorder %v1643, 0.0
    %vm1772 = vcmp.gt.f32.partialorder %v1644, 0.0
    %vm1773 = vcmp.gt.f32.partialorder %v1645, 0.0
    %vm1774 = vcmp.gt.f32.partialorder %v1646, 0.0
    %vm1775 = vcmp.gt.f32.partialorder %v1647, 0.0
    %vm1776 = vcmp.gt.f32.partialorder %v1648, 0.0
    %vm1777 = vcmp.gt.f32.partialorder %v1649, 0.0
    %vm1778 = vcmp.gt.f32.partialorder %v1650, 0.0
    %vm1779 = vcmp.gt.f32.partialorder %v1651, 0.0
    %vm1780 = vcmp.gt.f32.partialorder %v1652, 0.0
    %vm1781 = vcmp.gt.f32.partialorder %v1653, 0.0
    %vm1782 = vcmp.gt.f32.partialorder %v1654, 0.0
    %vm1783 = vcmp.gt.f32.partialorder %v1655, 0.0
    %vm1784 = vcmp.gt.f32.partialorder %v1656, 0.0
    %vm1785 = vcmp.gt.f32.partialorder %v1657, 0.0
    %vm1786 = vcmp.gt.f32.partialorder %v1658, 0.0
    %vm1787 = vcmp.gt.f32.partialorder %v1659, 0.0
    %vm1788 = vcmp.gt.f32.partialorder %v1660, 0.0
    %vm1789 = vcmp.gt.f32.partialorder %v1661, 0.0
    %vm1790 = vcmp.gt.f32.partialorder %v1662, 0.0
    %vm1791 = vcmp.gt.f32.partialorder %v1663, 0.0
    %vm1792 = vcmp.gt.f32.partialorder %v1664, 0.0
    %vm1793 = vcmp.gt.f32.partialorder %v1665, 0.0
    %vm1794 = vcmp.gt.f32.partialorder %v1666, 0.0
    %vm1795 = vcmp.gt.f32.partialorder %v1667, 0.0
    %vm1796 = vcmp.gt.f32.partialorder %v1668, 0.0
    %vm1797 = vcmp.gt.f32.partialorder %v1669, 0.0
    %vm1798 = vcmp.gt.f32.partialorder %v1670, 0.0
    %vm1799 = vcmp.gt.f32.partialorder %v1671, 0.0
    %vm1800 = vcmp.gt.f32.partialorder %v1672, 0.0
    %vm1801 = vcmp.gt.f32.partialorder %v1673, 0.0
    %vm1802 = vcmp.gt.f32.partialorder %v1674, 0.0
    %vm1803 = vcmp.gt.f32.partialorder %v1675, 0.0
    %vm1804 = vcmp.gt.f32.partialorder %v1676, 0.0
    %vm1805 = vcmp.gt.f32.partialorder %v1677, 0.0
    %vm1806 = vcmp.gt.f32.partialorder %v1678, 0.0
    %vm1807 = vcmp.gt.f32.partialorder %v1679, 0.0
    %vm1808 = vcmp.gt.f32.partialorder %v1680, 0.0
    %vm1809 = vcmp.gt.f32.partialorder %v1681, 0.0
    %vm1810 = vcmp.gt.f32.partialorder %v1682, 0.0
    %vm1811 = vcmp.gt.f32.partialorder %v1683, 0.0
    %vm1812 = vcmp.gt.f32.partialorder %v1684, 0.0
    %vm1813 = vcmp.gt.f32.partialorder %v1685, 0.0
    %vm1814 = vcmp.gt.f32.partialorder %v1686, 0.0
    %vm1815 = vcmp.gt.f32.partialorder %v1687, 0.0
    %vm1816 = vcmp.gt.f32.partialorder %v1688, 0.0
    %vm1817 = vcmp.gt.f32.partialorder %v1689, 0.0
    %vm1818 = vcmp.gt.f32.partialorder %v1690, 0.0
    %vm1819 = vcmp.gt.f32.partialorder %v1691, 0.0
    %vm1820 = vcmp.gt.f32.partialorder %v1692, 0.0
    %vm1821 = vcmp.gt.f32.partialorder %v1693, 0.0
    %vm1822 = vcmp.gt.f32.partialorder %v1694, 0.0
    %vm1823 = vcmp.gt.f32.partialorder %v1695, 0.0
    %vm1824 = vcmp.gt.f32.partialorder %v1696, 0.0
    %vm1825 = vcmp.gt.f32.partialorder %v1697, 0.0
    %vm1826 = vcmp.gt.f32.partialorder %v1698, 0.0
    %vm1827 = vcmp.gt.f32.partialorder %v1699, 0.0
    %vm1828 = vcmp.gt.f32.partialorder %v1700, 0.0
    %vm1829 = vcmp.gt.f32.partialorder %v1701, 0.0
    %vm1830 = vcmp.gt.f32.partialorder %v1702, 0.0
    %vm1831 = vcmp.gt.f32.partialorder %v1703, 0.0
    %vm1832 = vcmp.gt.f32.partialorder %v1704, 0.0
    %vm1833 = vcmp.gt.f32.partialorder %v1705, 0.0
    %vm1834 = vcmp.gt.f32.partialorder %v1706, 0.0
    %vm1835 = vcmp.gt.f32.partialorder %v1707, 0.0
    %vm1836 = vcmp.gt.f32.partialorder %v1708, 0.0
    %vm1837 = vcmp.gt.f32.partialorder %v1709, 0.0
    %vm1838 = vcmp.gt.f32.partialorder %v1710, 0.0
    %vm1839 = vcmp.gt.f32.partialorder %v1711, 0.0
    %vm1840 = vcmp.gt.f32.partialorder %v1712, 0.0
    %v1841 = vmul.f32 %v1585, 1.442695
    %v1842 = vpow.pop %v1841
    %v1843 = vmul.f32 %v1586, 1.442695
    %v1844 = vpow.pop %v1843
    %v1845 = vmul.f32 %v1587, 1.442695
    %v1846 = vpow.pop %v1845
    %v1847 = vmul.f32 %v1588, 1.442695
    %v1848 = vpow.pop %v1847
    %v1849 = vmul.f32 %v1589, 1.442695
    %v1850 = vpow.pop %v1849
    %v1851 = vmul.f32 %v1590, 1.442695
    %v1852 = vpow.pop %v1851
    %v1853 = vmul.f32 %v1591, 1.442695
    %v1854 = vpow.pop %v1853
    %v1855 = vmul.f32 %v1592, 1.442695
    %v1856 = vpow.pop %v1855
    %v1857 = vmul.f32 %v1593, 1.442695
    %v1858 = vpow.pop %v1857
    %v1859 = vmul.f32 %v1594, 1.442695
    %v1860 = vpow.pop %v1859
    %v1861 = vmul.f32 %v1595, 1.442695
    %v1862 = vpow.pop %v1861
    %v1863 = vmul.f32 %v1596, 1.442695
    %v1864 = vpow.pop %v1863
    %v1865 = vmul.f32 %v1597, 1.442695
    %v1866 = vpow.pop %v1865
    %v1867 = vmul.f32 %v1598, 1.442695
    %v1868 = vpow.pop %v1867
    %v1869 = vmul.f32 %v1599, 1.442695
    %v1870 = vpow.pop %v1869
    %v1871 = vmul.f32 %v1600, 1.442695
    %v1872 = vpow.pop %v1871
    %v1873 = vmul.f32 %v1601, 1.442695
    %v1874 = vpow.pop %v1873
    %v1875 = vmul.f32 %v1602, 1.442695
    %v1876 = vpow.pop %v1875
    %v1877 = vmul.f32 %v1603, 1.442695
    %v1878 = vpow.pop %v1877
    %v1879 = vmul.f32 %v1604, 1.442695
    %v1880 = vpow.pop %v1879
    %v1881 = vmul.f32 %v1605, 1.442695
    %v1882 = vpow.pop %v1881
    %v1883 = vmul.f32 %v1606, 1.442695
    %v1884 = vpow.pop %v1883
    %v1885 = vmul.f32 %v1607, 1.442695
    %v1886 = vpow.pop %v1885
    %v1887 = vmul.f32 %v1608, 1.442695
    %v1888 = vpow.pop %v1887
    %v1889 = vmul.f32 %v1609, 1.442695
    %v1890 = vpow.pop %v1889
    %v1891 = vmul.f32 %v1610, 1.442695
    %v1892 = vpow.pop %v1891
    %v1893 = vmul.f32 %v1611, 1.442695
    %v1894 = vpow.pop %v1893
    %v1895 = vmul.f32 %v1612, 1.442695
    %v1896 = vpow.pop %v1895
    %v1897 = vmul.f32 %v1613, 1.442695
    %v1898 = vpow.pop %v1897
    %v1899 = vmul.f32 %v1614, 1.442695
    %v1900 = vpow.pop %v1899
    %v1901 = vmul.f32 %v1615, 1.442695
    %v1902 = vpow.pop %v1901
    %v1903 = vmul.f32 %v1616, 1.442695
    %v1904 = vpow.pop %v1903
    %v1905 = vmul.f32 %v1617, 1.442695
    %v1906 = vpow.pop %v1905
    %v1907 = vmul.f32 %v1618, 1.442695
    %v1908 = vpow.pop %v1907
    %v1909 = vmul.f32 %v1619, 1.442695
    %v1910 = vpow.pop %v1909
    %v1911 = vmul.f32 %v1620, 1.442695
    %v1912 = vpow.pop %v1911
    %v1913 = vmul.f32 %v1621, 1.442695
    %v1914 = vpow.pop %v1913
    %v1915 = vmul.f32 %v1622, 1.442695
    %v1916 = vpow.pop %v1915
    %v1917 = vmul.f32 %v1623, 1.442695
    %v1918 = vpow.pop %v1917
    %v1919 = vmul.f32 %v1624, 1.442695
    %v1920 = vpow.pop %v1919
    %v1921 = vmul.f32 %v1625, 1.442695
    %v1922 = vpow.pop %v1921
    %v1923 = vmul.f32 %v1626, 1.442695
    %v1924 = vpow.pop %v1923
    %v1925 = vmul.f32 %v1627, 1.442695
    %v1926 = vpow.pop %v1925
    %v1927 = vmul.f32 %v1628, 1.442695
    %v1928 = vpow.pop %v1927
    %v1929 = vmul.f32 %v1629, 1.442695
    %v1930 = vpow.pop %v1929
    %v1931 = vmul.f32 %v1630, 1.442695
    %v1932 = vpow.pop %v1931
    %v1933 = vmul.f32 %v1631, 1.442695
    %v1934 = vpow.pop %v1933
    %v1935 = vmul.f32 %v1632, 1.442695
    %v1936 = vpow.pop %v1935
    %v1937 = vmul.f32 %v1633, 1.442695
    %v1938 = vpow.pop %v1937
    %v1939 = vmul.f32 %v1634, 1.442695
    %v1940 = vpow.pop %v1939
    %v1941 = vmul.f32 %v1635, 1.442695
    %v1942 = vpow.pop %v1941
    %v1943 = vmul.f32 %v1636, 1.442695
    %v1944 = vpow.pop %v1943
    %v1945 = vmul.f32 %v1637, 1.442695
    %v1946 = vpow.pop %v1945
    %v1947 = vmul.f32 %v1638, 1.442695
    %v1948 = vpow.pop %v1947
    %v1949 = vmul.f32 %v1639, 1.442695
    %v1950 = vpow.pop %v1949
    %v1951 = vmul.f32 %v1640, 1.442695
    %v1952 = vpow.pop %v1951
    %v1953 = vmul.f32 %v1641, 1.442695
    %v1954 = vpow.pop %v1953
    %v1955 = vmul.f32 %v1642, 1.442695
    %v1956 = vpow.pop %v1955
    %v1957 = vmul.f32 %v1643, 1.442695
    %v1958 = vpow.pop %v1957
    %v1959 = vmul.f32 %v1644, 1.442695
    %v1960 = vpow.pop %v1959
    %v1961 = vmul.f32 %v1645, 1.442695
    %v1962 = vpow.pop %v1961
    %v1963 = vmul.f32 %v1646, 1.442695
    %v1964 = vpow.pop %v1963
    %v1965 = vmul.f32 %v1647, 1.442695
    %v1966 = vpow.pop %v1965
    %v1967 = vmul.f32 %v1648, 1.442695
    %v1968 = vpow.pop %v1967
    %v1969 = vmul.f32 %v1649, 1.442695
    %v1970 = vpow.pop %v1969
    %v1971 = vmul.f32 %v1650, 1.442695
    %v1972 = vpow.pop %v1971
    %v1973 = vmul.f32 %v1651, 1.442695
    %v1974 = vpow.pop %v1973
    %v1975 = vmul.f32 %v1652, 1.442695
    %v1976 = vpow.pop %v1975
    %v1977 = vmul.f32 %v1653, 1.442695
    %v1978 = vpow.pop %v1977
    %v1979 = vmul.f32 %v1654, 1.442695
    %v1980 = vpow.pop %v1979
    %v1981 = vmul.f32 %v1655, 1.442695
    %v1982 = vpow.pop %v1981
    %v1983 = vmul.f32 %v1656, 1.442695
    %v1984 = vpow.pop %v1983
    %v1985 = vmul.f32 %v1657, 1.442695
    %v1986 = vpow.pop %v1985
    %v1987 = vmul.f32 %v1658, 1.442695
    %v1988 = vpow.pop %v1987
    %v1989 = vmul.f32 %v1659, 1.442695
    %v1990 = vpow.pop %v1989
    %v1991 = vmul.f32 %v1660, 1.442695
    %v1992 = vpow.pop %v1991
    %v1993 = vmul.f32 %v1661, 1.442695
    %v1994 = vpow.pop %v1993
    %v1995 = vmul.f32 %v1662, 1.442695
    %v1996 = vpow.pop %v1995
    %v1997 = vmul.f32 %v1663, 1.442695
    %v1998 = vpow.pop %v1997
    %v1999 = vmul.f32 %v1664, 1.442695
    %v2000 = vpow.pop %v1999
    %v2001 = vmul.f32 %v1665, 1.442695
    %v2002 = vpow.pop %v2001
    %v2003 = vmul.f32 %v1666, 1.442695
    %v2004 = vpow.pop %v2003
    %v2005 = vmul.f32 %v1667, 1.442695
    %v2006 = vpow.pop %v2005
    %v2007 = vmul.f32 %v1668, 1.442695
    %v2008 = vpow.pop %v2007
    %v2009 = vmul.f32 %v1669, 1.442695
    %v2010 = vpow.pop %v2009
    %v2011 = vmul.f32 %v1670, 1.442695
    %v2012 = vpow.pop %v2011
    %v2013 = vmul.f32 %v1671, 1.442695
    %v2014 = vpow.pop %v2013
    %v2015 = vmul.f32 %v1672, 1.442695
    %v2016 = vpow.pop %v2015
    %v2017 = vmul.f32 %v1673, 1.442695
    %v2018 = vpow.pop %v2017
    %v2019 = vmul.f32 %v1674, 1.442695
    %v2020 = vpow.pop %v2019
    %v2021 = vmul.f32 %v1675, 1.442695
    %v2022 = vpow.pop %v2021
    %v2023 = vmul.f32 %v1676, 1.442695
    %v2024 = vpow.pop %v2023
    %v2025 = vmul.f32 %v1677, 1.442695
    %v2026 = vpow.pop %v2025
    %v2027 = vmul.f32 %v1678, 1.442695
    %v2028 = vpow.pop %v2027
    %v2029 = vmul.f32 %v1679, 1.442695
    %v2030 = vpow.pop %v2029
    %v2031 = vmul.f32 %v1680, 1.442695
    %v2032 = vpow.pop %v2031
    %v2033 = vmul.f32 %v1681, 1.442695
    %v2034 = vpow.pop %v2033
    %v2035 = vmul.f32 %v1682, 1.442695
    %v2036 = vpow.pop %v2035
    %v2037 = vmul.f32 %v1683, 1.442695
    %v2038 = vpow.pop %v2037
    %v2039 = vmul.f32 %v1684, 1.442695
    %v2040 = vpow.pop %v2039
    %v2041 = vmul.f32 %v1685, 1.442695
    %v2042 = vpow.pop %v2041
    %v2043 = vmul.f32 %v1686, 1.442695
    %v2044 = vpow.pop %v2043
    %v2045 = vmul.f32 %v1687, 1.442695
    %v2046 = vpow.pop %v2045
    %v2047 = vmul.f32 %v1688, 1.442695
    %v2048 = vpow.pop %v2047
    %v2049 = vmul.f32 %v1689, 1.442695
    %v2050 = vpow.pop %v2049
    %v2051 = vmul.f32 %v1690, 1.442695
    %v2052 = vpow.pop %v2051
    %v2053 = vmul.f32 %v1691, 1.442695
    %v2054 = vpow.pop %v2053
    %v2055 = vmul.f32 %v1692, 1.442695
    %v2056 = vpow.pop %v2055
    %v2057 = vmul.f32 %v1693, 1.442695
    %v2058 = vpow.pop %v2057
    %v2059 = vmul.f32 %v1694, 1.442695
    %v2060 = vpow.pop %v2059
    %v2061 = vmul.f32 %v1695, 1.442695
    %v2062 = vpow.pop %v2061
    %v2063 = vmul.f32 %v1696, 1.442695
    %v2064 = vpow.pop %v2063
    %v2065 = vmul.f32 %v1697, 1.442695
    %v2066 = vpow.pop %v2065
    %v2067 = vmul.f32 %v1698, 1.442695
    %v2068 = vpow.pop %v2067
    %v2069 = vmul.f32 %v1699, 1.442695
    %v2070 = vpow.pop %v2069
    %v2071 = vmul.f32 %v1700, 1.442695
    %v2072 = vpow.pop %v2071
    %v2073 = vmul.f32 %v1701, 1.442695
    %v2074 = vpow.pop %v2073
    %v2075 = vmul.f32 %v1702, 1.442695
    %v2076 = vpow.pop %v2075
    %v2077 = vmul.f32 %v1703, 1.442695
    %v2078 = vpow.pop %v2077
    %v2079 = vmul.f32 %v1704, 1.442695
    %v2080 = vpow.pop %v2079
    %v2081 = vmul.f32 %v1705, 1.442695
    %v2082 = vpow.pop %v2081
    %v2083 = vmul.f32 %v1706, 1.442695
    %v2084 = vpow.pop %v2083
    %v2085 = vmul.f32 %v1707, 1.442695
    %v2086 = vpow.pop %v2085
    %v2087 = vmul.f32 %v1708, 1.442695
    %v2088 = vpow.pop %v2087
    %v2089 = vmul.f32 %v1709, 1.442695
    %v2090 = vpow.pop %v2089
    %v2091 = vmul.f32 %v1710, 1.442695
    %v2092 = vpow.pop %v2091
    %v2093 = vmul.f32 %v1711, 1.442695
    %v2094 = vpow.pop %v2093
    %v2095 = vmul.f32 %v1712, 1.442695
    %v2096 = vpow.pop %v2095
    %v2097 = vsub.f32 %v1842, 1.0
    %v2098 = vsub.f32 %v1844, 1.0
    %v2099 = vsub.f32 %v1846, 1.0
    %v2100 = vsub.f32 %v1848, 1.0
    %v2101 = vsub.f32 %v1850, 1.0
    %v2102 = vsub.f32 %v1852, 1.0
    %v2103 = vsub.f32 %v1854, 1.0
    %v2104 = vsub.f32 %v1856, 1.0
    %v2105 = vsub.f32 %v1858, 1.0
    %v2106 = vsub.f32 %v1860, 1.0
    %v2107 = vsub.f32 %v1862, 1.0
    %v2108 = vsub.f32 %v1864, 1.0
    %v2109 = vsub.f32 %v1866, 1.0
    %v2110 = vsub.f32 %v1868, 1.0
    %v2111 = vsub.f32 %v1870, 1.0
    %v2112 = vsub.f32 %v1872, 1.0
    %v2113 = vsub.f32 %v1874, 1.0
    %v2114 = vsub.f32 %v1876, 1.0
    %v2115 = vsub.f32 %v1878, 1.0
    %v2116 = vsub.f32 %v1880, 1.0
    %v2117 = vsub.f32 %v1882, 1.0
    %v2118 = vsub.f32 %v1884, 1.0
    %v2119 = vsub.f32 %v1886, 1.0
    %v2120 = vsub.f32 %v1888, 1.0
    %v2121 = vsub.f32 %v1890, 1.0
    %v2122 = vsub.f32 %v1892, 1.0
    %v2123 = vsub.f32 %v1894, 1.0
    %v2124 = vsub.f32 %v1896, 1.0
    %v2125 = vsub.f32 %v1898, 1.0
    %v2126 = vsub.f32 %v1900, 1.0
    %v2127 = vsub.f32 %v1902, 1.0
    %v2128 = vsub.f32 %v1904, 1.0
    %v2129 = vsub.f32 %v1906, 1.0
    %v2130 = vsub.f32 %v1908, 1.0
    %v2131 = vsub.f32 %v1910, 1.0
    %v2132 = vsub.f32 %v1912, 1.0
    %v2133 = vsub.f32 %v1914, 1.0
    %v2134 = vsub.f32 %v1916, 1.0
    %v2135 = vsub.f32 %v1918, 1.0
    %v2136 = vsub.f32 %v1920, 1.0
    %v2137 = vsub.f32 %v1922, 1.0
    %v2138 = vsub.f32 %v1924, 1.0
    %v2139 = vsub.f32 %v1926, 1.0
    %v2140 = vsub.f32 %v1928, 1.0
    %v2141 = vsub.f32 %v1930, 1.0
    %v2142 = vsub.f32 %v1932, 1.0
    %v2143 = vsub.f32 %v1934, 1.0
    %v2144 = vsub.f32 %v1936, 1.0
    %v2145 = vsub.f32 %v1938, 1.0
    %v2146 = vsub.f32 %v1940, 1.0
    %v2147 = vsub.f32 %v1942, 1.0
    %v2148 = vsub.f32 %v1944, 1.0
    %v2149 = vsub.f32 %v1946, 1.0
    %v2150 = vsub.f32 %v1948, 1.0
    %v2151 = vsub.f32 %v1950, 1.0
    %v2152 = vsub.f32 %v1952, 1.0
    %v2153 = vsub.f32 %v1954, 1.0
    %v2154 = vsub.f32 %v1956, 1.0
    %v2155 = vsub.f32 %v1958, 1.0
    %v2156 = vsub.f32 %v1960, 1.0
    %v2157 = vsub.f32 %v1962, 1.0
    %v2158 = vsub.f32 %v1964, 1.0
    %v2159 = vsub.f32 %v1966, 1.0
    %v2160 = vsub.f32 %v1968, 1.0
    %v2161 = vsub.f32 %v1970, 1.0
    %v2162 = vsub.f32 %v1972, 1.0
    %v2163 = vsub.f32 %v1974, 1.0
    %v2164 = vsub.f32 %v1976, 1.0
    %v2165 = vsub.f32 %v1978, 1.0
    %v2166 = vsub.f32 %v1980, 1.0
    %v2167 = vsub.f32 %v1982, 1.0
    %v2168 = vsub.f32 %v1984, 1.0
    %v2169 = vsub.f32 %v1986, 1.0
    %v2170 = vsub.f32 %v1988, 1.0
    %v2171 = vsub.f32 %v1990, 1.0
    %v2172 = vsub.f32 %v1992, 1.0
    %v2173 = vsub.f32 %v1994, 1.0
    %v2174 = vsub.f32 %v1996, 1.0
    %v2175 = vsub.f32 %v1998, 1.0
    %v2176 = vsub.f32 %v2000, 1.0
    %v2177 = vsub.f32 %v2002, 1.0
    %v2178 = vsub.f32 %v2004, 1.0
    %v2179 = vsub.f32 %v2006, 1.0
    %v2180 = vsub.f32 %v2008, 1.0
    %v2181 = vsub.f32 %v2010, 1.0
    %v2182 = vsub.f32 %v2012, 1.0
    %v2183 = vsub.f32 %v2014, 1.0
    %v2184 = vsub.f32 %v2016, 1.0
    %v2185 = vsub.f32 %v2018, 1.0
    %v2186 = vsub.f32 %v2020, 1.0
    %v2187 = vsub.f32 %v2022, 1.0
    %v2188 = vsub.f32 %v2024, 1.0
    %v2189 = vsub.f32 %v2026, 1.0
    %v2190 = vsub.f32 %v2028, 1.0
    %v2191 = vsub.f32 %v2030, 1.0
    %v2192 = vsub.f32 %v2032, 1.0
    %v2193 = vsub.f32 %v2034, 1.0
    %v2194 = vsub.f32 %v2036, 1.0
    %v2195 = vsub.f32 %v2038, 1.0
    %v2196 = vsub.f32 %v2040, 1.0
    %v2197 = vsub.f32 %v2042, 1.0
    %v2198 = vsub.f32 %v2044, 1.0
    %v2199 = vsub.f32 %v2046, 1.0
    %v2200 = vsub.f32 %v2048, 1.0
    %v2201 = vsub.f32 %v2050, 1.0
    %v2202 = vsub.f32 %v2052, 1.0
    %v2203 = vsub.f32 %v2054, 1.0
    %v2204 = vsub.f32 %v2056, 1.0
    %v2205 = vsub.f32 %v2058, 1.0
    %v2206 = vsub.f32 %v2060, 1.0
    %v2207 = vsub.f32 %v2062, 1.0
    %v2208 = vsub.f32 %v2064, 1.0
    %v2209 = vsub.f32 %v2066, 1.0
    %v2210 = vsub.f32 %v2068, 1.0
    %v2211 = vsub.f32 %v2070, 1.0
    %v2212 = vsub.f32 %v2072, 1.0
    %v2213 = vsub.f32 %v2074, 1.0
    %v2214 = vsub.f32 %v2076, 1.0
    %v2215 = vsub.f32 %v2078, 1.0
    %v2216 = vsub.f32 %v2080, 1.0
    %v2217 = vsub.f32 %v2082, 1.0
    %v2218 = vsub.f32 %v2084, 1.0
    %v2219 = vsub.f32 %v2086, 1.0
    %v2220 = vsub.f32 %v2088, 1.0
    %v2221 = vsub.f32 %v2090, 1.0
    %v2222 = vsub.f32 %v2092, 1.0
    %v2223 = vsub.f32 %v2094, 1.0
    %v2224 = vsub.f32 %v2096, 1.0
    %v2225 = vsel %vm1713, %v1585, %v2097
    %v2226 = vsel %vm1714, %v1586, %v2098
    %v2227 = vsel %vm1715, %v1587, %v2099
    %v2228 = vsel %vm1716, %v1588, %v2100
    %v2229 = vsel %vm1717, %v1589, %v2101
    %v2230 = vsel %vm1718, %v1590, %v2102
    %v2231 = vsel %vm1719, %v1591, %v2103
    %v2232 = vsel %vm1720, %v1592, %v2104
    %v2233 = vsel %vm1721, %v1593, %v2105
    %v2234 = vsel %vm1722, %v1594, %v2106
    %v2235 = vsel %vm1723, %v1595, %v2107
    %v2236 = vsel %vm1724, %v1596, %v2108
    %v2237 = vsel %vm1725, %v1597, %v2109
    %v2238 = vsel %vm1726, %v1598, %v2110
    %v2239 = vsel %vm1727, %v1599, %v2111
    %v2240 = vsel %vm1728, %v1600, %v2112
    %v2241 = vsel %vm1729, %v1601, %v2113
    %v2242 = vsel %vm1730, %v1602, %v2114
    %v2243 = vsel %vm1731, %v1603, %v2115
    %v2244 = vsel %vm1732, %v1604, %v2116
    %v2245 = vsel %vm1733, %v1605, %v2117
    %v2246 = vsel %vm1734, %v1606, %v2118
    %v2247 = vsel %vm1735, %v1607, %v2119
    %v2248 = vsel %vm1736, %v1608, %v2120
    %v2249 = vsel %vm1737, %v1609, %v2121
    %v2250 = vsel %vm1738, %v1610, %v2122
    %v2251 = vsel %vm1739, %v1611, %v2123
    %v2252 = vsel %vm1740, %v1612, %v2124
    %v2253 = vsel %vm1741, %v1613, %v2125
    %v2254 = vsel %vm1742, %v1614, %v2126
    %v2255 = vsel %vm1743, %v1615, %v2127
    %v2256 = vsel %vm1744, %v1616, %v2128
    %v2257 = vsel %vm1745, %v1617, %v2129
    %v2258 = vsel %vm1746, %v1618, %v2130
    %v2259 = vsel %vm1747, %v1619, %v2131
    %v2260 = vsel %vm1748, %v1620, %v2132
    %v2261 = vsel %vm1749, %v1621, %v2133
    %v2262 = vsel %vm1750, %v1622, %v2134
    %v2263 = vsel %vm1751, %v1623, %v2135
    %v2264 = vsel %vm1752, %v1624, %v2136
    %v2265 = vsel %vm1753, %v1625, %v2137
    %v2266 = vsel %vm1754, %v1626, %v2138
    %v2267 = vsel %vm1755, %v1627, %v2139
    %v2268 = vsel %vm1756, %v1628, %v2140
    %v2269 = vsel %vm1757, %v1629, %v2141
    %v2270 = vsel %vm1758, %v1630, %v2142
    %v2271 = vsel %vm1759, %v1631, %v2143
    %v2272 = vsel %vm1760, %v1632, %v2144
    %v2273 = vsel %vm1761, %v1633, %v2145
    %v2274 = vsel %vm1762, %v1634, %v2146
    %v2275 = vsel %vm1763, %v1635, %v2147
    %v2276 = vsel %vm1764, %v1636, %v2148
    %v2277 = vsel %vm1765, %v1637, %v2149
    %v2278 = vsel %vm1766, %v1638, %v2150
    %v2279 = vsel %vm1767, %v1639, %v2151
    %v2280 = vsel %vm1768, %v1640, %v2152
    %v2281 = vsel %vm1769, %v1641, %v2153
    %v2282 = vsel %vm1770, %v1642, %v2154
    %v2283 = vsel %vm1771, %v1643, %v2155
    %v2284 = vsel %vm1772, %v1644, %v2156
    %v2285 = vsel %vm1773, %v1645, %v2157
    %v2286 = vsel %vm1774, %v1646, %v2158
    %v2287 = vsel %vm1775, %v1647, %v2159
    %v2288 = vsel %vm1776, %v1648, %v2160
    %v2289 = vsel %vm1777, %v1649, %v2161
    %v2290 = vsel %vm1778, %v1650, %v2162
    %v2291 = vsel %vm1779, %v1651, %v2163
    %v2292 = vsel %vm1780, %v1652, %v2164
    %v2293 = vsel %vm1781, %v1653, %v2165
    %v2294 = vsel %vm1782, %v1654, %v2166
    %v2295 = vsel %vm1783, %v1655, %v2167
    %v2296 = vsel %vm1784, %v1656, %v2168
    %v2297 = vsel %vm1785, %v1657, %v2169
    %v2298 = vsel %vm1786, %v1658, %v2170
    %v2299 = vsel %vm1787, %v1659, %v2171
    %v2300 = vsel %vm1788, %v1660, %v2172
    %v2301 = vsel %vm1789, %v1661, %v2173
    %v2302 = vsel %vm1790, %v1662, %v2174
    %v2303 = vsel %vm1791, %v1663, %v2175
    %v2304 = vsel %vm1792, %v1664, %v2176
    %v2305 = vsel %vm1793, %v1665, %v2177
    %v2306 = vsel %vm1794, %v1666, %v2178
    %v2307 = vsel %vm1795, %v1667, %v2179
    %v2308 = vsel %vm1796, %v1668, %v2180
    %v2309 = vsel %vm1797, %v1669, %v2181
    %v2310 = vsel %vm1798, %v1670, %v2182
    %v2311 = vsel %vm1799, %v1671, %v2183
    %v2312 = vsel %vm1800, %v1672, %v2184
    %v2313 = vsel %vm1801, %v1673, %v2185
    %v2314 = vsel %vm1802, %v1674, %v2186
    %v2315 = vsel %vm1803, %v1675, %v2187
    %v2316 = vsel %vm1804, %v1676, %v2188
    %v2317 = vsel %vm1805, %v1677, %v2189
    %v2318 = vsel %vm1806, %v1678, %v2190
    %v2319 = vsel %vm1807, %v1679, %v2191
    %v2320 = vsel %vm1808, %v1680, %v2192
    %v2321 = vsel %vm1809, %v1681, %v2193
    %v2322 = vsel %vm1810, %v1682, %v2194
    %v2323 = vsel %vm1811, %v1683, %v2195
    %v2324 = vsel %vm1812, %v1684, %v2196
    %v2325 = vsel %vm1813, %v1685, %v2197
    %v2326 = vsel %vm1814, %v1686, %v2198
    %v2327 = vsel %vm1815, %v1687, %v2199
    %v2328 = vsel %vm1816, %v1688, %v2200
    %v2329 = vsel %vm1817, %v1689, %v2201
    %v2330 = vsel %vm1818, %v1690, %v2202
    %v2331 = vsel %vm1819, %v1691, %v2203
    %v2332 = vsel %vm1820, %v1692, %v2204
    %v2333 = vsel %vm1821, %v1693, %v2205
    %v2334 = vsel %vm1822, %v1694, %v2206
    %v2335 = vsel %vm1823, %v1695, %v2207
    %v2336 = vsel %vm1824, %v1696, %v2208
    %v2337 = vsel %vm1825, %v1697, %v2209
    %v2338 = vsel %vm1826, %v1698, %v2210
    %v2339 = vsel %vm1827, %v1699, %v2211
    %v2340 = vsel %vm1828, %v1700, %v2212
    %v2341 = vsel %vm1829, %v1701, %v2213
    %v2342 = vsel %vm1830, %v1702, %v2214
    %v2343 = vsel %vm1831, %v1703, %v2215
    %v2344 = vsel %vm1832, %v1704, %v2216
    %v2345 = vsel %vm1833, %v1705, %v2217
    %v2346 = vsel %vm1834, %v1706, %v2218
    %v2347 = vsel %vm1835, %v1707, %v2219
    %v2348 = vsel %vm1836, %v1708, %v2220
    %v2349 = vsel %vm1837, %v1709, %v2221
    %v2350 = vsel %vm1838, %v1710, %v2222
    %v2351 = vsel %vm1839, %v1711, %v2223
    %v2352 = vsel %vm1840, %v1712, %v2224
    %v2353 = vpack.c.bf16 %v2227, %v2225
    %v2354 = vpack.c.bf16 %v2228, %v2226
    %v2355 = vpack.c.bf16 %v2231, %v2229
    %v2356 = vpack.c.bf16 %v2232, %v2230
    %v2357 = vpack.c.bf16 %v2235, %v2233
    %v2358 = vpack.c.bf16 %v2236, %v2234
    %v2359 = vpack.c.bf16 %v2239, %v2237
    %v2360 = vpack.c.bf16 %v2240, %v2238
    %v2361 = vpack.c.bf16 %v2243, %v2241
    %v2362 = vpack.c.bf16 %v2244, %v2242
    %v2363 = vpack.c.bf16 %v2247, %v2245
    %v2364 = vpack.c.bf16 %v2248, %v2246
    %v2365 = vpack.c.bf16 %v2251, %v2249
    %v2366 = vpack.c.bf16 %v2252, %v2250
    %v2367 = vpack.c.bf16 %v2255, %v2253
    %v2368 = vpack.c.bf16 %v2256, %v2254
    %v2369 = vpack.c.bf16 %v2259, %v2257
    %v2370 = vpack.c.bf16 %v2260, %v2258
    %v2371 = vpack.c.bf16 %v2263, %v2261
    %v2372 = vpack.c.bf16 %v2264, %v2262
    %v2373 = vpack.c.bf16 %v2267, %v2265
    %v2374 = vpack.c.bf16 %v2268, %v2266
    %v2375 = vpack.c.bf16 %v2271, %v2269
    %v2376 = vpack.c.bf16 %v2272, %v2270
    %v2377 = vpack.c.bf16 %v2275, %v2273
    %v2378 = vpack.c.bf16 %v2276, %v2274
    %v2379 = vpack.c.bf16 %v2279, %v2277
    %v2380 = vpack.c.bf16 %v2280, %v2278
    %v2381 = vpack.c.bf16 %v2283, %v2281
    %v2382 = vpack.c.bf16 %v2284, %v2282
    %v2383 = vpack.c.bf16 %v2287, %v2285
    %v2384 = vpack.c.bf16 %v2288, %v2286
    %v2385 = vpack.c.bf16 %v2291, %v2289
    %v2386 = vpack.c.bf16 %v2292, %v2290
    %v2387 = vpack.c.bf16 %v2295, %v2293
    %v2388 = vpack.c.bf16 %v2296, %v2294
    %v2389 = vpack.c.bf16 %v2299, %v2297
    %v2390 = vpack.c.bf16 %v2300, %v2298
    %v2391 = vpack.c.bf16 %v2303, %v2301
    %v2392 = vpack.c.bf16 %v2304, %v2302
    %v2393 = vpack.c.bf16 %v2307, %v2305
    %v2394 = vpack.c.bf16 %v2308, %v2306
    %v2395 = vpack.c.bf16 %v2311, %v2309
    %v2396 = vpack.c.bf16 %v2312, %v2310
    %v2397 = vpack.c.bf16 %v2315, %v2313
    %v2398 = vpack.c.bf16 %v2316, %v2314
    %v2399 = vpack.c.bf16 %v2319, %v2317
    %v2400 = vpack.c.bf16 %v2320, %v2318
    %v2401 = vpack.c.bf16 %v2323, %v2321
    %v2402 = vpack.c.bf16 %v2324, %v2322
    %v2403 = vpack.c.bf16 %v2327, %v2325
    %v2404 = vpack.c.bf16 %v2328, %v2326
    %v2405 = vpack.c.bf16 %v2331, %v2329
    %v2406 = vpack.c.bf16 %v2332, %v2330
    %v2407 = vpack.c.bf16 %v2335, %v2333
    %v2408 = vpack.c.bf16 %v2336, %v2334
    %v2409 = vpack.c.bf16 %v2339, %v2337
    %v2410 = vpack.c.bf16 %v2340, %v2338
    %v2411 = vpack.c.bf16 %v2343, %v2341
    %v2412 = vpack.c.bf16 %v2344, %v2342
    %v2413 = vpack.c.bf16 %v2347, %v2345
    %v2414 = vpack.c.bf16 %v2348, %v2346
    %v2415 = vpack.c.bf16 %v2351, %v2349
    %v2416 = vpack.c.bf16 %v2352, %v2350
    %v2417 = vld [vmem:[#allocation9] sm:$0xf]
    %v2418 = vld [vmem:[#allocation9 + $0x4] sm:$0xf]
    %v2419 = vld [vmem:[#allocation9 + $0x8] sm:$0xf]
    %v2420 = vld [vmem:[#allocation9 + $0xc] sm:$0xf]
    %v2421 = vld [vmem:[#allocation9 + $0x10] sm:$0xf]
    %v2422 = vld [vmem:[#allocation9 + $0x14] sm:$0xf]
    %v2423 = vld [vmem:[#allocation9 + $0x18] sm:$0xf]
    %v2424 = vld [vmem:[#allocation9 + $0x1c] sm:$0xf]
    %v2425 = vld [vmem:[#allocation9 + $0x20] sm:$0xf]
    %v2426 = vld [vmem:[#allocation9 + $0x24] sm:$0xf]
    %v2427 = vld [vmem:[#allocation9 + $0x28] sm:$0xf]
    %v2428 = vld [vmem:[#allocation9 + $0x2c] sm:$0xf]
    %v2429 = vld [vmem:[#allocation9 + $0x30] sm:$0xf]
    %v2430 = vld [vmem:[#allocation9 + $0x34] sm:$0xf]
    %v2431 = vld [vmem:[#allocation9 + $0x38] sm:$0xf]
    %v2432 = vld [vmem:[#allocation9 + $0x3c] sm:$0xf]
    %v2433 = vld [vmem:[#allocation9 + $0x40] sm:$0xf]
    %v2434 = vld [vmem:[#allocation9 + $0x44] sm:$0xf]
    %v2435 = vld [vmem:[#allocation9 + $0x48] sm:$0xf]
    %v2436 = vld [vmem:[#allocation9 + $0x4c] sm:$0xf]
    %v2437 = vld [vmem:[#allocation9 + $0x50] sm:$0xf]
    %v2438 = vld [vmem:[#allocation9 + $0x54] sm:$0xf]
    %v2439 = vld [vmem:[#allocation9 + $0x58] sm:$0xf]
    %v2440 = vld [vmem:[#allocation9 + $0x5c] sm:$0xf]
    %v2441 = vld [vmem:[#allocation9 + $0x60] sm:$0xf]
    %v2442 = vld [vmem:[#allocation9 + $0x64] sm:$0xf]
    %v2443 = vld [vmem:[#allocation9 + $0x68] sm:$0xf]
    %v2444 = vld [vmem:[#allocation9 + $0x6c] sm:$0xf]
    %v2445 = vld [vmem:[#allocation9 + $0x70] sm:$0xf]
    %v2446 = vld [vmem:[#allocation9 + $0x74] sm:$0xf]
    %v2447 = vld [vmem:[#allocation9 + $0x78] sm:$0xf]
    %v2448 = vld [vmem:[#allocation9 + $0x7c] sm:$0xf]
    %v2481 = vunpack.c.l.b16 %v2417
    %v2482 = vunpack.c.l.b16 %v2418
    %v2483 = vunpack.c.l.b16 %v2419
    %v2484 = vunpack.c.l.b16 %v2420
    %v2485 = vunpack.c.l.b16 %v2421
    %v2486 = vunpack.c.l.b16 %v2422
    %v2487 = vunpack.c.l.b16 %v2423
    %v2488 = vunpack.c.l.b16 %v2424
    %v2489 = vunpack.c.l.b16 %v2425
    %v2490 = vunpack.c.l.b16 %v2426
    %v2491 = vunpack.c.l.b16 %v2427
    %v2492 = vunpack.c.l.b16 %v2428
    %v2493 = vunpack.c.l.b16 %v2429
    %v2494 = vunpack.c.l.b16 %v2430
    %v2495 = vunpack.c.l.b16 %v2431
    %v2496 = vunpack.c.l.b16 %v2432
    %v2497 = vunpack.c.l.b16 %v2433
    %v2498 = vunpack.c.l.b16 %v2434
    %v2499 = vunpack.c.l.b16 %v2435
    %v2500 = vunpack.c.l.b16 %v2436
    %v2501 = vunpack.c.l.b16 %v2437
    %v2502 = vunpack.c.l.b16 %v2438
    %v2503 = vunpack.c.l.b16 %v2439
    %v2504 = vunpack.c.l.b16 %v2440
    %v2505 = vunpack.c.l.b16 %v2441
    %v2506 = vunpack.c.l.b16 %v2442
    %v2507 = vunpack.c.l.b16 %v2443
    %v2508 = vunpack.c.l.b16 %v2444
    %v2509 = vunpack.c.l.b16 %v2445
    %v2510 = vunpack.c.l.b16 %v2446
    %v2511 = vunpack.c.l.b16 %v2447
    %v2512 = vunpack.c.l.b16 %v2448
    %v2513 = vpack.c.b16 %v2482, %v2481
    %v2514 = vpack.c.b16 %v2484, %v2483
    %v2515 = vpack.c.b16 %v2486, %v2485
    %v2516 = vpack.c.b16 %v2488, %v2487
    %v2517 = vpack.c.b16 %v2490, %v2489
    %v2518 = vpack.c.b16 %v2492, %v2491
    %v2519 = vpack.c.b16 %v2494, %v2493
    %v2520 = vpack.c.b16 %v2496, %v2495
    %v2521 = vpack.c.b16 %v2498, %v2497
    %v2522 = vpack.c.b16 %v2500, %v2499
    %v2523 = vpack.c.b16 %v2502, %v2501
    %v2524 = vpack.c.b16 %v2504, %v2503
    %v2525 = vpack.c.b16 %v2506, %v2505
    %v2526 = vpack.c.b16 %v2508, %v2507
    %v2527 = vpack.c.b16 %v2510, %v2509
    %v2528 = vpack.c.b16 %v2512, %v2511
    %2545 = vmatprep.subr.bf16.mxu0 0
    %2546 = vmatpush1.bf16.msra.mxu0 %v2520
    %2547 = vmatprep.subr.bf16.mxu0 0
    %2548 = vmatpush1.bf16.msra.mxu0 %v2519
    %2549 = vmatprep.subr.bf16.mxu0 0
    %2550 = vmatpush1.bf16.msra.mxu0 %v2518
    %2551 = vmatprep.subr.bf16.mxu0 0
    %2552 = vmatpush1.bf16.msra.mxu0 %v2517
    %2553 = vmatprep.subr.bf16.mxu0 0
    %2554 = vmatpush1.bf16.msra.mxu0 %v2516
    %2555 = vmatprep.subr.bf16.mxu0 0
    %2556 = vmatpush1.bf16.msra.mxu0 %v2515
    %2557 = vmatprep.subr.bf16.mxu0 0
    %2558 = vmatpush1.bf16.msra.mxu0 %v2514
    %2559 = vmatprep.subr.bf16.mxu0 0
    %2560 = vmatpush1.bf16.msra.mxu0 %v2513
    %2561 = vmatprep.subr.bf16.mxu0 0
    %2562 = vmatpush2.bf16.msra.mxu0 %v2528
    %2563 = vmatprep.subr.bf16.mxu0 0
    %2564 = vmatpush2.bf16.msra.mxu0 %v2527
    %2565 = vmatprep.subr.bf16.mxu0 0
    %2566 = vmatpush2.bf16.msra.mxu0 %v2526
    %2567 = vmatprep.subr.bf16.mxu0 0
    %2568 = vmatpush2.bf16.msra.mxu0 %v2525
    %2569 = vmatprep.subr.bf16.mxu0 0
    %2570 = vmatpush2.bf16.msra.mxu0 %v2524
    %2571 = vmatprep.subr.bf16.mxu0 0
    %2572 = vmatpush2.bf16.msra.mxu0 %v2523
    %2573 = vmatprep.subr.bf16.mxu0 0
    %2574 = vmatpush2.bf16.msra.mxu0 %v2522
    %2575 = vmatprep.subr.bf16.mxu0 0
    %2576 = vmatpush2.bf16.msra.mxu0 %v2521
    %2577 = vmatprep.mubr.bf16.mxu0 %v2354
    %2578 = vmatmul.mubr.bf16.gmra.mxu0 %v2353
    %v2579 = vpop.f32.mrf.mxu0
    %v2580 = vadd.f32 %v96, %v2579
    %v2581 = vpop.f32.mrf.mxu0
    %v2582 = vpop.f32.mrf.mxu0
    %v2583 = vadd.f32 %v96, %v2582
    %v2584 = vpop.f32.mrf.mxu0
    %2585 = vmatprep.mubr.bf16.mxu0 %v2356
    %2586 = vmatmul.mubr.bf16.gmra.mxu0 %v2355
    %v2587 = vpop.f32.mrf.mxu0
    %v2588 = vadd.f32 %v96, %v2587
    %v2589 = vpop.f32.mrf.mxu0
    %v2590 = vpop.f32.mrf.mxu0
    %v2591 = vadd.f32 %v96, %v2590
    %v2592 = vpop.f32.mrf.mxu0
    %2593 = vmatprep.mubr.bf16.mxu0 %v2358
    %2594 = vmatmul.mubr.bf16.gmra.mxu0 %v2357
    %v2595 = vpop.f32.mrf.mxu0
    %v2596 = vadd.f32 %v96, %v2595
    %v2597 = vpop.f32.mrf.mxu0
    %v2598 = vpop.f32.mrf.mxu0
    %v2599 = vadd.f32 %v96, %v2598
    %v2600 = vpop.f32.mrf.mxu0
    %2601 = vmatprep.mubr.bf16.mxu0 %v2360
    %2602 = vmatmul.mubr.bf16.gmra.mxu0 %v2359
    %v2603 = vpop.f32.mrf.mxu0
    %v2604 = vadd.f32 %v96, %v2603
    %v2605 = vpop.f32.mrf.mxu0
    %v2606 = vpop.f32.mrf.mxu0
    %v2607 = vadd.f32 %v96, %v2606
    %v2608 = vpop.f32.mrf.mxu0
    %2609 = vmatprep.mubr.bf16.mxu0 %v2362
    %2610 = vmatmul.mubr.bf16.gmra.mxu0 %v2361
    %v2611 = vpop.f32.mrf.mxu0
    %v2612 = vadd.f32 %v96, %v2611
    %v2613 = vpop.f32.mrf.mxu0
    %v2614 = vpop.f32.mrf.mxu0
    %v2615 = vadd.f32 %v96, %v2614
    %v2616 = vpop.f32.mrf.mxu0
    %2617 = vmatprep.mubr.bf16.mxu0 %v2364
    %2618 = vmatmul.mubr.bf16.gmra.mxu0 %v2363
    %v2619 = vpop.f32.mrf.mxu0
    %v2620 = vadd.f32 %v96, %v2619
    %v2621 = vpop.f32.mrf.mxu0
    %v2622 = vpop.f32.mrf.mxu0
    %v2623 = vadd.f32 %v96, %v2622
    %v2624 = vpop.f32.mrf.mxu0
    %2625 = vmatprep.mubr.bf16.mxu0 %v2366
    %2626 = vmatmul.mubr.bf16.gmra.mxu0 %v2365
    %v2627 = vpop.f32.mrf.mxu0
    %v2628 = vadd.f32 %v96, %v2627
    %v2629 = vpop.f32.mrf.mxu0
    %v2630 = vpop.f32.mrf.mxu0
    %v2631 = vadd.f32 %v96, %v2630
    %v2632 = vpop.f32.mrf.mxu0
    %2633 = vmatprep.mubr.bf16.mxu0 %v2368
    %2634 = vmatmul.mubr.bf16.gmra.mxu0 %v2367
    %v2635 = vpop.f32.mrf.mxu0
    %v2636 = vadd.f32 %v96, %v2635
    %v2637 = vpop.f32.mrf.mxu0
    %v2638 = vpop.f32.mrf.mxu0
    %v2639 = vadd.f32 %v96, %v2638
    %v2640 = vpop.f32.mrf.mxu0
    %2641 = vmatprep.mubr.bf16.mxu0 %v2370
    %2642 = vmatmul.mubr.bf16.gmra.mxu0 %v2369
    %v2643 = vpop.f32.mrf.mxu0
    %v2644 = vadd.f32 %v96, %v2643
    %v2645 = vpop.f32.mrf.mxu0
    %v2646 = vpop.f32.mrf.mxu0
    %v2647 = vadd.f32 %v96, %v2646
    %v2648 = vpop.f32.mrf.mxu0
    %2649 = vmatprep.mubr.bf16.mxu0 %v2372
    %2650 = vmatmul.mubr.bf16.gmra.mxu0 %v2371
    %v2651 = vpop.f32.mrf.mxu0
    %v2652 = vadd.f32 %v96, %v2651
    %v2653 = vpop.f32.mrf.mxu0
    %v2654 = vpop.f32.mrf.mxu0
    %v2655 = vadd.f32 %v96, %v2654
    %v2656 = vpop.f32.mrf.mxu0
    %2657 = vmatprep.mubr.bf16.mxu0 %v2374
    %2658 = vmatmul.mubr.bf16.gmra.mxu0 %v2373
    %v2659 = vpop.f32.mrf.mxu0
    %v2660 = vadd.f32 %v96, %v2659
    %v2661 = vpop.f32.mrf.mxu0
    %v2662 = vpop.f32.mrf.mxu0
    %v2663 = vadd.f32 %v96, %v2662
    %v2664 = vpop.f32.mrf.mxu0
    %2665 = vmatprep.mubr.bf16.mxu0 %v2376
    %2666 = vmatmul.mubr.bf16.gmra.mxu0 %v2375
    %v2667 = vpop.f32.mrf.mxu0
    %v2668 = vadd.f32 %v96, %v2667
    %v2669 = vpop.f32.mrf.mxu0
    %v2670 = vpop.f32.mrf.mxu0
    %v2671 = vadd.f32 %v96, %v2670
    %v2672 = vpop.f32.mrf.mxu0
    %2673 = vmatprep.mubr.bf16.mxu0 %v2378
    %2674 = vmatmul.mubr.bf16.gmra.mxu0 %v2377
    %v2675 = vpop.f32.mrf.mxu0
    %v2676 = vadd.f32 %v96, %v2675
    %v2677 = vpop.f32.mrf.mxu0
    %v2678 = vpop.f32.mrf.mxu0
    %v2679 = vadd.f32 %v96, %v2678
    %v2680 = vpop.f32.mrf.mxu0
    %2681 = vmatprep.mubr.bf16.mxu0 %v2380
    %2682 = vmatmul.mubr.bf16.gmra.mxu0 %v2379
    %v2683 = vpop.f32.mrf.mxu0
    %v2684 = vadd.f32 %v96, %v2683
    %v2685 = vpop.f32.mrf.mxu0
    %v2686 = vpop.f32.mrf.mxu0
    %v2687 = vadd.f32 %v96, %v2686
    %v2688 = vpop.f32.mrf.mxu0
    %2689 = vmatprep.mubr.bf16.mxu0 %v2382
    %2690 = vmatmul.mubr.bf16.gmra.mxu0 %v2381
    %v2691 = vpop.f32.mrf.mxu0
    %v2692 = vadd.f32 %v96, %v2691
    %v2693 = vpop.f32.mrf.mxu0
    %v2694 = vpop.f32.mrf.mxu0
    %v2695 = vadd.f32 %v96, %v2694
    %v2696 = vpop.f32.mrf.mxu0
    %2697 = vmatprep.mubr.bf16.mxu0 %v2384
    %2698 = vmatmul.mubr.bf16.gmra.mxu0 %v2383
    %v2699 = vpop.f32.mrf.mxu0
    %v2700 = vadd.f32 %v96, %v2699
    %v2701 = vpop.f32.mrf.mxu0
    %v2702 = vpop.f32.mrf.mxu0
    %v2703 = vadd.f32 %v96, %v2702
    %v2704 = vpop.f32.mrf.mxu0
    %2705 = vmatprep.mubr.bf16.mxu0 %v2386
    %2706 = vmatmul.mubr.bf16.gmra.mxu0 %v2385
    %v2707 = vpop.f32.mrf.mxu0
    %v2708 = vadd.f32 %v96, %v2707
    %v2709 = vpop.f32.mrf.mxu0
    %v2710 = vpop.f32.mrf.mxu0
    %v2711 = vadd.f32 %v96, %v2710
    %v2712 = vpop.f32.mrf.mxu0
    %2713 = vmatprep.mubr.bf16.mxu0 %v2388
    %2714 = vmatmul.mubr.bf16.gmra.mxu0 %v2387
    %v2715 = vpop.f32.mrf.mxu0
    %v2716 = vadd.f32 %v96, %v2715
    %v2717 = vpop.f32.mrf.mxu0
    %v2718 = vpop.f32.mrf.mxu0
    %v2719 = vadd.f32 %v96, %v2718
    %v2720 = vpop.f32.mrf.mxu0
    %2721 = vmatprep.mubr.bf16.mxu0 %v2390
    %2722 = vmatmul.mubr.bf16.gmra.mxu0 %v2389
    %v2723 = vpop.f32.mrf.mxu0
    %v2724 = vadd.f32 %v96, %v2723
    %v2725 = vpop.f32.mrf.mxu0
    %v2726 = vpop.f32.mrf.mxu0
    %v2727 = vadd.f32 %v96, %v2726
    %v2728 = vpop.f32.mrf.mxu0
    %2729 = vmatprep.mubr.bf16.mxu0 %v2392
    %2730 = vmatmul.mubr.bf16.gmra.mxu0 %v2391
    %v2731 = vpop.f32.mrf.mxu0
    %v2732 = vadd.f32 %v96, %v2731
    %v2733 = vpop.f32.mrf.mxu0
    %v2734 = vpop.f32.mrf.mxu0
    %v2735 = vadd.f32 %v96, %v2734
    %v2736 = vpop.f32.mrf.mxu0
    %2737 = vmatprep.mubr.bf16.mxu0 %v2394
    %2738 = vmatmul.mubr.bf16.gmra.mxu0 %v2393
    %v2739 = vpop.f32.mrf.mxu0
    %v2740 = vadd.f32 %v96, %v2739
    %v2741 = vpop.f32.mrf.mxu0
    %v2742 = vpop.f32.mrf.mxu0
    %v2743 = vadd.f32 %v96, %v2742
    %v2744 = vpop.f32.mrf.mxu0
    %2745 = vmatprep.mubr.bf16.mxu0 %v2396
    %2746 = vmatmul.mubr.bf16.gmra.mxu0 %v2395
    %v2747 = vpop.f32.mrf.mxu0
    %v2748 = vadd.f32 %v96, %v2747
    %v2749 = vpop.f32.mrf.mxu0
    %v2750 = vpop.f32.mrf.mxu0
    %v2751 = vadd.f32 %v96, %v2750
    %v2752 = vpop.f32.mrf.mxu0
    %2753 = vmatprep.mubr.bf16.mxu0 %v2398
    %2754 = vmatmul.mubr.bf16.gmra.mxu0 %v2397
    %v2755 = vpop.f32.mrf.mxu0
    %v2756 = vadd.f32 %v96, %v2755
    %v2757 = vpop.f32.mrf.mxu0
    %v2758 = vpop.f32.mrf.mxu0
    %v2759 = vadd.f32 %v96, %v2758
    %v2760 = vpop.f32.mrf.mxu0
    %2761 = vmatprep.mubr.bf16.mxu0 %v2400
    %2762 = vmatmul.mubr.bf16.gmra.mxu0 %v2399
    %v2763 = vpop.f32.mrf.mxu0
    %v2764 = vadd.f32 %v96, %v2763
    %v2765 = vpop.f32.mrf.mxu0
    %v2766 = vpop.f32.mrf.mxu0
    %v2767 = vadd.f32 %v96, %v2766
    %v2768 = vpop.f32.mrf.mxu0
    %2769 = vmatprep.mubr.bf16.mxu0 %v2402
    %2770 = vmatmul.mubr.bf16.gmra.mxu0 %v2401
    %v2771 = vpop.f32.mrf.mxu0
    %v2772 = vadd.f32 %v96, %v2771
    %v2773 = vpop.f32.mrf.mxu0
    %v2774 = vpop.f32.mrf.mxu0
    %v2775 = vadd.f32 %v96, %v2774
    %v2776 = vpop.f32.mrf.mxu0
    %2777 = vmatprep.mubr.bf16.mxu0 %v2404
    %2778 = vmatmul.mubr.bf16.gmra.mxu0 %v2403
    %v2779 = vpop.f32.mrf.mxu0
    %v2780 = vadd.f32 %v96, %v2779
    %v2781 = vpop.f32.mrf.mxu0
    %v2782 = vpop.f32.mrf.mxu0
    %v2783 = vadd.f32 %v96, %v2782
    %v2784 = vpop.f32.mrf.mxu0
    %2785 = vmatprep.mubr.bf16.mxu0 %v2406
    %2786 = vmatmul.mubr.bf16.gmra.mxu0 %v2405
    %v2787 = vpop.f32.mrf.mxu0
    %v2788 = vadd.f32 %v96, %v2787
    %v2789 = vpop.f32.mrf.mxu0
    %v2790 = vpop.f32.mrf.mxu0
    %v2791 = vadd.f32 %v96, %v2790
    %v2792 = vpop.f32.mrf.mxu0
    %2793 = vmatprep.mubr.bf16.mxu0 %v2408
    %2794 = vmatmul.mubr.bf16.gmra.mxu0 %v2407
    %v2795 = vpop.f32.mrf.mxu0
    %v2796 = vadd.f32 %v96, %v2795
    %v2797 = vpop.f32.mrf.mxu0
    %v2798 = vpop.f32.mrf.mxu0
    %v2799 = vadd.f32 %v96, %v2798
    %v2800 = vpop.f32.mrf.mxu0
    %2801 = vmatprep.mubr.bf16.mxu0 %v2410
    %2802 = vmatmul.mubr.bf16.gmra.mxu0 %v2409
    %v2803 = vpop.f32.mrf.mxu0
    %v2804 = vadd.f32 %v96, %v2803
    %v2805 = vpop.f32.mrf.mxu0
    %v2806 = vpop.f32.mrf.mxu0
    %v2807 = vadd.f32 %v96, %v2806
    %v2808 = vpop.f32.mrf.mxu0
    %2809 = vmatprep.mubr.bf16.mxu0 %v2412
    %2810 = vmatmul.mubr.bf16.gmra.mxu0 %v2411
    %v2811 = vpop.f32.mrf.mxu0
    %v2812 = vadd.f32 %v96, %v2811
    %v2813 = vpop.f32.mrf.mxu0
    %v2814 = vpop.f32.mrf.mxu0
    %v2815 = vadd.f32 %v96, %v2814
    %v2816 = vpop.f32.mrf.mxu0
    %2817 = vmatprep.mubr.bf16.mxu0 %v2414
    %2818 = vmatmul.mubr.bf16.gmra.mxu0 %v2413
    %v2819 = vpop.f32.mrf.mxu0
    %v2820 = vadd.f32 %v96, %v2819
    %v2821 = vpop.f32.mrf.mxu0
    %v2822 = vpop.f32.mrf.mxu0
    %v2823 = vadd.f32 %v96, %v2822
    %v2824 = vpop.f32.mrf.mxu0
    %2825 = vmatprep.mubr.bf16.mxu0 %v2416
    %2826 = vmatmul.mubr.bf16.gmra.mxu0 %v2415
    %v2827 = vpop.f32.mrf.mxu0
    %v2828 = vadd.f32 %v96, %v2827
    %v2829 = vpop.f32.mrf.mxu0
    %v2830 = vpop.f32.mrf.mxu0
    %v2831 = vadd.f32 %v96, %v2830
    %v2832 = vpop.f32.mrf.mxu0
    %2833 = vdwg.mxu0
    %vm2834 = vcmp.gt.f32.partialorder %v2580, 0.0
    %vm2835 = vcmp.gt.f32.partialorder %v2583, 0.0
    %vm2836 = vcmp.gt.f32.partialorder %v2588, 0.0
    %vm2837 = vcmp.gt.f32.partialorder %v2591, 0.0
    %vm2838 = vcmp.gt.f32.partialorder %v2596, 0.0
    %vm2839 = vcmp.gt.f32.partialorder %v2599, 0.0
    %vm2840 = vcmp.gt.f32.partialorder %v2604, 0.0
    %vm2841 = vcmp.gt.f32.partialorder %v2607, 0.0
    %vm2842 = vcmp.gt.f32.partialorder %v2612, 0.0
    %vm2843 = vcmp.gt.f32.partialorder %v2615, 0.0
    %vm2844 = vcmp.gt.f32.partialorder %v2620, 0.0
    %vm2845 = vcmp.gt.f32.partialorder %v2623, 0.0
    %vm2846 = vcmp.gt.f32.partialorder %v2628, 0.0
    %vm2847 = vcmp.gt.f32.partialorder %v2631, 0.0
    %vm2848 = vcmp.gt.f32.partialorder %v2636, 0.0
    %vm2849 = vcmp.gt.f32.partialorder %v2639, 0.0
    %vm2850 = vcmp.gt.f32.partialorder %v2644, 0.0
    %vm2851 = vcmp.gt.f32.partialorder %v2647, 0.0
    %vm2852 = vcmp.gt.f32.partialorder %v2652, 0.0
    %vm2853 = vcmp.gt.f32.partialorder %v2655, 0.0
    %vm2854 = vcmp.gt.f32.partialorder %v2660, 0.0
    %vm2855 = vcmp.gt.f32.partialorder %v2663, 0.0
    %vm2856 = vcmp.gt.f32.partialorder %v2668, 0.0
    %vm2857 = vcmp.gt.f32.partialorder %v2671, 0.0
    %vm2858 = vcmp.gt.f32.partialorder %v2676, 0.0
    %vm2859 = vcmp.gt.f32.partialorder %v2679, 0.0
    %vm2860 = vcmp.gt.f32.partialorder %v2684, 0.0
    %vm2861 = vcmp.gt.f32.partialorder %v2687, 0.0
    %vm2862 = vcmp.gt.f32.partialorder %v2692, 0.0
    %vm2863 = vcmp.gt.f32.partialorder %v2695, 0.0
    %vm2864 = vcmp.gt.f32.partialorder %v2700, 0.0
    %vm2865 = vcmp.gt.f32.partialorder %v2703, 0.0
    %vm2866 = vcmp.gt.f32.partialorder %v2708, 0.0
    %vm2867 = vcmp.gt.f32.partialorder %v2711, 0.0
    %vm2868 = vcmp.gt.f32.partialorder %v2716, 0.0
    %vm2869 = vcmp.gt.f32.partialorder %v2719, 0.0
    %vm2870 = vcmp.gt.f32.partialorder %v2724, 0.0
    %vm2871 = vcmp.gt.f32.partialorder %v2727, 0.0
    %vm2872 = vcmp.gt.f32.partialorder %v2732, 0.0
    %vm2873 = vcmp.gt.f32.partialorder %v2735, 0.0
    %vm2874 = vcmp.gt.f32.partialorder %v2740, 0.0
    %vm2875 = vcmp.gt.f32.partialorder %v2743, 0.0
    %vm2876 = vcmp.gt.f32.partialorder %v2748, 0.0
    %vm2877 = vcmp.gt.f32.partialorder %v2751, 0.0
    %vm2878 = vcmp.gt.f32.partialorder %v2756, 0.0
    %vm2879 = vcmp.gt.f32.partialorder %v2759, 0.0
    %vm2880 = vcmp.gt.f32.partialorder %v2764, 0.0
    %vm2881 = vcmp.gt.f32.partialorder %v2767, 0.0
    %vm2882 = vcmp.gt.f32.partialorder %v2772, 0.0
    %vm2883 = vcmp.gt.f32.partialorder %v2775, 0.0
    %vm2884 = vcmp.gt.f32.partialorder %v2780, 0.0
    %vm2885 = vcmp.gt.f32.partialorder %v2783, 0.0
    %vm2886 = vcmp.gt.f32.partialorder %v2788, 0.0
    %vm2887 = vcmp.gt.f32.partialorder %v2791, 0.0
    %vm2888 = vcmp.gt.f32.partialorder %v2796, 0.0
    %vm2889 = vcmp.gt.f32.partialorder %v2799, 0.0
    %vm2890 = vcmp.gt.f32.partialorder %v2804, 0.0
    %vm2891 = vcmp.gt.f32.partialorder %v2807, 0.0
    %vm2892 = vcmp.gt.f32.partialorder %v2812, 0.0
    %vm2893 = vcmp.gt.f32.partialorder %v2815, 0.0
    %vm2894 = vcmp.gt.f32.partialorder %v2820, 0.0
    %vm2895 = vcmp.gt.f32.partialorder %v2823, 0.0
    %vm2896 = vcmp.gt.f32.partialorder %v2828, 0.0
    %vm2897 = vcmp.gt.f32.partialorder %v2831, 0.0
    %v2898 = vmul.f32 %v2580, 1.442695
    %v2899 = vpow.pop %v2898
    %v2900 = vmul.f32 %v2583, 1.442695
    %v2901 = vpow.pop %v2900
    %v2902 = vmul.f32 %v2588, 1.442695
    %v2903 = vpow.pop %v2902
    %v2904 = vmul.f32 %v2591, 1.442695
    %v2905 = vpow.pop %v2904
    %v2906 = vmul.f32 %v2596, 1.442695
    %v2907 = vpow.pop %v2906
    %v2908 = vmul.f32 %v2599, 1.442695
    %v2909 = vpow.pop %v2908
    %v2910 = vmul.f32 %v2604, 1.442695
    %v2911 = vpow.pop %v2910
    %v2912 = vmul.f32 %v2607, 1.442695
    %v2913 = vpow.pop %v2912
    %v2914 = vmul.f32 %v2612, 1.442695
    %v2915 = vpow.pop %v2914
    %v2916 = vmul.f32 %v2615, 1.442695
    %v2917 = vpow.pop %v2916
    %v2918 = vmul.f32 %v2620, 1.442695
    %v2919 = vpow.pop %v2918
    %v2920 = vmul.f32 %v2623, 1.442695
    %v2921 = vpow.pop %v2920
    %v2922 = vmul.f32 %v2628, 1.442695
    %v2923 = vpow.pop %v2922
    %v2924 = vmul.f32 %v2631, 1.442695
    %v2925 = vpow.pop %v2924
    %v2926 = vmul.f32 %v2636, 1.442695
    %v2927 = vpow.pop %v2926
    %v2928 = vmul.f32 %v2639, 1.442695
    %v2929 = vpow.pop %v2928
    %v2930 = vmul.f32 %v2644, 1.442695
    %v2931 = vpow.pop %v2930
    %v2932 = vmul.f32 %v2647, 1.442695
    %v2933 = vpow.pop %v2932
    %v2934 = vmul.f32 %v2652, 1.442695
    %v2935 = vpow.pop %v2934
    %v2936 = vmul.f32 %v2655, 1.442695
    %v2937 = vpow.pop %v2936
    %v2938 = vmul.f32 %v2660, 1.442695
    %v2939 = vpow.pop %v2938
    %v2940 = vmul.f32 %v2663, 1.442695
    %v2941 = vpow.pop %v2940
    %v2942 = vmul.f32 %v2668, 1.442695
    %v2943 = vpow.pop %v2942
    %v2944 = vmul.f32 %v2671, 1.442695
    %v2945 = vpow.pop %v2944
    %v2946 = vmul.f32 %v2676, 1.442695
    %v2947 = vpow.pop %v2946
    %v2948 = vmul.f32 %v2679, 1.442695
    %v2949 = vpow.pop %v2948
    %v2950 = vmul.f32 %v2684, 1.442695
    %v2951 = vpow.pop %v2950
    %v2952 = vmul.f32 %v2687, 1.442695
    %v2953 = vpow.pop %v2952
    %v2954 = vmul.f32 %v2692, 1.442695
    %v2955 = vpow.pop %v2954
    %v2956 = vmul.f32 %v2695, 1.442695
    %v2957 = vpow.pop %v2956
    %v2958 = vmul.f32 %v2700, 1.442695
    %v2959 = vpow.pop %v2958
    %v2960 = vmul.f32 %v2703, 1.442695
    %v2961 = vpow.pop %v2960
    %v2962 = vmul.f32 %v2708, 1.442695
    %v2963 = vpow.pop %v2962
    %v2964 = vmul.f32 %v2711, 1.442695
    %v2965 = vpow.pop %v2964
    %v2966 = vmul.f32 %v2716, 1.442695
    %v2967 = vpow.pop %v2966
    %v2968 = vmul.f32 %v2719, 1.442695
    %v2969 = vpow.pop %v2968
    %v2970 = vmul.f32 %v2724, 1.442695
    %v2971 = vpow.pop %v2970
    %v2972 = vmul.f32 %v2727, 1.442695
    %v2973 = vpow.pop %v2972
    %v2974 = vmul.f32 %v2732, 1.442695
    %v2975 = vpow.pop %v2974
    %v2976 = vmul.f32 %v2735, 1.442695
    %v2977 = vpow.pop %v2976
    %v2978 = vmul.f32 %v2740, 1.442695
    %v2979 = vpow.pop %v2978
    %v2980 = vmul.f32 %v2743, 1.442695
    %v2981 = vpow.pop %v2980
    %v2982 = vmul.f32 %v2748, 1.442695
    %v2983 = vpow.pop %v2982
    %v2984 = vmul.f32 %v2751, 1.442695
    %v2985 = vpow.pop %v2984
    %v2986 = vmul.f32 %v2756, 1.442695
    %v2987 = vpow.pop %v2986
    %v2988 = vmul.f32 %v2759, 1.442695
    %v2989 = vpow.pop %v2988
    %v2990 = vmul.f32 %v2764, 1.442695
    %v2991 = vpow.pop %v2990
    %v2992 = vmul.f32 %v2767, 1.442695
    %v2993 = vpow.pop %v2992
    %v2994 = vmul.f32 %v2772, 1.442695
    %v2995 = vpow.pop %v2994
    %v2996 = vmul.f32 %v2775, 1.442695
    %v2997 = vpow.pop %v2996
    %v2998 = vmul.f32 %v2780, 1.442695
    %v2999 = vpow.pop %v2998
    %v3000 = vmul.f32 %v2783, 1.442695
    %v3001 = vpow.pop %v3000
    %v3002 = vmul.f32 %v2788, 1.442695
    %v3003 = vpow.pop %v3002
    %v3004 = vmul.f32 %v2791, 1.442695
    %v3005 = vpow.pop %v3004
    %v3006 = vmul.f32 %v2796, 1.442695
    %v3007 = vpow.pop %v3006
    %v3008 = vmul.f32 %v2799, 1.442695
    %v3009 = vpow.pop %v3008
    %v3010 = vmul.f32 %v2804, 1.442695
    %v3011 = vpow.pop %v3010
    %v3012 = vmul.f32 %v2807, 1.442695
    %v3013 = vpow.pop %v3012
    %v3014 = vmul.f32 %v2812, 1.442695
    %v3015 = vpow.pop %v3014
    %v3016 = vmul.f32 %v2815, 1.442695
    %v3017 = vpow.pop %v3016
    %v3018 = vmul.f32 %v2820, 1.442695
    %v3019 = vpow.pop %v3018
    %v3020 = vmul.f32 %v2823, 1.442695
    %v3021 = vpow.pop %v3020
    %v3022 = vmul.f32 %v2828, 1.442695
    %v3023 = vpow.pop %v3022
    %v3024 = vmul.f32 %v2831, 1.442695
    %v3025 = vpow.pop %v3024
    %v3026 = vsub.f32 %v2899, 1.0
    %v3027 = vsub.f32 %v2901, 1.0
    %v3028 = vsub.f32 %v2903, 1.0
    %v3029 = vsub.f32 %v2905, 1.0
    %v3030 = vsub.f32 %v2907, 1.0
    %v3031 = vsub.f32 %v2909, 1.0
    %v3032 = vsub.f32 %v2911, 1.0
    %v3033 = vsub.f32 %v2913, 1.0
    %v3034 = vsub.f32 %v2915, 1.0
    %v3035 = vsub.f32 %v2917, 1.0
    %v3036 = vsub.f32 %v2919, 1.0
    %v3037 = vsub.f32 %v2921, 1.0
    %v3038 = vsub.f32 %v2923, 1.0
    %v3039 = vsub.f32 %v2925, 1.0
    %v3040 = vsub.f32 %v2927, 1.0
    %v3041 = vsub.f32 %v2929, 1.0
    %v3042 = vsub.f32 %v2931, 1.0
    %v3043 = vsub.f32 %v2933, 1.0
    %v3044 = vsub.f32 %v2935, 1.0
    %v3045 = vsub.f32 %v2937, 1.0
    %v3046 = vsub.f32 %v2939, 1.0
    %v3047 = vsub.f32 %v2941, 1.0
    %v3048 = vsub.f32 %v2943, 1.0
    %v3049 = vsub.f32 %v2945, 1.0
    %v3050 = vsub.f32 %v2947, 1.0
    %v3051 = vsub.f32 %v2949, 1.0
    %v3052 = vsub.f32 %v2951, 1.0
    %v3053 = vsub.f32 %v2953, 1.0
    %v3054 = vsub.f32 %v2955, 1.0
    %v3055 = vsub.f32 %v2957, 1.0
    %v3056 = vsub.f32 %v2959, 1.0
    %v3057 = vsub.f32 %v2961, 1.0
    %v3058 = vsub.f32 %v2963, 1.0
    %v3059 = vsub.f32 %v2965, 1.0
    %v3060 = vsub.f32 %v2967, 1.0
    %v3061 = vsub.f32 %v2969, 1.0
    %v3062 = vsub.f32 %v2971, 1.0
    %v3063 = vsub.f32 %v2973, 1.0
    %v3064 = vsub.f32 %v2975, 1.0
    %v3065 = vsub.f32 %v2977, 1.0
    %v3066 = vsub.f32 %v2979, 1.0
    %v3067 = vsub.f32 %v2981, 1.0
    %v3068 = vsub.f32 %v2983, 1.0
    %v3069 = vsub.f32 %v2985, 1.0
    %v3070 = vsub.f32 %v2987, 1.0
    %v3071 = vsub.f32 %v2989, 1.0
    %v3072 = vsub.f32 %v2991, 1.0
    %v3073 = vsub.f32 %v2993, 1.0
    %v3074 = vsub.f32 %v2995, 1.0
    %v3075 = vsub.f32 %v2997, 1.0
    %v3076 = vsub.f32 %v2999, 1.0
    %v3077 = vsub.f32 %v3001, 1.0
    %v3078 = vsub.f32 %v3003, 1.0
    %v3079 = vsub.f32 %v3005, 1.0
    %v3080 = vsub.f32 %v3007, 1.0
    %v3081 = vsub.f32 %v3009, 1.0
    %v3082 = vsub.f32 %v3011, 1.0
    %v3083 = vsub.f32 %v3013, 1.0
    %v3084 = vsub.f32 %v3015, 1.0
    %v3085 = vsub.f32 %v3017, 1.0
    %v3086 = vsub.f32 %v3019, 1.0
    %v3087 = vsub.f32 %v3021, 1.0
    %v3088 = vsub.f32 %v3023, 1.0
    %v3089 = vsub.f32 %v3025, 1.0
    %v3090 = vsel %vm2834, %v2580, %v3026
    %v3091 = vsel %vm2835, %v2583, %v3027
    %v3092 = vsel %vm2836, %v2588, %v3028
    %v3093 = vsel %vm2837, %v2591, %v3029
    %v3094 = vsel %vm2838, %v2596, %v3030
    %v3095 = vsel %vm2839, %v2599, %v3031
    %v3096 = vsel %vm2840, %v2604, %v3032
    %v3097 = vsel %vm2841, %v2607, %v3033
    %v3098 = vsel %vm2842, %v2612, %v3034
    %v3099 = vsel %vm2843, %v2615, %v3035
    %v3100 = vsel %vm2844, %v2620, %v3036
    %v3101 = vsel %vm2845, %v2623, %v3037
    %v3102 = vsel %vm2846, %v2628, %v3038
    %v3103 = vsel %vm2847, %v2631, %v3039
    %v3104 = vsel %vm2848, %v2636, %v3040
    %v3105 = vsel %vm2849, %v2639, %v3041
    %v3106 = vsel %vm2850, %v2644, %v3042
    %v3107 = vsel %vm2851, %v2647, %v3043
    %v3108 = vsel %vm2852, %v2652, %v3044
    %v3109 = vsel %vm2853, %v2655, %v3045
    %v3110 = vsel %vm2854, %v2660, %v3046
    %v3111 = vsel %vm2855, %v2663, %v3047
    %v3112 = vsel %vm2856, %v2668, %v3048
    %v3113 = vsel %vm2857, %v2671, %v3049
    %v3114 = vsel %vm2858, %v2676, %v3050
    %v3115 = vsel %vm2859, %v2679, %v3051
    %v3116 = vsel %vm2860, %v2684, %v3052
    %v3117 = vsel %vm2861, %v2687, %v3053
    %v3118 = vsel %vm2862, %v2692, %v3054
    %v3119 = vsel %vm2863, %v2695, %v3055
    %v3120 = vsel %vm2864, %v2700, %v3056
    %v3121 = vsel %vm2865, %v2703, %v3057
    %v3122 = vsel %vm2866, %v2708, %v3058
    %v3123 = vsel %vm2867, %v2711, %v3059
    %v3124 = vsel %vm2868, %v2716, %v3060
    %v3125 = vsel %vm2869, %v2719, %v3061
    %v3126 = vsel %vm2870, %v2724, %v3062
    %v3127 = vsel %vm2871, %v2727, %v3063
    %v3128 = vsel %vm2872, %v2732, %v3064
    %v3129 = vsel %vm2873, %v2735, %v3065
    %v3130 = vsel %vm2874, %v2740, %v3066
    %v3131 = vsel %vm2875, %v2743, %v3067
    %v3132 = vsel %vm2876, %v2748, %v3068
    %v3133 = vsel %vm2877, %v2751, %v3069
    %v3134 = vsel %vm2878, %v2756, %v3070
    %v3135 = vsel %vm2879, %v2759, %v3071
    %v3136 = vsel %vm2880, %v2764, %v3072
    %v3137 = vsel %vm2881, %v2767, %v3073
    %v3138 = vsel %vm2882, %v2772, %v3074
    %v3139 = vsel %vm2883, %v2775, %v3075
    %v3140 = vsel %vm2884, %v2780, %v3076
    %v3141 = vsel %vm2885, %v2783, %v3077
    %v3142 = vsel %vm2886, %v2788, %v3078
    %v3143 = vsel %vm2887, %v2791, %v3079
    %v3144 = vsel %vm2888, %v2796, %v3080
    %v3145 = vsel %vm2889, %v2799, %v3081
    %v3146 = vsel %vm2890, %v2804, %v3082
    %v3147 = vsel %vm2891, %v2807, %v3083
    %v3148 = vsel %vm2892, %v2812, %v3084
    %v3149 = vsel %vm2893, %v2815, %v3085
    %v3150 = vsel %vm2894, %v2820, %v3086
    %v3151 = vsel %vm2895, %v2823, %v3087
    %v3152 = vsel %vm2896, %v2828, %v3088
    %v3153 = vsel %vm2897, %v2831, %v3089
    %v3154 = vpack.c.bf16 %v3091, %v3090
    %v3155 = vpack.c.bf16 %v3093, %v3092
    %v3156 = vpack.c.bf16 %v3095, %v3094
    %v3157 = vpack.c.bf16 %v3097, %v3096
    %v3158 = vpack.c.bf16 %v3099, %v3098
    %v3159 = vpack.c.bf16 %v3101, %v3100
    %v3160 = vpack.c.bf16 %v3103, %v3102
    %v3161 = vpack.c.bf16 %v3105, %v3104
    %v3162 = vpack.c.bf16 %v3107, %v3106
    %v3163 = vpack.c.bf16 %v3109, %v3108
    %v3164 = vpack.c.bf16 %v3111, %v3110
    %v3165 = vpack.c.bf16 %v3113, %v3112
    %v3166 = vpack.c.bf16 %v3115, %v3114
    %v3167 = vpack.c.bf16 %v3117, %v3116
    %v3168 = vpack.c.bf16 %v3119, %v3118
    %v3169 = vpack.c.bf16 %v3121, %v3120
    %v3170 = vpack.c.bf16 %v3123, %v3122
    %v3171 = vpack.c.bf16 %v3125, %v3124
    %v3172 = vpack.c.bf16 %v3127, %v3126
    %v3173 = vpack.c.bf16 %v3129, %v3128
    %v3174 = vpack.c.bf16 %v3131, %v3130
    %v3175 = vpack.c.bf16 %v3133, %v3132
    %v3176 = vpack.c.bf16 %v3135, %v3134
    %v3177 = vpack.c.bf16 %v3137, %v3136
    %v3178 = vpack.c.bf16 %v3139, %v3138
    %v3179 = vpack.c.bf16 %v3141, %v3140
    %v3180 = vpack.c.bf16 %v3143, %v3142
    %v3181 = vpack.c.bf16 %v3145, %v3144
    %v3182 = vpack.c.bf16 %v3147, %v3146
    %v3183 = vpack.c.bf16 %v3149, %v3148
    %v3184 = vpack.c.bf16 %v3151, %v3150
    %v3185 = vpack.c.bf16 %v3153, %v3152
    %v3186 = vld [vmem:[%s5] sm:$0xf]
    %v3187 = vld [vmem:[%s5 + $0x4] sm:$0xf]
    %v3188 = vld [vmem:[%s5 + $0x8] sm:$0xf]
    %v3189 = vld [vmem:[%s5 + $0xc] sm:$0xf]
    %v3190 = vld [vmem:[%s5 + $0x10] sm:$0xf]
    %v3191 = vld [vmem:[%s5 + $0x14] sm:$0xf]
    %v3192 = vld [vmem:[%s5 + $0x18] sm:$0xf]
    %v3193 = vld [vmem:[%s5 + $0x1c] sm:$0xf]
    %v3194 = vld [vmem:[%s5 + $0x20] sm:$0xf]
    %v3195 = vld [vmem:[%s5 + $0x24] sm:$0xf]
    %v3196 = vld [vmem:[%s5 + $0x28] sm:$0xf]
    %v3197 = vld [vmem:[%s5 + $0x2c] sm:$0xf]
    %v3198 = vld [vmem:[%s5 + $0x30] sm:$0xf]
    %v3199 = vld [vmem:[%s5 + $0x34] sm:$0xf]
    %v3200 = vld [vmem:[%s5 + $0x38] sm:$0xf]
    %v3201 = vld [vmem:[%s5 + $0x3c] sm:$0xf]
    %v3218 = vunpack.c.l.b16 %v3186
    %v3219 = vunpack.c.l.b16 %v3187
    %v3220 = vunpack.c.l.b16 %v3188
    %v3221 = vunpack.c.l.b16 %v3189
    %v3222 = vunpack.c.l.b16 %v3190
    %v3223 = vunpack.c.l.b16 %v3191
    %v3224 = vunpack.c.l.b16 %v3192
    %v3225 = vunpack.c.l.b16 %v3193
    %v3226 = vunpack.c.l.b16 %v3194
    %v3227 = vunpack.c.l.b16 %v3195
    %v3228 = vunpack.c.l.b16 %v3196
    %v3229 = vunpack.c.l.b16 %v3197
    %v3230 = vunpack.c.l.b16 %v3198
    %v3231 = vunpack.c.l.b16 %v3199
    %v3232 = vunpack.c.l.b16 %v3200
    %v3233 = vunpack.c.l.b16 %v3201
    %v3234 = vpack.c.b16 %v3219, %v3218
    %v3235 = vpack.c.b16 %v3221, %v3220
    %v3236 = vpack.c.b16 %v3223, %v3222
    %v3237 = vpack.c.b16 %v3225, %v3224
    %v3238 = vpack.c.b16 %v3227, %v3226
    %v3239 = vpack.c.b16 %v3229, %v3228
    %v3240 = vpack.c.b16 %v3231, %v3230
    %v3241 = vpack.c.b16 %v3233, %v3232
    %3250 = vmatprep.subr.bf16.mxu0 0
    %3251 = vmatpush1.bf16.msra.mxu0 %v3241
    %3252 = vmatprep.subr.bf16.mxu0 0
    %3253 = vmatpush1.bf16.msra.mxu0 %v3240
    %3254 = vmatprep.subr.bf16.mxu0 0
    %3255 = vmatpush1.bf16.msra.mxu0 %v3239
    %3256 = vmatprep.subr.bf16.mxu0 0
    %3257 = vmatpush1.bf16.msra.mxu0 %v3238
    %3258 = vmatprep.subr.bf16.mxu0 0
    %3259 = vmatpush1.bf16.msra.mxu0 %v3237
    %3260 = vmatprep.subr.bf16.mxu0 0
    %3261 = vmatpush1.bf16.msra.mxu0 %v3236
    %3262 = vmatprep.subr.bf16.mxu0 0
    %3263 = vmatpush1.bf16.msra.mxu0 %v3235
    %3264 = vmatprep.subr.bf16.mxu0 0
    %3265 = vmatpush1.bf16.msra.mxu0 %v3234
    %3266 = vmatprep.subr.bf16.mxu0 0
    %3267 = vmatpush2.bf16.msra.mxu0 0
    %3268 = vmatprep.subr.bf16.mxu0 0
    %3269 = vmatpush2.bf16.msra.mxu0 0
    %3270 = vmatprep.subr.bf16.mxu0 0
    %3271 = vmatpush2.bf16.msra.mxu0 0
    %3272 = vmatprep.subr.bf16.mxu0 0
    %3273 = vmatpush2.bf16.msra.mxu0 0
    %3274 = vmatprep.subr.bf16.mxu0 0
    %3275 = vmatpush2.bf16.msra.mxu0 0
    %3276 = vmatprep.subr.bf16.mxu0 0
    %3277 = vmatpush2.bf16.msra.mxu0 0
    %3278 = vmatprep.subr.bf16.mxu0 0
    %3279 = vmatpush2.bf16.msra.mxu0 0
    %3280 = vmatprep.subr.bf16.mxu0 0
    %3281 = vmatpush2.bf16.msra.mxu0 0
    %3282 = vmatprep.mubr.bf16.mxu0 0
    %3283 = vmatmul.mubr.bf16.gmra.mxu0 %v3154
    %v3284 = vpop.f32.mrf.mxu0
    %v3285 = vadd.f32 %v97, %v3284
    %v3286 = vpop.f32.mrf.mxu0
    %v3287 = vpop.f32.mrf.mxu0
    %v3288 = vadd.f32 %v97, %v3287
    %v3289 = vpop.f32.mrf.mxu0
    %3290 = vmatprep.mubr.bf16.mxu0 0
    %3291 = vmatmul.mubr.bf16.gmra.mxu0 %v3155
    %v3292 = vpop.f32.mrf.mxu0
    %v3293 = vadd.f32 %v97, %v3292
    %v3294 = vpop.f32.mrf.mxu0
    %v3295 = vpop.f32.mrf.mxu0
    %v3296 = vadd.f32 %v97, %v3295
    %v3297 = vpop.f32.mrf.mxu0
    %3298 = vmatprep.mubr.bf16.mxu0 0
    %3299 = vmatmul.mubr.bf16.gmra.mxu0 %v3156
    %v3300 = vpop.f32.mrf.mxu0
    %v3301 = vadd.f32 %v97, %v3300
    %v3302 = vpop.f32.mrf.mxu0
    %v3303 = vpop.f32.mrf.mxu0
    %v3304 = vadd.f32 %v97, %v3303
    %v3305 = vpop.f32.mrf.mxu0
    %3306 = vmatprep.mubr.bf16.mxu0 0
    %3307 = vmatmul.mubr.bf16.gmra.mxu0 %v3157
    %v3308 = vpop.f32.mrf.mxu0
    %v3309 = vadd.f32 %v97, %v3308
    %v3310 = vpop.f32.mrf.mxu0
    %v3311 = vpop.f32.mrf.mxu0
    %v3312 = vadd.f32 %v97, %v3311
    %v3313 = vpop.f32.mrf.mxu0
    %3314 = vmatprep.mubr.bf16.mxu0 0
    %3315 = vmatmul.mubr.bf16.gmra.mxu0 %v3158
    %v3316 = vpop.f32.mrf.mxu0
    %v3317 = vadd.f32 %v97, %v3316
    %v3318 = vpop.f32.mrf.mxu0
    %v3319 = vpop.f32.mrf.mxu0
    %v3320 = vadd.f32 %v97, %v3319
    %v3321 = vpop.f32.mrf.mxu0
    %3322 = vmatprep.mubr.bf16.mxu0 0
    %3323 = vmatmul.mubr.bf16.gmra.mxu0 %v3159
    %v3324 = vpop.f32.mrf.mxu0
    %v3325 = vadd.f32 %v97, %v3324
    %v3326 = vpop.f32.mrf.mxu0
    %v3327 = vpop.f32.mrf.mxu0
    %v3328 = vadd.f32 %v97, %v3327
    %v3329 = vpop.f32.mrf.mxu0
    %3330 = vmatprep.mubr.bf16.mxu0 0
    %3331 = vmatmul.mubr.bf16.gmra.mxu0 %v3160
    %v3332 = vpop.f32.mrf.mxu0
    %v3333 = vadd.f32 %v97, %v3332
    %v3334 = vpop.f32.mrf.mxu0
    %v3335 = vpop.f32.mrf.mxu0
    %v3336 = vadd.f32 %v97, %v3335
    %v3337 = vpop.f32.mrf.mxu0
    %3338 = vmatprep.mubr.bf16.mxu0 0
    %3339 = vmatmul.mubr.bf16.gmra.mxu0 %v3161
    %v3340 = vpop.f32.mrf.mxu0
    %v3341 = vadd.f32 %v97, %v3340
    %v3342 = vpop.f32.mrf.mxu0
    %v3343 = vpop.f32.mrf.mxu0
    %v3344 = vadd.f32 %v97, %v3343
    %v3345 = vpop.f32.mrf.mxu0
    %3346 = vmatprep.mubr.bf16.mxu0 0
    %3347 = vmatmul.mubr.bf16.gmra.mxu0 %v3162
    %v3348 = vpop.f32.mrf.mxu0
    %v3349 = vadd.f32 %v97, %v3348
    %v3350 = vpop.f32.mrf.mxu0
    %v3351 = vpop.f32.mrf.mxu0
    %v3352 = vadd.f32 %v97, %v3351
    %v3353 = vpop.f32.mrf.mxu0
    %3354 = vmatprep.mubr.bf16.mxu0 0
    %3355 = vmatmul.mubr.bf16.gmra.mxu0 %v3163
    %v3356 = vpop.f32.mrf.mxu0
    %v3357 = vadd.f32 %v97, %v3356
    %v3358 = vpop.f32.mrf.mxu0
    %v3359 = vpop.f32.mrf.mxu0
    %v3360 = vadd.f32 %v97, %v3359
    %v3361 = vpop.f32.mrf.mxu0
    %3362 = vmatprep.mubr.bf16.mxu0 0
    %3363 = vmatmul.mubr.bf16.gmra.mxu0 %v3164
    %v3364 = vpop.f32.mrf.mxu0
    %v3365 = vadd.f32 %v97, %v3364
    %v3366 = vpop.f32.mrf.mxu0
    %v3367 = vpop.f32.mrf.mxu0
    %v3368 = vadd.f32 %v97, %v3367
    %v3369 = vpop.f32.mrf.mxu0
    %3370 = vmatprep.mubr.bf16.mxu0 0
    %3371 = vmatmul.mubr.bf16.gmra.mxu0 %v3165
    %v3372 = vpop.f32.mrf.mxu0
    %v3373 = vadd.f32 %v97, %v3372
    %v3374 = vpop.f32.mrf.mxu0
    %v3375 = vpop.f32.mrf.mxu0
    %v3376 = vadd.f32 %v97, %v3375
    %v3377 = vpop.f32.mrf.mxu0
    %3378 = vmatprep.mubr.bf16.mxu0 0
    %3379 = vmatmul.mubr.bf16.gmra.mxu0 %v3166
    %v3380 = vpop.f32.mrf.mxu0
    %v3381 = vadd.f32 %v97, %v3380
    %v3382 = vpop.f32.mrf.mxu0
    %v3383 = vpop.f32.mrf.mxu0
    %v3384 = vadd.f32 %v97, %v3383
    %v3385 = vpop.f32.mrf.mxu0
    %3386 = vmatprep.mubr.bf16.mxu0 0
    %3387 = vmatmul.mubr.bf16.gmra.mxu0 %v3167
    %v3388 = vpop.f32.mrf.mxu0
    %v3389 = vadd.f32 %v97, %v3388
    %v3390 = vpop.f32.mrf.mxu0
    %v3391 = vpop.f32.mrf.mxu0
    %v3392 = vadd.f32 %v97, %v3391
    %v3393 = vpop.f32.mrf.mxu0
    %3394 = vmatprep.mubr.bf16.mxu0 0
    %3395 = vmatmul.mubr.bf16.gmra.mxu0 %v3168
    %v3396 = vpop.f32.mrf.mxu0
    %v3397 = vadd.f32 %v97, %v3396
    %v3398 = vpop.f32.mrf.mxu0
    %v3399 = vpop.f32.mrf.mxu0
    %v3400 = vadd.f32 %v97, %v3399
    %v3401 = vpop.f32.mrf.mxu0
    %3402 = vmatprep.mubr.bf16.mxu0 0
    %3403 = vmatmul.mubr.bf16.gmra.mxu0 %v3169
    %v3404 = vpop.f32.mrf.mxu0
    %v3405 = vadd.f32 %v97, %v3404
    %v3406 = vpop.f32.mrf.mxu0
    %v3407 = vpop.f32.mrf.mxu0
    %v3408 = vadd.f32 %v97, %v3407
    %v3409 = vpop.f32.mrf.mxu0
    %3410 = vmatprep.mubr.bf16.mxu0 0
    %3411 = vmatmul.mubr.bf16.gmra.mxu0 %v3170
    %v3412 = vpop.f32.mrf.mxu0
    %v3413 = vadd.f32 %v97, %v3412
    %v3414 = vpop.f32.mrf.mxu0
    %v3415 = vpop.f32.mrf.mxu0
    %v3416 = vadd.f32 %v97, %v3415
    %v3417 = vpop.f32.mrf.mxu0
    %3418 = vmatprep.mubr.bf16.mxu0 0
    %3419 = vmatmul.mubr.bf16.gmra.mxu0 %v3171
    %v3420 = vpop.f32.mrf.mxu0
    %v3421 = vadd.f32 %v97, %v3420
    %v3422 = vpop.f32.mrf.mxu0
    %v3423 = vpop.f32.mrf.mxu0
    %v3424 = vadd.f32 %v97, %v3423
    %v3425 = vpop.f32.mrf.mxu0
    %3426 = vmatprep.mubr.bf16.mxu0 0
    %3427 = vmatmul.mubr.bf16.gmra.mxu0 %v3172
    %v3428 = vpop.f32.mrf.mxu0
    %v3429 = vadd.f32 %v97, %v3428
    %v3430 = vpop.f32.mrf.mxu0
    %v3431 = vpop.f32.mrf.mxu0
    %v3432 = vadd.f32 %v97, %v3431
    %v3433 = vpop.f32.mrf.mxu0
    %3434 = vmatprep.mubr.bf16.mxu0 0
    %3435 = vmatmul.mubr.bf16.gmra.mxu0 %v3173
    %v3436 = vpop.f32.mrf.mxu0
    %v3437 = vadd.f32 %v97, %v3436
    %v3438 = vpop.f32.mrf.mxu0
    %v3439 = vpop.f32.mrf.mxu0
    %v3440 = vadd.f32 %v97, %v3439
    %v3441 = vpop.f32.mrf.mxu0
    %3442 = vmatprep.mubr.bf16.mxu0 0
    %3443 = vmatmul.mubr.bf16.gmra.mxu0 %v3174
    %v3444 = vpop.f32.mrf.mxu0
    %v3445 = vadd.f32 %v97, %v3444
    %v3446 = vpop.f32.mrf.mxu0
    %v3447 = vpop.f32.mrf.mxu0
    %v3448 = vadd.f32 %v97, %v3447
    %v3449 = vpop.f32.mrf.mxu0
    %3450 = vmatprep.mubr.bf16.mxu0 0
    %3451 = vmatmul.mubr.bf16.gmra.mxu0 %v3175
    %v3452 = vpop.f32.mrf.mxu0
    %v3453 = vadd.f32 %v97, %v3452
    %v3454 = vpop.f32.mrf.mxu0
    %v3455 = vpop.f32.mrf.mxu0
    %v3456 = vadd.f32 %v97, %v3455
    %v3457 = vpop.f32.mrf.mxu0
    %3458 = vmatprep.mubr.bf16.mxu0 0
    %3459 = vmatmul.mubr.bf16.gmra.mxu0 %v3176
    %v3460 = vpop.f32.mrf.mxu0
    %v3461 = vadd.f32 %v97, %v3460
    %v3462 = vpop.f32.mrf.mxu0
    %v3463 = vpop.f32.mrf.mxu0
    %v3464 = vadd.f32 %v97, %v3463
    %v3465 = vpop.f32.mrf.mxu0
    %3466 = vmatprep.mubr.bf16.mxu0 0
    %3467 = vmatmul.mubr.bf16.gmra.mxu0 %v3177
    %v3468 = vpop.f32.mrf.mxu0
    %v3469 = vadd.f32 %v97, %v3468
    %v3470 = vpop.f32.mrf.mxu0
    %v3471 = vpop.f32.mrf.mxu0
    %v3472 = vadd.f32 %v97, %v3471
    %v3473 = vpop.f32.mrf.mxu0
    %3474 = vmatprep.mubr.bf16.mxu0 0
    %3475 = vmatmul.mubr.bf16.gmra.mxu0 %v3178
    %v3476 = vpop.f32.mrf.mxu0
    %v3477 = vadd.f32 %v97, %v3476
    %v3478 = vpop.f32.mrf.mxu0
    %v3479 = vpop.f32.mrf.mxu0
    %v3480 = vadd.f32 %v97, %v3479
    %v3481 = vpop.f32.mrf.mxu0
    %3482 = vmatprep.mubr.bf16.mxu0 0
    %3483 = vmatmul.mubr.bf16.gmra.mxu0 %v3179
    %v3484 = vpop.f32.mrf.mxu0
    %v3485 = vadd.f32 %v97, %v3484
    %v3486 = vpop.f32.mrf.mxu0
    %v3487 = vpop.f32.mrf.mxu0
    %v3488 = vadd.f32 %v97, %v3487
    %v3489 = vpop.f32.mrf.mxu0
    %3490 = vmatprep.mubr.bf16.mxu0 0
    %3491 = vmatmul.mubr.bf16.gmra.mxu0 %v3180
    %v3492 = vpop.f32.mrf.mxu0
    %v3493 = vadd.f32 %v97, %v3492
    %v3494 = vpop.f32.mrf.mxu0
    %v3495 = vpop.f32.mrf.mxu0
    %v3496 = vadd.f32 %v97, %v3495
    %v3497 = vpop.f32.mrf.mxu0
    %3498 = vmatprep.mubr.bf16.mxu0 0
    %3499 = vmatmul.mubr.bf16.gmra.mxu0 %v3181
    %v3500 = vpop.f32.mrf.mxu0
    %v3501 = vadd.f32 %v97, %v3500
    %v3502 = vpop.f32.mrf.mxu0
    %v3503 = vpop.f32.mrf.mxu0
    %v3504 = vadd.f32 %v97, %v3503
    %v3505 = vpop.f32.mrf.mxu0
    %3506 = vmatprep.mubr.bf16.mxu0 0
    %3507 = vmatmul.mubr.bf16.gmra.mxu0 %v3182
    %v3508 = vpop.f32.mrf.mxu0
    %v3509 = vadd.f32 %v97, %v3508
    %v3510 = vpop.f32.mrf.mxu0
    %v3511 = vpop.f32.mrf.mxu0
    %v3512 = vadd.f32 %v97, %v3511
    %v3513 = vpop.f32.mrf.mxu0
    %3514 = vmatprep.mubr.bf16.mxu0 0
    %3515 = vmatmul.mubr.bf16.gmra.mxu0 %v3183
    %v3516 = vpop.f32.mrf.mxu0
    %v3517 = vadd.f32 %v97, %v3516
    %v3518 = vpop.f32.mrf.mxu0
    %v3519 = vpop.f32.mrf.mxu0
    %v3520 = vadd.f32 %v97, %v3519
    %v3521 = vpop.f32.mrf.mxu0
    %3522 = vmatprep.mubr.bf16.mxu0 0
    %3523 = vmatmul.mubr.bf16.gmra.mxu0 %v3184
    %v3524 = vpop.f32.mrf.mxu0
    %v3525 = vadd.f32 %v97, %v3524
    %v3526 = vpop.f32.mrf.mxu0
    %v3527 = vpop.f32.mrf.mxu0
    %v3528 = vadd.f32 %v97, %v3527
    %v3529 = vpop.f32.mrf.mxu0
    %3530 = vmatprep.mubr.bf16.mxu0 0
    %3531 = vmatmul.mubr.bf16.gmra.mxu0 %v3185
    %v3532 = vpop.f32.mrf.mxu0
    %v3533 = vadd.f32 %v97, %v3532
    %v3534 = vpop.f32.mrf.mxu0
    %v3535 = vpop.f32.mrf.mxu0
    %v3536 = vadd.f32 %v97, %v3535
    %v3537 = vpop.f32.mrf.mxu0
    %3538 = vdwg.mxu0
    %vm3539 = vcmp.gt.f32.partialorder %v3285, 0.0
    %vm3540 = vcmp.gt.f32.partialorder %v3288, 0.0
    %vm3541 = vcmp.gt.f32.partialorder %v3293, 0.0
    %vm3542 = vcmp.gt.f32.partialorder %v3296, 0.0
    %vm3543 = vcmp.gt.f32.partialorder %v3301, 0.0
    %vm3544 = vcmp.gt.f32.partialorder %v3304, 0.0
    %vm3545 = vcmp.gt.f32.partialorder %v3309, 0.0
    %vm3546 = vcmp.gt.f32.partialorder %v3312, 0.0
    %vm3547 = vcmp.gt.f32.partialorder %v3317, 0.0
    %vm3548 = vcmp.gt.f32.partialorder %v3320, 0.0
    %vm3549 = vcmp.gt.f32.partialorder %v3325, 0.0
    %vm3550 = vcmp.gt.f32.partialorder %v3328, 0.0
    %vm3551 = vcmp.gt.f32.partialorder %v3333, 0.0
    %vm3552 = vcmp.gt.f32.partialorder %v3336, 0.0
    %vm3553 = vcmp.gt.f32.partialorder %v3341, 0.0
    %vm3554 = vcmp.gt.f32.partialorder %v3344, 0.0
    %vm3555 = vcmp.gt.f32.partialorder %v3349, 0.0
    %vm3556 = vcmp.gt.f32.partialorder %v3352, 0.0
    %vm3557 = vcmp.gt.f32.partialorder %v3357, 0.0
    %vm3558 = vcmp.gt.f32.partialorder %v3360, 0.0
    %vm3559 = vcmp.gt.f32.partialorder %v3365, 0.0
    %vm3560 = vcmp.gt.f32.partialorder %v3368, 0.0
    %vm3561 = vcmp.gt.f32.partialorder %v3373, 0.0
    %vm3562 = vcmp.gt.f32.partialorder %v3376, 0.0
    %vm3563 = vcmp.gt.f32.partialorder %v3381, 0.0
    %vm3564 = vcmp.gt.f32.partialorder %v3384, 0.0
    %vm3565 = vcmp.gt.f32.partialorder %v3389, 0.0
    %vm3566 = vcmp.gt.f32.partialorder %v3392, 0.0
    %vm3567 = vcmp.gt.f32.partialorder %v3397, 0.0
    %vm3568 = vcmp.gt.f32.partialorder %v3400, 0.0
    %vm3569 = vcmp.gt.f32.partialorder %v3405, 0.0
    %vm3570 = vcmp.gt.f32.partialorder %v3408, 0.0
    %vm3571 = vcmp.gt.f32.partialorder %v3413, 0.0
    %vm3572 = vcmp.gt.f32.partialorder %v3416, 0.0
    %vm3573 = vcmp.gt.f32.partialorder %v3421, 0.0
    %vm3574 = vcmp.gt.f32.partialorder %v3424, 0.0
    %vm3575 = vcmp.gt.f32.partialorder %v3429, 0.0
    %vm3576 = vcmp.gt.f32.partialorder %v3432, 0.0
    %vm3577 = vcmp.gt.f32.partialorder %v3437, 0.0
    %vm3578 = vcmp.gt.f32.partialorder %v3440, 0.0
    %vm3579 = vcmp.gt.f32.partialorder %v3445, 0.0
    %vm3580 = vcmp.gt.f32.partialorder %v3448, 0.0
    %vm3581 = vcmp.gt.f32.partialorder %v3453, 0.0
    %vm3582 = vcmp.gt.f32.partialorder %v3456, 0.0
    %vm3583 = vcmp.gt.f32.partialorder %v3461, 0.0
    %vm3584 = vcmp.gt.f32.partialorder %v3464, 0.0
    %vm3585 = vcmp.gt.f32.partialorder %v3469, 0.0
    %vm3586 = vcmp.gt.f32.partialorder %v3472, 0.0
    %vm3587 = vcmp.gt.f32.partialorder %v3477, 0.0
    %vm3588 = vcmp.gt.f32.partialorder %v3480, 0.0
    %vm3589 = vcmp.gt.f32.partialorder %v3485, 0.0
    %vm3590 = vcmp.gt.f32.partialorder %v3488, 0.0
    %vm3591 = vcmp.gt.f32.partialorder %v3493, 0.0
    %vm3592 = vcmp.gt.f32.partialorder %v3496, 0.0
    %vm3593 = vcmp.gt.f32.partialorder %v3501, 0.0
    %vm3594 = vcmp.gt.f32.partialorder %v3504, 0.0
    %vm3595 = vcmp.gt.f32.partialorder %v3509, 0.0
    %vm3596 = vcmp.gt.f32.partialorder %v3512, 0.0
    %vm3597 = vcmp.gt.f32.partialorder %v3517, 0.0
    %vm3598 = vcmp.gt.f32.partialorder %v3520, 0.0
    %vm3599 = vcmp.gt.f32.partialorder %v3525, 0.0
    %vm3600 = vcmp.gt.f32.partialorder %v3528, 0.0
    %vm3601 = vcmp.gt.f32.partialorder %v3533, 0.0
    %vm3602 = vcmp.gt.f32.partialorder %v3536, 0.0
    %v3603 = vmul.f32 %v3285, 1.442695
    %v3604 = vpow.pop %v3603
    %v3605 = vmul.f32 %v3288, 1.442695
    %v3606 = vpow.pop %v3605
    %v3607 = vmul.f32 %v3293, 1.442695
    %v3608 = vpow.pop %v3607
    %v3609 = vmul.f32 %v3296, 1.442695
    %v3610 = vpow.pop %v3609
    %v3611 = vmul.f32 %v3301, 1.442695
    %v3612 = vpow.pop %v3611
    %v3613 = vmul.f32 %v3304, 1.442695
    %v3614 = vpow.pop %v3613
    %v3615 = vmul.f32 %v3309, 1.442695
    %v3616 = vpow.pop %v3615
    %v3617 = vmul.f32 %v3312, 1.442695
    %v3618 = vpow.pop %v3617
    %v3619 = vmul.f32 %v3317, 1.442695
    %v3620 = vpow.pop %v3619
    %v3621 = vmul.f32 %v3320, 1.442695
    %v3622 = vpow.pop %v3621
    %v3623 = vmul.f32 %v3325, 1.442695
    %v3624 = vpow.pop %v3623
    %v3625 = vmul.f32 %v3328, 1.442695
    %v3626 = vpow.pop %v3625
    %v3627 = vmul.f32 %v3333, 1.442695
    %v3628 = vpow.pop %v3627
    %v3629 = vmul.f32 %v3336, 1.442695
    %v3630 = vpow.pop %v3629
    %v3631 = vmul.f32 %v3341, 1.442695
    %v3632 = vpow.pop %v3631
    %v3633 = vmul.f32 %v3344, 1.442695
    %v3634 = vpow.pop %v3633
    %v3635 = vmul.f32 %v3349, 1.442695
    %v3636 = vpow.pop %v3635
    %v3637 = vmul.f32 %v3352, 1.442695
    %v3638 = vpow.pop %v3637
    %v3639 = vmul.f32 %v3357, 1.442695
    %v3640 = vpow.pop %v3639
    %v3641 = vmul.f32 %v3360, 1.442695
    %v3642 = vpow.pop %v3641
    %v3643 = vmul.f32 %v3365, 1.442695
    %v3644 = vpow.pop %v3643
    %v3645 = vmul.f32 %v3368, 1.442695
    %v3646 = vpow.pop %v3645
    %v3647 = vmul.f32 %v3373, 1.442695
    %v3648 = vpow.pop %v3647
    %v3649 = vmul.f32 %v3376, 1.442695
    %v3650 = vpow.pop %v3649
    %v3651 = vmul.f32 %v3381, 1.442695
    %v3652 = vpow.pop %v3651
    %v3653 = vmul.f32 %v3384, 1.442695
    %v3654 = vpow.pop %v3653
    %v3655 = vmul.f32 %v3389, 1.442695
    %v3656 = vpow.pop %v3655
    %v3657 = vmul.f32 %v3392, 1.442695
    %v3658 = vpow.pop %v3657
    %v3659 = vmul.f32 %v3397, 1.442695
    %v3660 = vpow.pop %v3659
    %v3661 = vmul.f32 %v3400, 1.442695
    %v3662 = vpow.pop %v3661
    %v3663 = vmul.f32 %v3405, 1.442695
    %v3664 = vpow.pop %v3663
    %v3665 = vmul.f32 %v3408, 1.442695
    %v3666 = vpow.pop %v3665
    %v3667 = vmul.f32 %v3413, 1.442695
    %v3668 = vpow.pop %v3667
    %v3669 = vmul.f32 %v3416, 1.442695
    %v3670 = vpow.pop %v3669
    %v3671 = vmul.f32 %v3421, 1.442695
    %v3672 = vpow.pop %v3671
    %v3673 = vmul.f32 %v3424, 1.442695
    %v3674 = vpow.pop %v3673
    %v3675 = vmul.f32 %v3429, 1.442695
    %v3676 = vpow.pop %v3675
    %v3677 = vmul.f32 %v3432, 1.442695
    %v3678 = vpow.pop %v3677
    %v3679 = vmul.f32 %v3437, 1.442695
    %v3680 = vpow.pop %v3679
    %v3681 = vmul.f32 %v3440, 1.442695
    %v3682 = vpow.pop %v3681
    %v3683 = vmul.f32 %v3445, 1.442695
    %v3684 = vpow.pop %v3683
    %v3685 = vmul.f32 %v3448, 1.442695
    %v3686 = vpow.pop %v3685
    %v3687 = vmul.f32 %v3453, 1.442695
    %v3688 = vpow.pop %v3687
    %v3689 = vmul.f32 %v3456, 1.442695
    %v3690 = vpow.pop %v3689
    %v3691 = vmul.f32 %v3461, 1.442695
    %v3692 = vpow.pop %v3691
    %v3693 = vmul.f32 %v3464, 1.442695
    %v3694 = vpow.pop %v3693
    %v3695 = vmul.f32 %v3469, 1.442695
    %v3696 = vpow.pop %v3695
    %v3697 = vmul.f32 %v3472, 1.442695
    %v3698 = vpow.pop %v3697
    %v3699 = vmul.f32 %v3477, 1.442695
    %v3700 = vpow.pop %v3699
    %v3701 = vmul.f32 %v3480, 1.442695
    %v3702 = vpow.pop %v3701
    %v3703 = vmul.f32 %v3485, 1.442695
    %v3704 = vpow.pop %v3703
    %v3705 = vmul.f32 %v3488, 1.442695
    %v3706 = vpow.pop %v3705
    %v3707 = vmul.f32 %v3493, 1.442695
    %v3708 = vpow.pop %v3707
    %v3709 = vmul.f32 %v3496, 1.442695
    %v3710 = vpow.pop %v3709
    %v3711 = vmul.f32 %v3501, 1.442695
    %v3712 = vpow.pop %v3711
    %v3713 = vmul.f32 %v3504, 1.442695
    %v3714 = vpow.pop %v3713
    %v3715 = vmul.f32 %v3509, 1.442695
    %v3716 = vpow.pop %v3715
    %v3717 = vmul.f32 %v3512, 1.442695
    %v3718 = vpow.pop %v3717
    %v3719 = vmul.f32 %v3517, 1.442695
    %v3720 = vpow.pop %v3719
    %v3721 = vmul.f32 %v3520, 1.442695
    %v3722 = vpow.pop %v3721
    %v3723 = vmul.f32 %v3525, 1.442695
    %v3724 = vpow.pop %v3723
    %v3725 = vmul.f32 %v3528, 1.442695
    %v3726 = vpow.pop %v3725
    %v3727 = vmul.f32 %v3533, 1.442695
    %v3728 = vpow.pop %v3727
    %v3729 = vmul.f32 %v3536, 1.442695
    %v3730 = vpow.pop %v3729
    %v3731 = vsub.f32 %v3604, 1.0
    %v3732 = vsub.f32 %v3606, 1.0
    %v3733 = vsub.f32 %v3608, 1.0
    %v3734 = vsub.f32 %v3610, 1.0
    %v3735 = vsub.f32 %v3612, 1.0
    %v3736 = vsub.f32 %v3614, 1.0
    %v3737 = vsub.f32 %v3616, 1.0
    %v3738 = vsub.f32 %v3618, 1.0
    %v3739 = vsub.f32 %v3620, 1.0
    %v3740 = vsub.f32 %v3622, 1.0
    %v3741 = vsub.f32 %v3624, 1.0
    %v3742 = vsub.f32 %v3626, 1.0
    %v3743 = vsub.f32 %v3628, 1.0
    %v3744 = vsub.f32 %v3630, 1.0
    %v3745 = vsub.f32 %v3632, 1.0
    %v3746 = vsub.f32 %v3634, 1.0
    %v3747 = vsub.f32 %v3636, 1.0
    %v3748 = vsub.f32 %v3638, 1.0
    %v3749 = vsub.f32 %v3640, 1.0
    %v3750 = vsub.f32 %v3642, 1.0
    %v3751 = vsub.f32 %v3644, 1.0
    %v3752 = vsub.f32 %v3646, 1.0
    %v3753 = vsub.f32 %v3648, 1.0
    %v3754 = vsub.f32 %v3650, 1.0
    %v3755 = vsub.f32 %v3652, 1.0
    %v3756 = vsub.f32 %v3654, 1.0
    %v3757 = vsub.f32 %v3656, 1.0
    %v3758 = vsub.f32 %v3658, 1.0
    %v3759 = vsub.f32 %v3660, 1.0
    %v3760 = vsub.f32 %v3662, 1.0
    %v3761 = vsub.f32 %v3664, 1.0
    %v3762 = vsub.f32 %v3666, 1.0
    %v3763 = vsub.f32 %v3668, 1.0
    %v3764 = vsub.f32 %v3670, 1.0
    %v3765 = vsub.f32 %v3672, 1.0
    %v3766 = vsub.f32 %v3674, 1.0
    %v3767 = vsub.f32 %v3676, 1.0
    %v3768 = vsub.f32 %v3678, 1.0
    %v3769 = vsub.f32 %v3680, 1.0
    %v3770 = vsub.f32 %v3682, 1.0
    %v3771 = vsub.f32 %v3684, 1.0
    %v3772 = vsub.f32 %v3686, 1.0
    %v3773 = vsub.f32 %v3688, 1.0
    %v3774 = vsub.f32 %v3690, 1.0
    %v3775 = vsub.f32 %v3692, 1.0
    %v3776 = vsub.f32 %v3694, 1.0
    %v3777 = vsub.f32 %v3696, 1.0
    %v3778 = vsub.f32 %v3698, 1.0
    %v3779 = vsub.f32 %v3700, 1.0
    %v3780 = vsub.f32 %v3702, 1.0
    %v3781 = vsub.f32 %v3704, 1.0
    %v3782 = vsub.f32 %v3706, 1.0
    %v3783 = vsub.f32 %v3708, 1.0
    %v3784 = vsub.f32 %v3710, 1.0
    %v3785 = vsub.f32 %v3712, 1.0
    %v3786 = vsub.f32 %v3714, 1.0
    %v3787 = vsub.f32 %v3716, 1.0
    %v3788 = vsub.f32 %v3718, 1.0
    %v3789 = vsub.f32 %v3720, 1.0
    %v3790 = vsub.f32 %v3722, 1.0
    %v3791 = vsub.f32 %v3724, 1.0
    %v3792 = vsub.f32 %v3726, 1.0
    %v3793 = vsub.f32 %v3728, 1.0
    %v3794 = vsub.f32 %v3730, 1.0
    %v3795 = vsel %vm3539, %v3285, %v3731
    %v3796 = vsel %vm3540, %v3288, %v3732
    %v3797 = vsel %vm3541, %v3293, %v3733
    %v3798 = vsel %vm3542, %v3296, %v3734
    %v3799 = vsel %vm3543, %v3301, %v3735
    %v3800 = vsel %vm3544, %v3304, %v3736
    %v3801 = vsel %vm3545, %v3309, %v3737
    %v3802 = vsel %vm3546, %v3312, %v3738
    %v3803 = vsel %vm3547, %v3317, %v3739
    %v3804 = vsel %vm3548, %v3320, %v3740
    %v3805 = vsel %vm3549, %v3325, %v3741
    %v3806 = vsel %vm3550, %v3328, %v3742
    %v3807 = vsel %vm3551, %v3333, %v3743
    %v3808 = vsel %vm3552, %v3336, %v3744
    %v3809 = vsel %vm3553, %v3341, %v3745
    %v3810 = vsel %vm3554, %v3344, %v3746
    %v3811 = vsel %vm3555, %v3349, %v3747
    %v3812 = vsel %vm3556, %v3352, %v3748
    %v3813 = vsel %vm3557, %v3357, %v3749
    %v3814 = vsel %vm3558, %v3360, %v3750
    %v3815 = vsel %vm3559, %v3365, %v3751
    %v3816 = vsel %vm3560, %v3368, %v3752
    %v3817 = vsel %vm3561, %v3373, %v3753
    %v3818 = vsel %vm3562, %v3376, %v3754
    %v3819 = vsel %vm3563, %v3381, %v3755
    %v3820 = vsel %vm3564, %v3384, %v3756
    %v3821 = vsel %vm3565, %v3389, %v3757
    %v3822 = vsel %vm3566, %v3392, %v3758
    %v3823 = vsel %vm3567, %v3397, %v3759
    %v3824 = vsel %vm3568, %v3400, %v3760
    %v3825 = vsel %vm3569, %v3405, %v3761
    %v3826 = vsel %vm3570, %v3408, %v3762
    %v3827 = vsel %vm3571, %v3413, %v3763
    %v3828 = vsel %vm3572, %v3416, %v3764
    %v3829 = vsel %vm3573, %v3421, %v3765
    %v3830 = vsel %vm3574, %v3424, %v3766
    %v3831 = vsel %vm3575, %v3429, %v3767
    %v3832 = vsel %vm3576, %v3432, %v3768
    %v3833 = vsel %vm3577, %v3437, %v3769
    %v3834 = vsel %vm3578, %v3440, %v3770
    %v3835 = vsel %vm3579, %v3445, %v3771
    %v3836 = vsel %vm3580, %v3448, %v3772
    %v3837 = vsel %vm3581, %v3453, %v3773
    %v3838 = vsel %vm3582, %v3456, %v3774
    %v3839 = vsel %vm3583, %v3461, %v3775
    %v3840 = vsel %vm3584, %v3464, %v3776
    %v3841 = vsel %vm3585, %v3469, %v3777
    %v3842 = vsel %vm3586, %v3472, %v3778
    %v3843 = vsel %vm3587, %v3477, %v3779
    %v3844 = vsel %vm3588, %v3480, %v3780
    %v3845 = vsel %vm3589, %v3485, %v3781
    %v3846 = vsel %vm3590, %v3488, %v3782
    %v3847 = vsel %vm3591, %v3493, %v3783
    %v3848 = vsel %vm3592, %v3496, %v3784
    %v3849 = vsel %vm3593, %v3501, %v3785
    %v3850 = vsel %vm3594, %v3504, %v3786
    %v3851 = vsel %vm3595, %v3509, %v3787
    %v3852 = vsel %vm3596, %v3512, %v3788
    %v3853 = vsel %vm3597, %v3517, %v3789
    %v3854 = vsel %vm3598, %v3520, %v3790
    %v3855 = vsel %vm3599, %v3525, %v3791
    %v3856 = vsel %vm3600, %v3528, %v3792
    %v3857 = vsel %vm3601, %v3533, %v3793
    %v3858 = vsel %vm3602, %v3536, %v3794
    %v3859 = vmul.f32 %v3795, %v98
    %v3860 = vmul.f32 %v3796, %v98
    %v3861 = vmul.f32 %v3797, %v98
    %v3862 = vmul.f32 %v3798, %v98
    %v3863 = vmul.f32 %v3799, %v98
    %v3864 = vmul.f32 %v3800, %v98
    %v3865 = vmul.f32 %v3801, %v98
    %v3866 = vmul.f32 %v3802, %v98
    %v3867 = vmul.f32 %v3803, %v98
    %v3868 = vmul.f32 %v3804, %v98
    %v3869 = vmul.f32 %v3805, %v98
    %v3870 = vmul.f32 %v3806, %v98
    %v3871 = vmul.f32 %v3807, %v98
    %v3872 = vmul.f32 %v3808, %v98
    %v3873 = vmul.f32 %v3809, %v98
    %v3874 = vmul.f32 %v3810, %v98
    %v3875 = vmul.f32 %v3811, %v98
    %v3876 = vmul.f32 %v3812, %v98
    %v3877 = vmul.f32 %v3813, %v98
    %v3878 = vmul.f32 %v3814, %v98
    %v3879 = vmul.f32 %v3815, %v98
    %v3880 = vmul.f32 %v3816, %v98
    %v3881 = vmul.f32 %v3817, %v98
    %v3882 = vmul.f32 %v3818, %v98
    %v3883 = vmul.f32 %v3819, %v98
    %v3884 = vmul.f32 %v3820, %v98
    %v3885 = vmul.f32 %v3821, %v98
    %v3886 = vmul.f32 %v3822, %v98
    %v3887 = vmul.f32 %v3823, %v98
    %v3888 = vmul.f32 %v3824, %v98
    %v3889 = vmul.f32 %v3825, %v98
    %v3890 = vmul.f32 %v3826, %v98
    %v3891 = vmul.f32 %v3827, %v98
    %v3892 = vmul.f32 %v3828, %v98
    %v3893 = vmul.f32 %v3829, %v98
    %v3894 = vmul.f32 %v3830, %v98
    %v3895 = vmul.f32 %v3831, %v98
    %v3896 = vmul.f32 %v3832, %v98
    %v3897 = vmul.f32 %v3833, %v98
    %v3898 = vmul.f32 %v3834, %v98
    %v3899 = vmul.f32 %v3835, %v98
    %v3900 = vmul.f32 %v3836, %v98
    %v3901 = vmul.f32 %v3837, %v98
    %v3902 = vmul.f32 %v3838, %v98
    %v3903 = vmul.f32 %v3839, %v98
    %v3904 = vmul.f32 %v3840, %v98
    %v3905 = vmul.f32 %v3841, %v98
    %v3906 = vmul.f32 %v3842, %v98
    %v3907 = vmul.f32 %v3843, %v98
    %v3908 = vmul.f32 %v3844, %v98
    %v3909 = vmul.f32 %v3845, %v98
    %v3910 = vmul.f32 %v3846, %v98
    %v3911 = vmul.f32 %v3847, %v98
    %v3912 = vmul.f32 %v3848, %v98
    %v3913 = vmul.f32 %v3849, %v98
    %v3914 = vmul.f32 %v3850, %v98
    %v3915 = vmul.f32 %v3851, %v98
    %v3916 = vmul.f32 %v3852, %v98
    %v3917 = vmul.f32 %v3853, %v98
    %v3918 = vmul.f32 %v3854, %v98
    %v3919 = vmul.f32 %v3855, %v98
    %v3920 = vmul.f32 %v3856, %v98
    %v3921 = vmul.f32 %v3857, %v98
    %v3922 = vmul.f32 %v3858, %v98
    %vm3923 = vcmask 523264
    %v3924 = vsel %vm3923, %v3859, 0.0
    %3925 = vadd.xlane.f32.xlu0 %v3924
    %v3926 = vpop.xlane.xlu0 %3925
    %v3927 = vsel %vm3923, %v3860, 0.0
    %3928 = vadd.xlane.f32.xlu0 %v3927
    %v3929 = vpop.xlane.xlu0 %3928
    %v3930 = vsel %vm3923, %v3861, 0.0
    %3931 = vadd.xlane.f32.xlu0 %v3930
    %v3932 = vpop.xlane.xlu0 %3931
    %v3933 = vsel %vm3923, %v3862, 0.0
    %3934 = vadd.xlane.f32.xlu0 %v3933
    %v3935 = vpop.xlane.xlu0 %3934
    %v3936 = vsel %vm3923, %v3863, 0.0
    %3937 = vadd.xlane.f32.xlu0 %v3936
    %v3938 = vpop.xlane.xlu0 %3937
    %v3939 = vsel %vm3923, %v3864, 0.0
    %3940 = vadd.xlane.f32.xlu0 %v3939
    %v3941 = vpop.xlane.xlu0 %3940
    %v3942 = vsel %vm3923, %v3865, 0.0
    %3943 = vadd.xlane.f32.xlu0 %v3942
    %v3944 = vpop.xlane.xlu0 %3943
    %v3945 = vsel %vm3923, %v3866, 0.0
    %3946 = vadd.xlane.f32.xlu0 %v3945
    %v3947 = vpop.xlane.xlu0 %3946
    %v3948 = vsel %vm3923, %v3867, 0.0
    %3949 = vadd.xlane.f32.xlu0 %v3948
    %v3950 = vpop.xlane.xlu0 %3949
    %v3951 = vsel %vm3923, %v3868, 0.0
    %3952 = vadd.xlane.f32.xlu0 %v3951
    %v3953 = vpop.xlane.xlu0 %3952
    %v3954 = vsel %vm3923, %v3869, 0.0
    %3955 = vadd.xlane.f32.xlu0 %v3954
    %v3956 = vpop.xlane.xlu0 %3955
    %v3957 = vsel %vm3923, %v3870, 0.0
    %3958 = vadd.xlane.f32.xlu0 %v3957
    %v3959 = vpop.xlane.xlu0 %3958
    %v3960 = vsel %vm3923, %v3871, 0.0
    %3961 = vadd.xlane.f32.xlu0 %v3960
    %v3962 = vpop.xlane.xlu0 %3961
    %v3963 = vsel %vm3923, %v3872, 0.0
    %3964 = vadd.xlane.f32.xlu0 %v3963
    %v3965 = vpop.xlane.xlu0 %3964
    %v3966 = vsel %vm3923, %v3873, 0.0
    %3967 = vadd.xlane.f32.xlu0 %v3966
    %v3968 = vpop.xlane.xlu0 %3967
    %v3969 = vsel %vm3923, %v3874, 0.0
    %3970 = vadd.xlane.f32.xlu0 %v3969
    %v3971 = vpop.xlane.xlu0 %3970
    %v3972 = vsel %vm3923, %v3875, 0.0
    %3973 = vadd.xlane.f32.xlu0 %v3972
    %v3974 = vpop.xlane.xlu0 %3973
    %v3975 = vsel %vm3923, %v3876, 0.0
    %3976 = vadd.xlane.f32.xlu0 %v3975
    %v3977 = vpop.xlane.xlu0 %3976
    %v3978 = vsel %vm3923, %v3877, 0.0
    %3979 = vadd.xlane.f32.xlu0 %v3978
    %v3980 = vpop.xlane.xlu0 %3979
    %v3981 = vsel %vm3923, %v3878, 0.0
    %3982 = vadd.xlane.f32.xlu0 %v3981
    %v3983 = vpop.xlane.xlu0 %3982
    %v3984 = vsel %vm3923, %v3879, 0.0
    %3985 = vadd.xlane.f32.xlu0 %v3984
    %v3986 = vpop.xlane.xlu0 %3985
    %v3987 = vsel %vm3923, %v3880, 0.0
    %3988 = vadd.xlane.f32.xlu0 %v3987
    %v3989 = vpop.xlane.xlu0 %3988
    %v3990 = vsel %vm3923, %v3881, 0.0
    %3991 = vadd.xlane.f32.xlu0 %v3990
    %v3992 = vpop.xlane.xlu0 %3991
    %v3993 = vsel %vm3923, %v3882, 0.0
    %3994 = vadd.xlane.f32.xlu0 %v3993
    %v3995 = vpop.xlane.xlu0 %3994
    %v3996 = vsel %vm3923, %v3883, 0.0
    %3997 = vadd.xlane.f32.xlu0 %v3996
    %v3998 = vpop.xlane.xlu0 %3997
    %v3999 = vsel %vm3923, %v3884, 0.0
    %4000 = vadd.xlane.f32.xlu0 %v3999
    %v4001 = vpop.xlane.xlu0 %4000
    %v4002 = vsel %vm3923, %v3885, 0.0
    %4003 = vadd.xlane.f32.xlu0 %v4002
    %v4004 = vpop.xlane.xlu0 %4003
    %v4005 = vsel %vm3923, %v3886, 0.0
    %4006 = vadd.xlane.f32.xlu0 %v4005
    %v4007 = vpop.xlane.xlu0 %4006
    %v4008 = vsel %vm3923, %v3887, 0.0
    %4009 = vadd.xlane.f32.xlu0 %v4008
    %v4010 = vpop.xlane.xlu0 %4009
    %v4011 = vsel %vm3923, %v3888, 0.0
    %4012 = vadd.xlane.f32.xlu0 %v4011
    %v4013 = vpop.xlane.xlu0 %4012
    %v4014 = vsel %vm3923, %v3889, 0.0
    %4015 = vadd.xlane.f32.xlu0 %v4014
    %v4016 = vpop.xlane.xlu0 %4015
    %v4017 = vsel %vm3923, %v3890, 0.0
    %4018 = vadd.xlane.f32.xlu0 %v4017
    %v4019 = vpop.xlane.xlu0 %4018
    %v4020 = vsel %vm3923, %v3891, 0.0
    %4021 = vadd.xlane.f32.xlu0 %v4020
    %v4022 = vpop.xlane.xlu0 %4021
    %v4023 = vsel %vm3923, %v3892, 0.0
    %4024 = vadd.xlane.f32.xlu0 %v4023
    %v4025 = vpop.xlane.xlu0 %4024
    %v4026 = vsel %vm3923, %v3893, 0.0
    %4027 = vadd.xlane.f32.xlu0 %v4026
    %v4028 = vpop.xlane.xlu0 %4027
    %v4029 = vsel %vm3923, %v3894, 0.0
    %4030 = vadd.xlane.f32.xlu0 %v4029
    %v4031 = vpop.xlane.xlu0 %4030
    %v4032 = vsel %vm3923, %v3895, 0.0
    %4033 = vadd.xlane.f32.xlu0 %v4032
    %v4034 = vpop.xlane.xlu0 %4033
    %v4035 = vsel %vm3923, %v3896, 0.0
    %4036 = vadd.xlane.f32.xlu0 %v4035
    %v4037 = vpop.xlane.xlu0 %4036
    %v4038 = vsel %vm3923, %v3897, 0.0
    %4039 = vadd.xlane.f32.xlu0 %v4038
    %v4040 = vpop.xlane.xlu0 %4039
    %v4041 = vsel %vm3923, %v3898, 0.0
    %4042 = vadd.xlane.f32.xlu0 %v4041
    %v4043 = vpop.xlane.xlu0 %4042
    %v4044 = vsel %vm3923, %v3899, 0.0
    %4045 = vadd.xlane.f32.xlu0 %v4044
    %v4046 = vpop.xlane.xlu0 %4045
    %v4047 = vsel %vm3923, %v3900, 0.0
    %4048 = vadd.xlane.f32.xlu0 %v4047
    %v4049 = vpop.xlane.xlu0 %4048
    %v4050 = vsel %vm3923, %v3901, 0.0
    %4051 = vadd.xlane.f32.xlu0 %v4050
    %v4052 = vpop.xlane.xlu0 %4051
    %v4053 = vsel %vm3923, %v3902, 0.0
    %4054 = vadd.xlane.f32.xlu0 %v4053
    %v4055 = vpop.xlane.xlu0 %4054
    %v4056 = vsel %vm3923, %v3903, 0.0
    %4057 = vadd.xlane.f32.xlu0 %v4056
    %v4058 = vpop.xlane.xlu0 %4057
    %v4059 = vsel %vm3923, %v3904, 0.0
    %4060 = vadd.xlane.f32.xlu0 %v4059
    %v4061 = vpop.xlane.xlu0 %4060
    %v4062 = vsel %vm3923, %v3905, 0.0
    %4063 = vadd.xlane.f32.xlu0 %v4062
    %v4064 = vpop.xlane.xlu0 %4063
    %v4065 = vsel %vm3923, %v3906, 0.0
    %4066 = vadd.xlane.f32.xlu0 %v4065
    %v4067 = vpop.xlane.xlu0 %4066
    %v4068 = vsel %vm3923, %v3907, 0.0
    %4069 = vadd.xlane.f32.xlu0 %v4068
    %v4070 = vpop.xlane.xlu0 %4069
    %v4071 = vsel %vm3923, %v3908, 0.0
    %4072 = vadd.xlane.f32.xlu0 %v4071
    %v4073 = vpop.xlane.xlu0 %4072
    %v4074 = vsel %vm3923, %v3909, 0.0
    %4075 = vadd.xlane.f32.xlu0 %v4074
    %v4076 = vpop.xlane.xlu0 %4075
    %v4077 = vsel %vm3923, %v3910, 0.0
    %4078 = vadd.xlane.f32.xlu0 %v4077
    %v4079 = vpop.xlane.xlu0 %4078
    %v4080 = vsel %vm3923, %v3911, 0.0
    %4081 = vadd.xlane.f32.xlu0 %v4080
    %v4082 = vpop.xlane.xlu0 %4081
    %v4083 = vsel %vm3923, %v3912, 0.0
    %4084 = vadd.xlane.f32.xlu0 %v4083
    %v4085 = vpop.xlane.xlu0 %4084
    %v4086 = vsel %vm3923, %v3913, 0.0
    %4087 = vadd.xlane.f32.xlu0 %v4086
    %v4088 = vpop.xlane.xlu0 %4087
    %v4089 = vsel %vm3923, %v3914, 0.0
    %4090 = vadd.xlane.f32.xlu0 %v4089
    %v4091 = vpop.xlane.xlu0 %4090
    %v4092 = vsel %vm3923, %v3915, 0.0
    %4093 = vadd.xlane.f32.xlu0 %v4092
    %v4094 = vpop.xlane.xlu0 %4093
    %v4095 = vsel %vm3923, %v3916, 0.0
    %4096 = vadd.xlane.f32.xlu0 %v4095
    %v4097 = vpop.xlane.xlu0 %4096
    %v4098 = vsel %vm3923, %v3917, 0.0
    %4099 = vadd.xlane.f32.xlu0 %v4098
    %v4100 = vpop.xlane.xlu0 %4099
    %v4101 = vsel %vm3923, %v3918, 0.0
    %4102 = vadd.xlane.f32.xlu0 %v4101
    %v4103 = vpop.xlane.xlu0 %4102
    %v4104 = vsel %vm3923, %v3919, 0.0
    %4105 = vadd.xlane.f32.xlu0 %v4104
    %v4106 = vpop.xlane.xlu0 %4105
    %v4107 = vsel %vm3923, %v3920, 0.0
    %4108 = vadd.xlane.f32.xlu0 %v4107
    %v4109 = vpop.xlane.xlu0 %4108
    %v4110 = vsel %vm3923, %v3921, 0.0
    %4111 = vadd.xlane.f32.xlu0 %v4110
    %v4112 = vpop.xlane.xlu0 %4111
    %v4113 = vsel %vm3923, %v3922, 0.0
    %4114 = vadd.xlane.f32.xlu0 %v4113
    %v4115 = vpop.xlane.xlu0 %4114
    %v4116 = vadd.f32 %v3926, %v99
    %v4117 = vadd.f32 %v3929, %v99
    %v4118 = vadd.f32 %v3932, %v99
    %v4119 = vadd.f32 %v3935, %v99
    %v4120 = vadd.f32 %v3938, %v99
    %v4121 = vadd.f32 %v3941, %v99
    %v4122 = vadd.f32 %v3944, %v99
    %v4123 = vadd.f32 %v3947, %v99
    %v4124 = vadd.f32 %v3950, %v99
    %v4125 = vadd.f32 %v3953, %v99
    %v4126 = vadd.f32 %v3956, %v99
    %v4127 = vadd.f32 %v3959, %v99
    %v4128 = vadd.f32 %v3962, %v99
    %v4129 = vadd.f32 %v3965, %v99
    %v4130 = vadd.f32 %v3968, %v99
    %v4131 = vadd.f32 %v3971, %v99
    %v4132 = vadd.f32 %v3974, %v99
    %v4133 = vadd.f32 %v3977, %v99
    %v4134 = vadd.f32 %v3980, %v99
    %v4135 = vadd.f32 %v3983, %v99
    %v4136 = vadd.f32 %v3986, %v99
    %v4137 = vadd.f32 %v3989, %v99
    %v4138 = vadd.f32 %v3992, %v99
    %v4139 = vadd.f32 %v3995, %v99
    %v4140 = vadd.f32 %v3998, %v99
    %v4141 = vadd.f32 %v4001, %v99
    %v4142 = vadd.f32 %v4004, %v99
    %v4143 = vadd.f32 %v4007, %v99
    %v4144 = vadd.f32 %v4010, %v99
    %v4145 = vadd.f32 %v4013, %v99
    %v4146 = vadd.f32 %v4016, %v99
    %v4147 = vadd.f32 %v4019, %v99
    %v4148 = vadd.f32 %v4022, %v99
    %v4149 = vadd.f32 %v4025, %v99
    %v4150 = vadd.f32 %v4028, %v99
    %v4151 = vadd.f32 %v4031, %v99
    %v4152 = vadd.f32 %v4034, %v99
    %v4153 = vadd.f32 %v4037, %v99
    %v4154 = vadd.f32 %v4040, %v99
    %v4155 = vadd.f32 %v4043, %v99
    %v4156 = vadd.f32 %v4046, %v99
    %v4157 = vadd.f32 %v4049, %v99
    %v4158 = vadd.f32 %v4052, %v99
    %v4159 = vadd.f32 %v4055, %v99
    %v4160 = vadd.f32 %v4058, %v99
    %v4161 = vadd.f32 %v4061, %v99
    %v4162 = vadd.f32 %v4064, %v99
    %v4163 = vadd.f32 %v4067, %v99
    %v4164 = vadd.f32 %v4070, %v99
    %v4165 = vadd.f32 %v4073, %v99
    %v4166 = vadd.f32 %v4076, %v99
    %v4167 = vadd.f32 %v4079, %v99
    %v4168 = vadd.f32 %v4082, %v99
    %v4169 = vadd.f32 %v4085, %v99
    %v4170 = vadd.f32 %v4088, %v99
    %v4171 = vadd.f32 %v4091, %v99
    %v4172 = vadd.f32 %v4094, %v99
    %v4173 = vadd.f32 %v4097, %v99
    %v4174 = vadd.f32 %v4100, %v99
    %v4175 = vadd.f32 %v4103, %v99
    %v4176 = vadd.f32 %v4106, %v99
    %v4177 = vadd.f32 %v4109, %v99
    %v4178 = vadd.f32 %v4112, %v99
    %v4179 = vadd.f32 %v4115, %v99
    %vm4180 = vcmask 7168
    %4181 = vst.msk [vmem:[%s7] sm:$0xff] %vm4180, %v4116
    %4182 = vst.msk [vmem:[%s7 + $0x8] sm:$0xff] %vm4180, %v4117
    %4183 = vst.msk [vmem:[%s7 + $0x10] sm:$0xff] %vm4180, %v4118
    %4184 = vst.msk [vmem:[%s7 + $0x18] sm:$0xff] %vm4180, %v4119
    %4185 = vst.msk [vmem:[%s7 + $0x20] sm:$0xff] %vm4180, %v4120
    %4186 = vst.msk [vmem:[%s7 + $0x28] sm:$0xff] %vm4180, %v4121
    %4187 = vst.msk [vmem:[%s7 + $0x30] sm:$0xff] %vm4180, %v4122
    %4188 = vst.msk [vmem:[%s7 + $0x38] sm:$0xff] %vm4180, %v4123
    %4189 = vst.msk [vmem:[%s7 + $0x40] sm:$0xff] %vm4180, %v4124
    %4190 = vst.msk [vmem:[%s7 + $0x48] sm:$0xff] %vm4180, %v4125
    %4191 = vst.msk [vmem:[%s7 + $0x50] sm:$0xff] %vm4180, %v4126
    %4192 = vst.msk [vmem:[%s7 + $0x58] sm:$0xff] %vm4180, %v4127
    %4193 = vst.msk [vmem:[%s7 + $0x60] sm:$0xff] %vm4180, %v4128
    %4194 = vst.msk [vmem:[%s7 + $0x68] sm:$0xff] %vm4180, %v4129
    %4195 = vst.msk [vmem:[%s7 + $0x70] sm:$0xff] %vm4180, %v4130
    %4196 = vst.msk [vmem:[%s7 + $0x78] sm:$0xff] %vm4180, %v4131
    %4197 = vst.msk [vmem:[%s7 + $0x80] sm:$0xff] %vm4180, %v4132
    %4198 = vst.msk [vmem:[%s7 + $0x88] sm:$0xff] %vm4180, %v4133
    %4199 = vst.msk [vmem:[%s7 + $0x90] sm:$0xff] %vm4180, %v4134
    %4200 = vst.msk [vmem:[%s7 + $0x98] sm:$0xff] %vm4180, %v4135
    %4201 = vst.msk [vmem:[%s7 + $0xa0] sm:$0xff] %vm4180, %v4136
    %4202 = vst.msk [vmem:[%s7 + $0xa8] sm:$0xff] %vm4180, %v4137
    %4203 = vst.msk [vmem:[%s7 + $0xb0] sm:$0xff] %vm4180, %v4138
    %4204 = vst.msk [vmem:[%s7 + $0xb8] sm:$0xff] %vm4180, %v4139
    %4205 = vst.msk [vmem:[%s7 + $0xc0] sm:$0xff] %vm4180, %v4140
    %4206 = vst.msk [vmem:[%s7 + $0xc8] sm:$0xff] %vm4180, %v4141
    %4207 = vst.msk [vmem:[%s7 + $0xd0] sm:$0xff] %vm4180, %v4142
    %4208 = vst.msk [vmem:[%s7 + $0xd8] sm:$0xff] %vm4180, %v4143
    %4209 = vst.msk [vmem:[%s7 + $0xe0] sm:$0xff] %vm4180, %v4144
    %4210 = vst.msk [vmem:[%s7 + $0xe8] sm:$0xff] %vm4180, %v4145
    %4211 = vst.msk [vmem:[%s7 + $0xf0] sm:$0xff] %vm4180, %v4146
    %4212 = vst.msk [vmem:[%s7 + $0xf8] sm:$0xff] %vm4180, %v4147
    %4213 = vst.msk [vmem:[%s7 + $0x100] sm:$0xff] %vm4180, %v4148
    %4214 = vst.msk [vmem:[%s7 + $0x108] sm:$0xff] %vm4180, %v4149
    %4215 = vst.msk [vmem:[%s7 + $0x110] sm:$0xff] %vm4180, %v4150
    %4216 = vst.msk [vmem:[%s7 + $0x118] sm:$0xff] %vm4180, %v4151
    %4217 = vst.msk [vmem:[%s7 + $0x120] sm:$0xff] %vm4180, %v4152
    %4218 = vst.msk [vmem:[%s7 + $0x128] sm:$0xff] %vm4180, %v4153
    %4219 = vst.msk [vmem:[%s7 + $0x130] sm:$0xff] %vm4180, %v4154
    %4220 = vst.msk [vmem:[%s7 + $0x138] sm:$0xff] %vm4180, %v4155
    %4221 = vst.msk [vmem:[%s7 + $0x140] sm:$0xff] %vm4180, %v4156
    %4222 = vst.msk [vmem:[%s7 + $0x148] sm:$0xff] %vm4180, %v4157
    %4223 = vst.msk [vmem:[%s7 + $0x150] sm:$0xff] %vm4180, %v4158
    %4224 = vst.msk [vmem:[%s7 + $0x158] sm:$0xff] %vm4180, %v4159
    %4225 = vst.msk [vmem:[%s7 + $0x160] sm:$0xff] %vm4180, %v4160
    %4226 = vst.msk [vmem:[%s7 + $0x168] sm:$0xff] %vm4180, %v4161
    %4227 = vst.msk [vmem:[%s7 + $0x170] sm:$0xff] %vm4180, %v4162
    %4228 = vst.msk [vmem:[%s7 + $0x178] sm:$0xff] %vm4180, %v4163
    %4229 = vst.msk [vmem:[%s7 + $0x180] sm:$0xff] %vm4180, %v4164
    %4230 = vst.msk [vmem:[%s7 + $0x188] sm:$0xff] %vm4180, %v4165
    %4231 = vst.msk [vmem:[%s7 + $0x190] sm:$0xff] %vm4180, %v4166
    %4232 = vst.msk [vmem:[%s7 + $0x198] sm:$0xff] %vm4180, %v4167
    %4233 = vst.msk [vmem:[%s7 + $0x1a0] sm:$0xff] %vm4180, %v4168
    %4234 = vst.msk [vmem:[%s7 + $0x1a8] sm:$0xff] %vm4180, %v4169
    %4235 = vst.msk [vmem:[%s7 + $0x1b0] sm:$0xff] %vm4180, %v4170
    %4236 = vst.msk [vmem:[%s7 + $0x1b8] sm:$0xff] %vm4180, %v4171
    %4237 = vst.msk [vmem:[%s7 + $0x1c0] sm:$0xff] %vm4180, %v4172
    %4238 = vst.msk [vmem:[%s7 + $0x1c8] sm:$0xff] %vm4180, %v4173
    %4239 = vst.msk [vmem:[%s7 + $0x1d0] sm:$0xff] %vm4180, %v4174
    %4240 = vst.msk [vmem:[%s7 + $0x1d8] sm:$0xff] %vm4180, %v4175
    %4241 = vst.msk [vmem:[%s7 + $0x1e0] sm:$0xff] %vm4180, %v4176
    %4242 = vst.msk [vmem:[%s7 + $0x1e8] sm:$0xff] %vm4180, %v4177
    %4243 = vst.msk [vmem:[%s7 + $0x1f0] sm:$0xff] %vm4180, %v4178
    %4244 = vst.msk [vmem:[%s7 + $0x1f8] sm:$0xff] %vm4180, %v4179
    // Predicated region
    $region50: #{tpu_custom_call.1} parent=1 // pred_check
      _
    $region51: #{tpu_custom_call.1} parent=1 // pred_check_branch
      %4246 = sbr.rel (0) target = $region53
    $region52: #{tpu_custom_call.1} parent=1 // pred_region
      _
    $region53: #{tpu_custom_call.1} parent=1 // pred_fallthru
      _
    // Predicated region
    $region54: #{tpu_custom_call.1} parent=1 // pred_check
      _
    $region55: #{tpu_custom_call.1} parent=1 // pred_check_branch
      %4248 = sbr.rel (0) target = $region57
    $region56: #{tpu_custom_call.1} parent=1 // pred_region
      _
    $region57: #{tpu_custom_call.1} parent=1 // pred_fallthru
      _
    %4249 = vsyncpa [#allocation3], 1
    %4250 = vsyncpa [#allocation5], 1
    %4251 = vsyncpa [#allocation8], 1

</llo_original>
